<compile_context>
chip_gen: v5e
topology: v5e:2x2
jax: 0.10.0
libtpu: 0.0.40
codegen_flags: <defaults>
</compile_context>

<pallas_src>
import functools

import numpy as np
import jax
import jax.numpy as jnp
from jax import lax
from jax.experimental import pallas as pl
from jax.experimental.pallas import tpu as pltpu


def _convblock_kernel(x_ref, w_ref, b_ref, o_ref, pad_ref, *,
                      H, W, Cin, Cout, K, eps, neg_slope):
    """One batch tile per grid step (channels-last / NHWC layout).

    x_ref   : (BT, H, W, Cin)       VMEM
    w_ref   : (K*K, Cin, Cout)      VMEM  (gain-folded weight taps, mm dtype)
    b_ref   : (1, Cout)             VMEM  (f32)
    o_ref   : (BT, H, W, Cout)      VMEM
    pad_ref : (BT, H+2, W+2, Cin)   VMEM scratch, mm dtype (zero-bordered)
    """
    BT = x_ref.shape[0]
    M = BT * H * W
    zt = pad_ref.dtype

    # --- PixelNorm along the channel (lane) axis; rsqrt -> EUP slot. ---
    x = x_ref[...].astype(jnp.float32)
    ms = jnp.mean(x * x, axis=-1, keepdims=True)
    xn = x * lax.rsqrt(ms + eps)

    # --- Zero-padded, normalized input.  Only the 1-pixel border is zeroed
    #     (2 rows + left/right columns); the interior is fully overwritten.
    #     Kept per-step so the "parallel" batch axis stays correct on
    #     multi-TensorCore chips. ---
    pad_ref[:, 0:1, :, :] = jnp.zeros((BT, 1, W + 2, Cin), zt)
    pad_ref[:, H + 1:H + 2, :, :] = jnp.zeros((BT, 1, W + 2, Cin), zt)
    pad_ref[:, 1:H + 1, 0:1, :] = jnp.zeros((BT, H, 1, Cin), zt)
    pad_ref[:, 1:H + 1, W + 1:W + 2, :] = jnp.zeros((BT, H, 1, Cin), zt)
    pad_ref[:, 1:H + 1, 1:W + 1, :] = xn.astype(zt)

    # --- 3x3 conv as 9 accumulating MXU matmuls (no im2col scratch). ---
    acc = None
    for kh in range(K):
        for kw in range(K):
            tap = kh * K + kw
            v = pad_ref[:, kh:kh + H, kw:kw + W, :].reshape(M, Cin)
            p = jnp.dot(v, w_ref[tap], preferred_element_type=jnp.float32)
            acc = p if acc is None else acc + p

    # --- WScale bias (gain already folded into the weight) + LeakyReLU(0.2),
    #     all in f32. ---
    y = acc + b_ref[...]
    y = jnp.maximum(y, neg_slope * y)
    o_ref[...] = y.reshape(BT, H, W, Cout).astype(o_ref.dtype)


def _ceil_to(a, m):
    return -(-a // m) * m


def _padded_bytes(shape, itemsize):
    """Rough (8,128)-tile-padded VMEM footprint of one buffer."""
    s = list(shape)
    if len(s) >= 1:
        s[-1] = _ceil_to(s[-1], 128)
    if len(s) >= 2:
        s[-2] = _ceil_to(s[-2], 8)
    n = 1
    for d in s:
        n *= int(d)
    return n * itemsize


def conv_block_forward_nhwc(x_nhwc, weight_oihw, bias, *,
                            wscale_gain=float(np.sqrt(2.0)),
                            batch_tile=None,
                            matmul_dtype=jnp.float32):
    """ConvBlock forward on NHWC activations (default config: no upsample,
    no fused_scale, lrelu).  Returns NHWC."""
    N, H, W, Cin = x_nhwc.shape
    Cout, Cin_w, K, K2 = weight_oihw.shape
    assert Cin_w == Cin and K == K2 == 3, "default ConvBlock uses 3x3 kernels"

    x_item = jnp.dtype(x_nhwc.dtype).itemsize
    mm_item = jnp.dtype(matmul_dtype).itemsize

    if batch_tile is None:
        # Aim for a few MiB per pipelined block, but keep the grid >= 2 so
        # v7x's two TensorCores both get work on the "parallel" batch axis.
        per_img = max(1, H * W * max(Cin, Cout) * x_item)
        batch_tile = max(1, min(max(N // 2, 1), (4 << 20) // per_img))
        while N % batch_tile:
            batch_tile -= 1
    assert N % batch_tile == 0, "batch_tile must divide N"

    scale = float(wscale_gain / np.sqrt(Cin * K * K))

    # OIHW -> HWIO -> (K*K, Cin, Cout) taps; fold the wscale gain in and cast
    # to the matmul dtype ONCE here (not per grid step inside the kernel).
    w_taps = (jnp.transpose(weight_oihw, (2, 3, 1, 0))
              .reshape(K * K, Cin, Cout) * scale).astype(matmul_dtype)
    b2 = bias.reshape(1, Cout).astype(jnp.float32)

    # VMEM budget from actual (lane-padded) buffer sizes: double-buffered
    # in/out blocks + pad scratch + weights + f32 accumulator headroom.
    M = batch_tile * H * W
    vmem_bytes = (2 * _padded_bytes((batch_tile, H, W, Cin), x_item)
                  + 2 * _padded_bytes((batch_tile, H, W, Cout), x_item)
                  + _padded_bytes((batch_tile, H + 2, W + 2, Cin), mm_item)
                  + 2 * _padded_bytes((K * K, Cin, Cout), mm_item)
                  + 2 * _padded_bytes((1, Cout), 4)
                  + 3 * _padded_bytes((M, Cout), 4)
                  + 3 * _padded_bytes((M, Cin), mm_item)
                  + (4 << 20))
    vmem_limit = int(min(max(vmem_bytes, 16 << 20), 64 << 20))

    kern = functools.partial(
        _convblock_kernel, H=H, W=W, Cin=Cin, Cout=Cout, K=K,
        eps=1e-8, neg_slope=0.2)

    return pl.pallas_call(
        kern,
        out_shape=jax.ShapeDtypeStruct((N, H, W, Cout), x_nhwc.dtype),
        grid_spec=pltpu.PrefetchScalarGridSpec(
            num_scalar_prefetch=0,
            grid=(N // batch_tile,),
            in_specs=[
                pl.BlockSpec((batch_tile, H, W, Cin),
                             lambda n: (n, 0, 0, 0)),
                pl.BlockSpec((K * K, Cin, Cout), lambda n: (0, 0, 0)),
                pl.BlockSpec((1, Cout), lambda n: (0, 0)),
            ],
            out_specs=pl.BlockSpec((batch_tile, H, W, Cout),
                                   lambda n: (n, 0, 0, 0)),
            scratch_shapes=[
                pltpu.VMEM((batch_tile, H + 2, W + 2, Cin), matmul_dtype),
            ],
        ),
        compiler_params=pltpu.CompilerParams(
            dimension_semantics=("parallel",),   # batch elems independent
            vmem_limit_bytes=vmem_limit),
    )(x_nhwc, w_taps, b2)


def conv_block_forward(x_nchw, weight_oihw, bias, **kwargs):
    """Module-faithful NCHW interface.

    NOTE: for end-to-end pipelines prefer `conv_block_forward_nhwc` and keep
    activations channels-last across layers -- each transpose here is a full
    HBM round-trip in a separate XLA op.
    """
    x_nhwc = jnp.transpose(x_nchw, (0, 2, 3, 1))
    out_nhwc = conv_block_forward_nhwc(x_nhwc, weight_oihw, bias, **kwargs)
    return jnp.transpose(out_nhwc, (0, 3, 1, 2))


def _reference_forward(x_nchw, weight_oihw, bias, *,
                       wscale_gain=float(np.sqrt(2.0))):
    """Pure-JAX reference mirroring the PyTorch module (for validation)."""
    Cout, Cin, K, _ = weight_oihw.shape
    scale = wscale_gain / np.sqrt(Cin * K * K)
    eps = 1e-8
    xn = x_nchw / jnp.sqrt(jnp.mean(x_nchw ** 2, axis=1, keepdims=True) + eps)
    y = jax.lax.conv_general_dilated(
        xn, weight_oihw, window_strides=(1, 1), padding=((1, 1), (1, 1)),
        dimension_numbers=("NCHW", "OIHW", "NCHW"))
    y = y * scale + bias.reshape(1, -1, 1, 1)
    return jnp.where(y >= 0.0, y, 0.2 * y)


if __name__ == "__main__":
    key = jax.random.PRNGKey(0)
    kx, kw, kb = jax.random.split(key, 3)

    N, Cin, Cout, H, W, K = 2, 4, 8, 16, 16, 3

    x = jax.random.normal(kx, (N, Cin, H, W), dtype=jnp.float32)
    # nn.Conv2d weight, shape (out_channels, in_channels, k, k).
    weight = jax.random.normal(kw, (Cout, Cin, K, K), dtype=jnp.float32) * 0.1
    # WScaleLayer bias is trainable; use a nonzero one to exercise it.
    bias = jax.random.normal(kb, (Cout,), dtype=jnp.float32) * 0.1

    ref = jax.block_until_ready(_reference_forward(x, weight, bias))

    # f32 MXU path (matches the reference to f32 rounding).
    out = jax.block_until_ready(conv_block_forward(x, weight, bias))
    np.testing.assert_allclose(np.asarray(out), np.asarray(ref),
                               rtol=1e-5, atol=1e-5)

    # bf16-matmul fast path (f32 accumulation) -- production MXU path.
    out_bf16 = jax.block_until_ready(
        conv_block_forward(x, weight, bias, matmul_dtype=jnp.bfloat16))
    np.testing.assert_allclose(np.asarray(out_bf16), np.asarray(ref),
                               rtol=5e-2, atol=5e-2)

    print("KERNEL_OK")
</pallas_src>

<mosaic_0001>
module attributes {stable_mosaic.version = 11 : i64} {
  func.func @_convblock_kernel(%arg0: i32, %arg1: memref<1x16x16x4xf32, #tpu.memory_space<vmem>>, %arg2: memref<9x4x8xf32, #tpu.memory_space<vmem>>, %arg3: memref<1x8xf32, #tpu.memory_space<vmem>>, %arg4: memref<1x16x16x8xf32, #tpu.memory_space<vmem>>, %arg5: memref<1x18x18x4xf32, #tpu.memory_space<vmem>>) attributes {dimension_semantics = [#tpu.dimension_semantics<parallel>], iteration_bounds = array<i64: 2>, scalar_prefetch = 0 : i64, scratch_operands = 1 : i64, tpu.core_type = #tpu.core_type<tc>, window_params = [{transform_indices = @transform_0, window_bounds = array<i64: 1, 16, 16, 4>}, {pipeline_mode = #tpu.pipeline_mode<synchronous>, transform_indices = @transform_1, window_bounds = array<i64: 9, 4, 8>}, {pipeline_mode = #tpu.pipeline_mode<synchronous>, transform_indices = @transform_2, window_bounds = array<i64: 1, 8>}, {transform_indices = @transform_3, window_bounds = array<i64: 1, 16, 16, 8>}]} {
    %c0 = arith.constant 0 : index
    %c0_0 = arith.constant 0 : index
    %c0_1 = arith.constant 0 : index
    %c0_2 = arith.constant 0 : index
    %0 = vector.load %arg1[%c0, %c0_0, %c0_1, %c0_2] : memref<1x16x16x4xf32, #tpu.memory_space<vmem>>, vector<1x16x16x4xf32>
    %1 = arith.mulf %0, %0 : vector<1x16x16x4xf32>
    %cst = arith.constant dense<0.000000e+00> : vector<1x16x16xf32>
    %2 = vector.multi_reduction <add>, %1, %cst [3] : vector<1x16x16x4xf32> to vector<1x16x16xf32>
    %3 = vector.shape_cast %2 : vector<1x16x16xf32> to vector<1x16x16x1xf32>
    %cst_3 = arith.constant 4.000000e+00 : f32
    %4 = vector.broadcast %cst_3 : f32 to vector<1x16x16x1xf32>
    %5 = arith.divf %3, %4 : vector<1x16x16x1xf32>
    %cst_4 = arith.constant 9.99999993E-9 : f32
    %6 = vector.broadcast %cst_4 : f32 to vector<1x16x16x1xf32>
    %7 = arith.addf %5, %6 : vector<1x16x16x1xf32>
    %8 = math.rsqrt %7 : vector<1x16x16x1xf32>
    %9 = vector.broadcast %8 : vector<1x16x16x1xf32> to vector<1x16x16x4xf32>
    %10 = arith.mulf %0, %9 : vector<1x16x16x4xf32>
    %cst_5 = arith.constant 0.000000e+00 : f32
    %11 = vector.broadcast %cst_5 : f32 to vector<1x1x18x4xf32>
    %c0_6 = arith.constant 0 : index
    %c0_7 = arith.constant 0 : index
    %c0_8 = arith.constant 0 : index
    %c0_9 = arith.constant 0 : index
    %12 = vector.load %arg5[%c0_6, %c0_7, %c0_8, %c0_9] : memref<1x18x18x4xf32, #tpu.memory_space<vmem>>, vector<1x1x18x4xf32>
    tpu.vector_store %arg5[%c0_6, %c0_7, %c0_8, %c0_9], %11 {strides = array<i32>} : memref<1x18x18x4xf32, #tpu.memory_space<vmem>>, vector<1x1x18x4xf32>,
    %cst_10 = arith.constant 0.000000e+00 : f32
    %13 = vector.broadcast %cst_10 : f32 to vector<1x1x18x4xf32>
    %c0_11 = arith.constant 0 : index
    %c17 = arith.constant 17 : index
    %c0_12 = arith.constant 0 : index
    %c0_13 = arith.constant 0 : index
    %14 = vector.load %arg5[%c0_11, %c17, %c0_12, %c0_13] : memref<1x18x18x4xf32, #tpu.memory_space<vmem>>, vector<1x1x18x4xf32>
    tpu.vector_store %arg5[%c0_11, %c17, %c0_12, %c0_13], %13 {strides = array<i32>} : memref<1x18x18x4xf32, #tpu.memory_space<vmem>>, vector<1x1x18x4xf32>,
    %cst_14 = arith.constant 0.000000e+00 : f32
    %15 = vector.broadcast %cst_14 : f32 to vector<1x16x1x4xf32>
    %c0_15 = arith.constant 0 : index
    %c1 = arith.constant 1 : index
    %c0_16 = arith.constant 0 : index
    %c0_17 = arith.constant 0 : index
    %16 = vector.load %arg5[%c0_15, %c1, %c0_16, %c0_17] : memref<1x18x18x4xf32, #tpu.memory_space<vmem>>, vector<1x16x1x4xf32>
    tpu.vector_store %arg5[%c0_15, %c1, %c0_16, %c0_17], %15 {strides = array<i32>} : memref<1x18x18x4xf32, #tpu.memory_space<vmem>>, vector<1x16x1x4xf32>,
    %cst_18 = arith.constant 0.000000e+00 : f32
    %17 = vector.broadcast %cst_18 : f32 to vector<1x16x1x4xf32>
    %c0_19 = arith.constant 0 : index
    %c1_20 = arith.constant 1 : index
    %c17_21 = arith.constant 17 : index
    %c0_22 = arith.constant 0 : index
    %18 = vector.load %arg5[%c0_19, %c1_20, %c17_21, %c0_22] : memref<1x18x18x4xf32, #tpu.memory_space<vmem>>, vector<1x16x1x4xf32>
    tpu.vector_store %arg5[%c0_19, %c1_20, %c17_21, %c0_22], %17 {strides = array<i32>} : memref<1x18x18x4xf32, #tpu.memory_space<vmem>>, vector<1x16x1x4xf32>,
    %c0_23 = arith.constant 0 : index
    %c1_24 = arith.constant 1 : index
    %c1_25 = arith.constant 1 : index
    %c0_26 = arith.constant 0 : index
    %19 = vector.load %arg5[%c0_23, %c1_24, %c1_25, %c0_26] : memref<1x18x18x4xf32, #tpu.memory_space<vmem>>, vector<1x16x16x4xf32>
    tpu.vector_store %arg5[%c0_23, %c1_24, %c1_25, %c0_26], %10 {strides = array<i32>} : memref<1x18x18x4xf32, #tpu.memory_space<vmem>>, vector<1x16x16x4xf32>,
    %c0_27 = arith.constant 0 : index
    %c0_28 = arith.constant 0 : index
    %c0_29 = arith.constant 0 : index
    %c0_30 = arith.constant 0 : index
    %20 = vector.load %arg5[%c0_27, %c0_28, %c0_29, %c0_30] : memref<1x18x18x4xf32, #tpu.memory_space<vmem>>, vector<1x16x16x4xf32>
    %21 = vector.shape_cast %20 : vector<1x16x16x4xf32> to vector<256x4xf32>
    %c0_31 = arith.constant 0 : index
    %c0_32 = arith.constant 0 : index
    %c0_33 = arith.constant 0 : index
    %22 = vector.load %arg2[%c0_31, %c0_32, %c0_33] : memref<9x4x8xf32, #tpu.memory_space<vmem>>, vector<1x4x8xf32>
    %23 = vector.shape_cast %22 : vector<1x4x8xf32> to vector<4x8xf32>
    %cst_34 = arith.constant dense<0.000000e+00> : vector<256x8xf32>
    %24 = tpu.matmul %21, %23, %cst_34 {dimension_numbers = #tpu.dot_dimension_numbers<[1], [0], [0], [1], [0, 0, 1, 1], [], []>} : vector<256x4xf32>, vector<4x8xf32>, vector<256x8xf32> -> vector<256x8xf32>
    %c0_35 = arith.constant 0 : index
    %c0_36 = arith.constant 0 : index
    %c1_37 = arith.constant 1 : index
    %c0_38 = arith.constant 0 : index
    %25 = vector.load %arg5[%c0_35, %c0_36, %c1_37, %c0_38] : memref<1x18x18x4xf32, #tpu.memory_space<vmem>>, vector<1x16x16x4xf32>
    %26 = vector.shape_cast %25 : vector<1x16x16x4xf32> to vector<256x4xf32>
    %c1_39 = arith.constant 1 : index
    %c0_40 = arith.constant 0 : index
    %c0_41 = arith.constant 0 : index
    %27 = vector.load %arg2[%c1_39, %c0_40, %c0_41] : memref<9x4x8xf32, #tpu.memory_space<vmem>>, vector<1x4x8xf32>
    %28 = vector.shape_cast %27 : vector<1x4x8xf32> to vector<4x8xf32>
    %cst_42 = arith.constant dense<0.000000e+00> : vector<256x8xf32>
    %29 = tpu.matmul %26, %28, %cst_42 {dimension_numbers = #tpu.dot_dimension_numbers<[1], [0], [0], [1], [0, 0, 1, 1], [], []>} : vector<256x4xf32>, vector<4x8xf32>, vector<256x8xf32> -> vector<256x8xf32>
    %30 = arith.addf %24, %29 : vector<256x8xf32>
    %c0_43 = arith.constant 0 : index
    %c0_44 = arith.constant 0 : index
    %c2 = arith.constant 2 : index
    %c0_45 = arith.constant 0 : index
    %31 = vector.load %arg5[%c0_43, %c0_44, %c2, %c0_45] : memref<1x18x18x4xf32, #tpu.memory_space<vmem>>, vector<1x16x16x4xf32>
    %32 = vector.shape_cast %31 : vector<1x16x16x4xf32> to vector<256x4xf32>
    %c2_46 = arith.constant 2 : index
    %c0_47 = arith.constant 0 : index
    %c0_48 = arith.constant 0 : index
    %33 = vector.load %arg2[%c2_46, %c0_47, %c0_48] : memref<9x4x8xf32, #tpu.memory_space<vmem>>, vector<1x4x8xf32>
    %34 = vector.shape_cast %33 : vector<1x4x8xf32> to vector<4x8xf32>
    %cst_49 = arith.constant dense<0.000000e+00> : vector<256x8xf32>
    %35 = tpu.matmul %32, %34, %cst_49 {dimension_numbers = #tpu.dot_dimension_numbers<[1], [0], [0], [1], [0, 0, 1, 1], [], []>} : vector<256x4xf32>, vector<4x8xf32>, vector<256x8xf32> -> vector<256x8xf32>
    %36 = arith.addf %30, %35 : vector<256x8xf32>
    %c0_50 = arith.constant 0 : index
    %c1_51 = arith.constant 1 : index
    %c0_52 = arith.constant 0 : index
    %c0_53 = arith.constant 0 : index
    %37 = vector.load %arg5[%c0_50, %c1_51, %c0_52, %c0_53] : memref<1x18x18x4xf32, #tpu.memory_space<vmem>>, vector<1x16x16x4xf32>
    %38 = vector.shape_cast %37 : vector<1x16x16x4xf32> to vector<256x4xf32>
    %c3 = arith.constant 3 : index
    %c0_54 = arith.constant 0 : index
    %c0_55 = arith.constant 0 : index
    %39 = vector.load %arg2[%c3, %c0_54, %c0_55] : memref<9x4x8xf32, #tpu.memory_space<vmem>>, vector<1x4x8xf32>
    %40 = vector.shape_cast %39 : vector<1x4x8xf32> to vector<4x8xf32>
    %cst_56 = arith.constant dense<0.000000e+00> : vector<256x8xf32>
    %41 = tpu.matmul %38, %40, %cst_56 {dimension_numbers = #tpu.dot_dimension_numbers<[1], [0], [0], [1], [0, 0, 1, 1], [], []>} : vector<256x4xf32>, vector<4x8xf32>, vector<256x8xf32> -> vector<256x8xf32>
    %42 = arith.addf %36, %41 : vector<256x8xf32>
    %c0_57 = arith.constant 0 : index
    %c1_58 = arith.constant 1 : index
    %c1_59 = arith.constant 1 : index
    %c0_60 = arith.constant 0 : index
    %43 = vector.load %arg5[%c0_57, %c1_58, %c1_59, %c0_60] : memref<1x18x18x4xf32, #tpu.memory_space<vmem>>, vector<1x16x16x4xf32>
    %44 = vector.shape_cast %43 : vector<1x16x16x4xf32> to vector<256x4xf32>
    %c4 = arith.constant 4 : index
    %c0_61 = arith.constant 0 : index
    %c0_62 = arith.constant 0 : index
    %45 = vector.load %arg2[%c4, %c0_61, %c0_62] : memref<9x4x8xf32, #tpu.memory_space<vmem>>, vector<1x4x8xf32>
    %46 = vector.shape_cast %45 : vector<1x4x8xf32> to vector<4x8xf32>
    %cst_63 = arith.constant dense<0.000000e+00> : vector<256x8xf32>
    %47 = tpu.matmul %44, %46, %cst_63 {dimension_numbers = #tpu.dot_dimension_numbers<[1], [0], [0], [1], [0, 0, 1, 1], [], []>} : vector<256x4xf32>, vector<4x8xf32>, vector<256x8xf32> -> vector<256x8xf32>
    %48 = arith.addf %42, %47 : vector<256x8xf32>
    %c0_64 = arith.constant 0 : index
    %c1_65 = arith.constant 1 : index
    %c2_66 = arith.constant 2 : index
    %c0_67 = arith.constant 0 : index
    %49 = vector.load %arg5[%c0_64, %c1_65, %c2_66, %c0_67] : memref<1x18x18x4xf32, #tpu.memory_space<vmem>>, vector<1x16x16x4xf32>
    %50 = vector.shape_cast %49 : vector<1x16x16x4xf32> to vector<256x4xf32>
    %c5 = arith.constant 5 : index
    %c0_68 = arith.constant 0 : index
    %c0_69 = arith.constant 0 : index
    %51 = vector.load %arg2[%c5, %c0_68, %c0_69] : memref<9x4x8xf32, #tpu.memory_space<vmem>>, vector<1x4x8xf32>
    %52 = vector.shape_cast %51 : vector<1x4x8xf32> to vector<4x8xf32>
    %cst_70 = arith.constant dense<0.000000e+00> : vector<256x8xf32>
    %53 = tpu.matmul %50, %52, %cst_70 {dimension_numbers = #tpu.dot_dimension_numbers<[1], [0], [0], [1], [0, 0, 1, 1], [], []>} : vector<256x4xf32>, vector<4x8xf32>, vector<256x8xf32> -> vector<256x8xf32>
    %54 = arith.addf %48, %53 : vector<256x8xf32>
    %c0_71 = arith.constant 0 : index
    %c2_72 = arith.constant 2 : index
    %c0_73 = arith.constant 0 : index
    %c0_74 = arith.constant 0 : index
    %55 = vector.load %arg5[%c0_71, %c2_72, %c0_73, %c0_74] : memref<1x18x18x4xf32, #tpu.memory_space<vmem>>, vector<1x16x16x4xf32>
    %56 = vector.shape_cast %55 : vector<1x16x16x4xf32> to vector<256x4xf32>
    %c6 = arith.constant 6 : index
    %c0_75 = arith.constant 0 : index
    %c0_76 = arith.constant 0 : index
    %57 = vector.load %arg2[%c6, %c0_75, %c0_76] : memref<9x4x8xf32, #tpu.memory_space<vmem>>, vector<1x4x8xf32>
    %58 = vector.shape_cast %57 : vector<1x4x8xf32> to vector<4x8xf32>
    %cst_77 = arith.constant dense<0.000000e+00> : vector<256x8xf32>
    %59 = tpu.matmul %56, %58, %cst_77 {dimension_numbers = #tpu.dot_dimension_numbers<[1], [0], [0], [1], [0, 0, 1, 1], [], []>} : vector<256x4xf32>, vector<4x8xf32>, vector<256x8xf32> -> vector<256x8xf32>
    %60 = arith.addf %54, %59 : vector<256x8xf32>
    %c0_78 = arith.constant 0 : index
    %c2_79 = arith.constant 2 : index
    %c1_80 = arith.constant 1 : index
    %c0_81 = arith.constant 0 : index
    %61 = vector.load %arg5[%c0_78, %c2_79, %c1_80, %c0_81] : memref<1x18x18x4xf32, #tpu.memory_space<vmem>>, vector<1x16x16x4xf32>
    %62 = vector.shape_cast %61 : vector<1x16x16x4xf32> to vector<256x4xf32>
    %c7 = arith.constant 7 : index
    %c0_82 = arith.constant 0 : index
    %c0_83 = arith.constant 0 : index
    %63 = vector.load %arg2[%c7, %c0_82, %c0_83] : memref<9x4x8xf32, #tpu.memory_space<vmem>>, vector<1x4x8xf32>
    %64 = vector.shape_cast %63 : vector<1x4x8xf32> to vector<4x8xf32>
    %cst_84 = arith.constant dense<0.000000e+00> : vector<256x8xf32>
    %65 = tpu.matmul %62, %64, %cst_84 {dimension_numbers = #tpu.dot_dimension_numbers<[1], [0], [0], [1], [0, 0, 1, 1], [], []>} : vector<256x4xf32>, vector<4x8xf32>, vector<256x8xf32> -> vector<256x8xf32>
    %66 = arith.addf %60, %65 : vector<256x8xf32>
    %c0_85 = arith.constant 0 : index
    %c2_86 = arith.constant 2 : index
    %c2_87 = arith.constant 2 : index
    %c0_88 = arith.constant 0 : index
    %67 = vector.load %arg5[%c0_85, %c2_86, %c2_87, %c0_88] : memref<1x18x18x4xf32, #tpu.memory_space<vmem>>, vector<1x16x16x4xf32>
    %68 = vector.shape_cast %67 : vector<1x16x16x4xf32> to vector<256x4xf32>
    %c8 = arith.constant 8 : index
    %c0_89 = arith.constant 0 : index
    %c0_90 = arith.constant 0 : index
    %69 = vector.load %arg2[%c8, %c0_89, %c0_90] : memref<9x4x8xf32, #tpu.memory_space<vmem>>, vector<1x4x8xf32>
    %70 = vector.shape_cast %69 : vector<1x4x8xf32> to vector<4x8xf32>
    %cst_91 = arith.constant dense<0.000000e+00> : vector<256x8xf32>
    %71 = tpu.matmul %68, %70, %cst_91 {dimension_numbers = #tpu.dot_dimension_numbers<[1], [0], [0], [1], [0, 0, 1, 1], [], []>} : vector<256x4xf32>, vector<4x8xf32>, vector<256x8xf32> -> vector<256x8xf32>
    %72 = arith.addf %66, %71 : vector<256x8xf32>
    %c0_92 = arith.constant 0 : index
    %c0_93 = arith.constant 0 : index
    %73 = vector.load %arg3[%c0_92, %c0_93] : memref<1x8xf32, #tpu.memory_space<vmem>>, vector<1x8xf32>
    %74 = vector.broadcast %73 : vector<1x8xf32> to vector<256x8xf32>
    %75 = arith.addf %72, %74 : vector<256x8xf32>
    %cst_94 = arith.constant 2.000000e-01 : f32
    %76 = vector.broadcast %cst_94 : f32 to vector<256x8xf32>
    %77 = arith.mulf %76, %75 : vector<256x8xf32>
    %78 = arith.maximumf %75, %77 : vector<256x8xf32>
    %79 = vector.shape_cast %78 : vector<256x8xf32> to vector<1x16x16x8xf32>
    %c0_95 = arith.constant 0 : index
    %c0_96 = arith.constant 0 : index
    %c0_97 = arith.constant 0 : index
    %c0_98 = arith.constant 0 : index
    %80 = vector.load %arg4[%c0_95, %c0_96, %c0_97, %c0_98] : memref<1x16x16x8xf32, #tpu.memory_space<vmem>>, vector<1x16x16x8xf32>
    tpu.vector_store %arg4[%c0_95, %c0_96, %c0_97, %c0_98], %79 {strides = array<i32>} : memref<1x16x16x8xf32, #tpu.memory_space<vmem>>, vector<1x16x16x8xf32>,
    return
  }
  func.func @transform_0(%arg0: i32) -> (i32, i32, i32, i32) {
    %c0_i32 = arith.constant 0 : i32
    %c0_i32_0 = arith.constant 0 : i32
    %c0_i32_1 = arith.constant 0 : i32
    %c0_i32_2 = arith.constant 0 : i32
    return %arg0, %c0_i32, %c0_i32_0, %c0_i32_1 : i32, i32, i32, i32
  }
  func.func @transform_1(%arg0: i32) -> (i32, i32, i32) {
    %c0_i32 = arith.constant 0 : i32
    %c0_i32_0 = arith.constant 0 : i32
    %c0_i32_1 = arith.constant 0 : i32
    %c0_i32_2 = arith.constant 0 : i32
    return %c0_i32, %c0_i32_0, %c0_i32_1 : i32, i32, i32
  }
  func.func @transform_2(%arg0: i32) -> (i32, i32) {
    %c0_i32 = arith.constant 0 : i32
    %c0_i32_0 = arith.constant 0 : i32
    %c0_i32_1 = arith.constant 0 : i32
    return %c0_i32, %c0_i32_0 : i32, i32
  }
  func.func @transform_3(%arg0: i32) -> (i32, i32, i32, i32) {
    %c0_i32 = arith.constant 0 : i32
    %c0_i32_0 = arith.constant 0 : i32
    %c0_i32_1 = arith.constant 0 : i32
    %c0_i32_2 = arith.constant 0 : i32
    return %arg0, %c0_i32, %c0_i32_0, %c0_i32_1 : i32, i32, i32, i32
  }
}

</mosaic_0001>

<llo_original>
// kernel: tpu_custom_call.1
$region0: #{tpu_custom_call.1}
  #allocation0 [shape = 'u32[]', space=smem, size = 0x4, offset = 0x4, fixed_abs, tag = 'smem constant byte address 0x4 - core index']
  #allocation1 [shape = 'u32[72,128]{1,0:T(1,128)}', space=vmem, size = 0x9000, scoped, tag = 'internal scratch']
  #allocation2 [shape = 'f32[1,18,18,4]{3,2,1,0:T(8,128)}', space=vmem, size = 0x36000, scoped, tag = 'scratch operand']
  %s0 = inlined_call_operand.vmem [shape: f32[2,16,16,4], index: 0, kind: input, shape index: {}]
  %s1 = inlined_call_operand.vmem [shape: f32[9,4,8], index: 1, kind: input, shape index: {}]
  %s2 = inlined_call_operand.vmem [shape: f32[1,8], index: 2, kind: input, shape index: {}]
  %s3 = inlined_call_operand.vmem [shape: f32[2,16,16,8], index: 3, kind: output, shape index: {}]
  %s4 = sld [smem:[#allocation0]]
  $region45: #{tpu_custom_call.1} parent=0
    _
  %s6 = ssub.s32 1, %s4
  %s7 = scalar_select 0, %s6, %s4
  loop: start=0, step=1, limit=4
  $region2: #{tpu_custom_call.1} parent=0 // loop_pre_header
    _
  $region3: #{tpu_custom_call.1} parent=0 // loop_header
    %s9 = sphi 0, %s13
    %p10 = scmp.ge.s32.totalorder %s9, 4
    %s19 = sphi 0, %s21
    %s22 = sphi 0, %s19
    %s23 = sphi 0, %s22
    %s39 = sphi 0, %s23
    %s43 = sphi 0, %s43
    %s45 = sphi 0, %s43
    %s46 = sphi 0, %s45
    %s60 = sphi 0, %s46
    %s64 = sphi 0, %s64
    %s66 = sphi 0, %s64
    %s67 = sphi 0, %s66
    %s81 = sphi 0, %s67
    %s87 = sphi 0, %s89
    %s90 = sphi 0, %s87
    %s91 = sphi 0, %s90
    %s107 = sphi 0, %s91
  $region4: #{tpu_custom_call.1} parent=0 // loop_header_branch
    %12 = sbr.rel (%p10) target = $region8
  $region5: #{tpu_custom_call.1} parent=0 // loop_body
    %s14 = ssub.s32 %s9, 1
    %s15 = ssub.s32 %s9, 2
    %s16 = sadd.s32 %s9, 1
    %s17 = ssub.s32 %s9, %s16
    %p18 = scmp.eq.s32.totalorder %s17, 0
    %s20 = sadd.s32 %s19, 1
    %s21 = scalar_select %p18, %s19, %s20
    %p24 = pneg %p18
    %p25 = scmp.eq.s32.totalorder %s9, 1
    %p26 = por %p24, %p25
    %p27 = scmp.ne.s32.totalorder %s19, %s22
    %p28 = scmp.eq.s32.totalorder %s9, 0
    %p29 = por %p27, %p28
    %p30 = scmp.ne.s32.totalorder %s19, %s22
    %p31 = scmp.eq.s32.totalorder %s14, 1
    %p32 = por %p30, %p31
    %p33 = scmp.ne.s32.totalorder %s22, %s23
    %p34 = scmp.eq.s32.totalorder %s14, 0
    %p35 = por %p33, %p34
    %p36 = scmp.ne.s32.totalorder %s22, %s23
    %p37 = scmp.eq.s32.totalorder %s15, 1
    %p38 = por %p36, %p37
    %p40 = scmp.ne.s32.totalorder %s23, %s39
    %p41 = scmp.eq.s32.totalorder %s15, 0
    %p42 = por %p40, %p41
    %s44 = sadd.s32 %s43, 1
    %p47 = scmp.eq.s32.totalorder %s9, 1
    %p48 = scmp.ne.s32.totalorder %s43, %s45
    %p49 = scmp.eq.s32.totalorder %s9, 0
    %p50 = por %p48, %p49
    %p51 = scmp.ne.s32.totalorder %s43, %s45
    %p52 = scmp.eq.s32.totalorder %s14, 1
    %p53 = por %p51, %p52
    %p54 = scmp.ne.s32.totalorder %s45, %s46
    %p55 = scmp.eq.s32.totalorder %s14, 0
    %p56 = por %p54, %p55
    %p57 = scmp.ne.s32.totalorder %s45, %s46
    %p58 = scmp.eq.s32.totalorder %s15, 1
    %p59 = por %p57, %p58
    %p61 = scmp.ne.s32.totalorder %s46, %s60
    %p62 = scmp.eq.s32.totalorder %s15, 0
    %p63 = por %p61, %p62
    %s65 = sadd.s32 %s64, 1
    %p68 = scmp.eq.s32.totalorder %s9, 1
    %p69 = scmp.ne.s32.totalorder %s64, %s66
    %p70 = scmp.eq.s32.totalorder %s9, 0
    %p71 = por %p69, %p70
    %p72 = scmp.ne.s32.totalorder %s64, %s66
    %p73 = scmp.eq.s32.totalorder %s14, 1
    %p74 = por %p72, %p73
    %p75 = scmp.ne.s32.totalorder %s66, %s67
    %p76 = scmp.eq.s32.totalorder %s14, 0
    %p77 = por %p75, %p76
    %p78 = scmp.ne.s32.totalorder %s66, %s67
    %p79 = scmp.eq.s32.totalorder %s15, 1
    %p80 = por %p78, %p79
    %p82 = scmp.ne.s32.totalorder %s67, %s81
    %p83 = scmp.eq.s32.totalorder %s15, 0
    %p84 = por %p82, %p83
    %s85 = ssub.s32 %s9, %s16
    %p86 = scmp.eq.s32.totalorder %s85, 0
    %s88 = sadd.s32 %s87, 1
    %s89 = scalar_select %p86, %s87, %s88
    %p92 = pneg %p86
    %p93 = scmp.eq.s32.totalorder %s9, 1
    %p94 = por %p92, %p93
    %p95 = scmp.ne.s32.totalorder %s87, %s90
    %p96 = scmp.eq.s32.totalorder %s9, 0
    %p97 = por %p95, %p96
    %p98 = scmp.ne.s32.totalorder %s87, %s90
    %p99 = scmp.eq.s32.totalorder %s14, 1
    %p100 = por %p98, %p99
    %p101 = scmp.ne.s32.totalorder %s90, %s91
    %p102 = scmp.eq.s32.totalorder %s14, 0
    %p103 = por %p101, %p102
    %p104 = scmp.ne.s32.totalorder %s90, %s91
    %p105 = scmp.eq.s32.totalorder %s15, 1
    %p106 = por %p104, %p105
    %p108 = scmp.ne.s32.totalorder %s91, %s107
    %p109 = scmp.eq.s32.totalorder %s15, 0
    %p110 = por %p108, %p109
    %p111 = scmp.le.s32.totalorder 1, %s9
    %p112 = scmp.lt.s32.totalorder %s9, 3
    %p113 = pnand %p111, %p112
    %p114 = pneg %p113
    // Predicated region
    $region9: #{tpu_custom_call.1} parent=5 // pred_check
      _
    $region10: #{tpu_custom_call.1} parent=5 // pred_check_branch
      %116 = sbr.rel (%p113) target = $region12
    $region11: #{tpu_custom_call.1} parent=5 // pred_region
      %s117 = ssub.s32 %s9, 1
      // Predicated region
      $region13: #{tpu_custom_call.1} parent=11 // pred_check
        %p118 = pneg %p56
      $region14: #{tpu_custom_call.1} parent=11 // pred_check_branch
        %120 = sbr.rel (%p118) target = $region16
      $region15: #{tpu_custom_call.1} parent=11 // pred_region
        _
      $region16: #{tpu_custom_call.1} parent=11 // pred_fallthru
        _
      // Predicated region
      $region17: #{tpu_custom_call.1} parent=11 // pred_check
        %p121 = pneg %p77
      $region18: #{tpu_custom_call.1} parent=11 // pred_check_branch
        %123 = sbr.rel (%p121) target = $region20
      $region19: #{tpu_custom_call.1} parent=11 // pred_region
        _
      $region20: #{tpu_custom_call.1} parent=11 // pred_fallthru
        _
    $region12: #{tpu_custom_call.1} parent=5 // pred_fallthru
      _
    %p124 = scmp.lt.s32.totalorder %s9, 2
    // Predicated region
    $region21: #{tpu_custom_call.1} parent=5 // pred_check
      %p125 = pneg %p124
    $region22: #{tpu_custom_call.1} parent=5 // pred_check_branch
      %127 = sbr.rel (%p125) target = $region24
    $region23: #{tpu_custom_call.1} parent=5 // pred_region
      // Predicated region
      $region25: #{tpu_custom_call.1} parent=23 // pred_check
        %p128 = pneg %p29
      $region26: #{tpu_custom_call.1} parent=23 // pred_check_branch
        %130 = sbr.rel (%p128) target = $region28
      $region27: #{tpu_custom_call.1} parent=23 // pred_region
        %p131 = scmp.lt.s32.totalorder %s9, 1
        %s132 = scalar_select %p131, %s9, 1
        %s133 = smul.addr %s132, 32
        %s134 = smul.addr %s133, 8
        %s135 = scalar_lea.vmem %s0, %s134
      $region28: #{tpu_custom_call.1} parent=23 // pred_fallthru
        _
    $region24: #{tpu_custom_call.1} parent=5 // pred_fallthru
      _
    %p136 = scmp.le.s32.totalorder 1, %s9
    %p137 = scmp.lt.s32.totalorder %s9, 3
    %p138 = pnand %p136, %p137
    %p139 = pneg %p138
    // Predicated region
    $region29: #{tpu_custom_call.1} parent=5 // pred_check
      _
    $region30: #{tpu_custom_call.1} parent=5 // pred_check_branch
      %141 = sbr.rel (%p138) target = $region32
    $region31: #{tpu_custom_call.1} parent=5 // pred_region
      %s142 = ssub.s32 %s9, 1
      %p143 = scmp.lt.s32.totalorder %s14, 1
      %s144 = scalar_select %p143, %s14, 1
      %s145 = smul.addr %s144, 32
      %s146 = smul.addr %s145, 8
      %s147 = scalar_lea.vmem %s0, %s146
      %p148 = pneg %p35
      %p149 = pneg %p32
      %p150 = pneg %p56
      %p151 = pneg %p53
      %p152 = pneg %p77
      %p153 = pneg %p74
      %p154 = pneg %p103
      %p155 = pneg %p100
      %p156 = scmp.lt.s32.totalorder %s14, 1
      %s157 = scalar_select %p156, %s14, 1
      %s158 = smul.addr %s157, 32
      %s159 = smul.addr %s158, 8
      %s160 = scalar_lea.vmem %s3, %s159
      %p161 = scmp.lt.s32.totalorder %s14, 1
      %s162 = scalar_select %p161, %s14, 1
      %s163 = smul.addr %s162, 32
      %s164 = smul.addr %s163, 8
      %s165 = scalar_lea.vmem %s0, %s164
      %p166 = scmp.lt.s32.totalorder %s14, 1
      %s167 = scalar_select %p166, %s14, 1
      %s168 = smul.addr %s167, 32
      %s169 = smul.addr %s168, 8
      %s170 = scalar_lea.vmem %s3, %s169
      %v171 = vld [vmem:[%s165] sm:$0xff]
      %v172 = vld [vmem:[%s165 + $0x8] sm:$0xff]
      %v173 = vld [vmem:[%s165 + $0x10] sm:$0xff]
      %v174 = vld [vmem:[%s165 + $0x18] sm:$0xff]
      %v175 = vld [vmem:[%s165 + $0x20] sm:$0xff]
      %v176 = vld [vmem:[%s165 + $0x28] sm:$0xff]
      %v177 = vld [vmem:[%s165 + $0x30] sm:$0xff]
      %v178 = vld [vmem:[%s165 + $0x38] sm:$0xff]
      %v179 = vld [vmem:[%s165 + $0x40] sm:$0xff]
      %v180 = vld [vmem:[%s165 + $0x48] sm:$0xff]
      %v181 = vld [vmem:[%s165 + $0x50] sm:$0xff]
      %v182 = vld [vmem:[%s165 + $0x58] sm:$0xff]
      %v183 = vld [vmem:[%s165 + $0x60] sm:$0xff]
      %v184 = vld [vmem:[%s165 + $0x68] sm:$0xff]
      %v185 = vld [vmem:[%s165 + $0x70] sm:$0xff]
      %v186 = vld [vmem:[%s165 + $0x78] sm:$0xff]
      %v187 = vld [vmem:[%s165 + $0x80] sm:$0xff]
      %v188 = vld [vmem:[%s165 + $0x88] sm:$0xff]
      %v189 = vld [vmem:[%s165 + $0x90] sm:$0xff]
      %v190 = vld [vmem:[%s165 + $0x98] sm:$0xff]
      %v191 = vld [vmem:[%s165 + $0xa0] sm:$0xff]
      %v192 = vld [vmem:[%s165 + $0xa8] sm:$0xff]
      %v193 = vld [vmem:[%s165 + $0xb0] sm:$0xff]
      %v194 = vld [vmem:[%s165 + $0xb8] sm:$0xff]
      %v195 = vld [vmem:[%s165 + $0xc0] sm:$0xff]
      %v196 = vld [vmem:[%s165 + $0xc8] sm:$0xff]
      %v197 = vld [vmem:[%s165 + $0xd0] sm:$0xff]
      %v198 = vld [vmem:[%s165 + $0xd8] sm:$0xff]
      %v199 = vld [vmem:[%s165 + $0xe0] sm:$0xff]
      %v200 = vld [vmem:[%s165 + $0xe8] sm:$0xff]
      %v201 = vld [vmem:[%s165 + $0xf0] sm:$0xff]
      %v202 = vld [vmem:[%s165 + $0xf8] sm:$0xff]
      %v203 = vmul.f32 %v171, %v171
      %v204 = vmul.f32 %v172, %v172
      %v205 = vmul.f32 %v173, %v173
      %v206 = vmul.f32 %v174, %v174
      %v207 = vmul.f32 %v175, %v175
      %v208 = vmul.f32 %v176, %v176
      %v209 = vmul.f32 %v177, %v177
      %v210 = vmul.f32 %v178, %v178
      %v211 = vmul.f32 %v179, %v179
      %v212 = vmul.f32 %v180, %v180
      %v213 = vmul.f32 %v181, %v181
      %v214 = vmul.f32 %v182, %v182
      %v215 = vmul.f32 %v183, %v183
      %v216 = vmul.f32 %v184, %v184
      %v217 = vmul.f32 %v185, %v185
      %v218 = vmul.f32 %v186, %v186
      %v219 = vmul.f32 %v187, %v187
      %v220 = vmul.f32 %v188, %v188
      %v221 = vmul.f32 %v189, %v189
      %v222 = vmul.f32 %v190, %v190
      %v223 = vmul.f32 %v191, %v191
      %v224 = vmul.f32 %v192, %v192
      %v225 = vmul.f32 %v193, %v193
      %v226 = vmul.f32 %v194, %v194
      %v227 = vmul.f32 %v195, %v195
      %v228 = vmul.f32 %v196, %v196
      %v229 = vmul.f32 %v197, %v197
      %v230 = vmul.f32 %v198, %v198
      %v231 = vmul.f32 %v199, %v199
      %v232 = vmul.f32 %v200, %v200
      %v233 = vmul.f32 %v201, %v201
      %v234 = vmul.f32 %v202, %v202
      %vm235 = vcmask 31744
      %v236 = vsel %vm235, %v203, 0.0
      %237 = vadd.xlane.f32.xlu0 %v236
      %v238 = vpop.xlane.xlu0 %237
      %v239 = vsel %vm235, %v204, 0.0
      %240 = vadd.xlane.f32.xlu0 %v239
      %v241 = vpop.xlane.xlu0 %240
      %v242 = vsel %vm235, %v205, 0.0
      %243 = vadd.xlane.f32.xlu0 %v242
      %v244 = vpop.xlane.xlu0 %243
      %v245 = vsel %vm235, %v206, 0.0
      %246 = vadd.xlane.f32.xlu0 %v245
      %v247 = vpop.xlane.xlu0 %246
      %v248 = vsel %vm235, %v207, 0.0
      %249 = vadd.xlane.f32.xlu0 %v248
      %v250 = vpop.xlane.xlu0 %249
      %v251 = vsel %vm235, %v208, 0.0
      %252 = vadd.xlane.f32.xlu0 %v251
      %v253 = vpop.xlane.xlu0 %252
      %v254 = vsel %vm235, %v209, 0.0
      %255 = vadd.xlane.f32.xlu0 %v254
      %v256 = vpop.xlane.xlu0 %255
      %v257 = vsel %vm235, %v210, 0.0
      %258 = vadd.xlane.f32.xlu0 %v257
      %v259 = vpop.xlane.xlu0 %258
      %v260 = vsel %vm235, %v211, 0.0
      %261 = vadd.xlane.f32.xlu0 %v260
      %v262 = vpop.xlane.xlu0 %261
      %v263 = vsel %vm235, %v212, 0.0
      %264 = vadd.xlane.f32.xlu0 %v263
      %v265 = vpop.xlane.xlu0 %264
      %v266 = vsel %vm235, %v213, 0.0
      %267 = vadd.xlane.f32.xlu0 %v266
      %v268 = vpop.xlane.xlu0 %267
      %v269 = vsel %vm235, %v214, 0.0
      %270 = vadd.xlane.f32.xlu0 %v269
      %v271 = vpop.xlane.xlu0 %270
      %v272 = vsel %vm235, %v215, 0.0
      %273 = vadd.xlane.f32.xlu0 %v272
      %v274 = vpop.xlane.xlu0 %273
      %v275 = vsel %vm235, %v216, 0.0
      %276 = vadd.xlane.f32.xlu0 %v275
      %v277 = vpop.xlane.xlu0 %276
      %v278 = vsel %vm235, %v217, 0.0
      %279 = vadd.xlane.f32.xlu0 %v278
      %v280 = vpop.xlane.xlu0 %279
      %v281 = vsel %vm235, %v218, 0.0
      %282 = vadd.xlane.f32.xlu0 %v281
      %v283 = vpop.xlane.xlu0 %282
      %v284 = vsel %vm235, %v219, 0.0
      %285 = vadd.xlane.f32.xlu0 %v284
      %v286 = vpop.xlane.xlu0 %285
      %v287 = vsel %vm235, %v220, 0.0
      %288 = vadd.xlane.f32.xlu0 %v287
      %v289 = vpop.xlane.xlu0 %288
      %v290 = vsel %vm235, %v221, 0.0
      %291 = vadd.xlane.f32.xlu0 %v290
      %v292 = vpop.xlane.xlu0 %291
      %v293 = vsel %vm235, %v222, 0.0
      %294 = vadd.xlane.f32.xlu0 %v293
      %v295 = vpop.xlane.xlu0 %294
      %v296 = vsel %vm235, %v223, 0.0
      %297 = vadd.xlane.f32.xlu0 %v296
      %v298 = vpop.xlane.xlu0 %297
      %v299 = vsel %vm235, %v224, 0.0
      %300 = vadd.xlane.f32.xlu0 %v299
      %v301 = vpop.xlane.xlu0 %300
      %v302 = vsel %vm235, %v225, 0.0
      %303 = vadd.xlane.f32.xlu0 %v302
      %v304 = vpop.xlane.xlu0 %303
      %v305 = vsel %vm235, %v226, 0.0
      %306 = vadd.xlane.f32.xlu0 %v305
      %v307 = vpop.xlane.xlu0 %306
      %v308 = vsel %vm235, %v227, 0.0
      %309 = vadd.xlane.f32.xlu0 %v308
      %v310 = vpop.xlane.xlu0 %309
      %v311 = vsel %vm235, %v228, 0.0
      %312 = vadd.xlane.f32.xlu0 %v311
      %v313 = vpop.xlane.xlu0 %312
      %v314 = vsel %vm235, %v229, 0.0
      %315 = vadd.xlane.f32.xlu0 %v314
      %v316 = vpop.xlane.xlu0 %315
      %v317 = vsel %vm235, %v230, 0.0
      %318 = vadd.xlane.f32.xlu0 %v317
      %v319 = vpop.xlane.xlu0 %318
      %v320 = vsel %vm235, %v231, 0.0
      %321 = vadd.xlane.f32.xlu0 %v320
      %v322 = vpop.xlane.xlu0 %321
      %v323 = vsel %vm235, %v232, 0.0
      %324 = vadd.xlane.f32.xlu0 %v323
      %v325 = vpop.xlane.xlu0 %324
      %v326 = vsel %vm235, %v233, 0.0
      %327 = vadd.xlane.f32.xlu0 %v326
      %v328 = vpop.xlane.xlu0 %327
      %v329 = vsel %vm235, %v234, 0.0
      %330 = vadd.xlane.f32.xlu0 %v329
      %v331 = vpop.xlane.xlu0 %330
      %v332 = vrcp.pop 4.0
      %v333 = vmul.f32 4.0, %v332
      %v334 = vsub.f32 1.0, %v333
      %v335 = vmul.f32 %v332, %v334
      %v336 = vadd.f32 %v332, %v335
      %vm337 = vweird.f32 %v332
      %v338 = vsel %vm337, %v332, %v336
      %v339 = vmul.f32 %v238, %v338
      %v340 = vmul.f32 %v241, %v338
      %v341 = vmul.f32 %v244, %v338
      %v342 = vmul.f32 %v247, %v338
      %v343 = vmul.f32 %v250, %v338
      %v344 = vmul.f32 %v253, %v338
      %v345 = vmul.f32 %v256, %v338
      %v346 = vmul.f32 %v259, %v338
      %v347 = vmul.f32 %v262, %v338
      %v348 = vmul.f32 %v265, %v338
      %v349 = vmul.f32 %v268, %v338
      %v350 = vmul.f32 %v271, %v338
      %v351 = vmul.f32 %v274, %v338
      %v352 = vmul.f32 %v277, %v338
      %v353 = vmul.f32 %v280, %v338
      %v354 = vmul.f32 %v283, %v338
      %v355 = vmul.f32 %v286, %v338
      %v356 = vmul.f32 %v289, %v338
      %v357 = vmul.f32 %v292, %v338
      %v358 = vmul.f32 %v295, %v338
      %v359 = vmul.f32 %v298, %v338
      %v360 = vmul.f32 %v301, %v338
      %v361 = vmul.f32 %v304, %v338
      %v362 = vmul.f32 %v307, %v338
      %v363 = vmul.f32 %v310, %v338
      %v364 = vmul.f32 %v313, %v338
      %v365 = vmul.f32 %v316, %v338
      %v366 = vmul.f32 %v319, %v338
      %v367 = vmul.f32 %v322, %v338
      %v368 = vmul.f32 %v325, %v338
      %v369 = vmul.f32 %v328, %v338
      %v370 = vmul.f32 %v331, %v338
      %v371 = vadd.f32 %v339, 1e-08
      %v372 = vadd.f32 %v340, 1e-08
      %v373 = vadd.f32 %v341, 1e-08
      %v374 = vadd.f32 %v342, 1e-08
      %v375 = vadd.f32 %v343, 1e-08
      %v376 = vadd.f32 %v344, 1e-08
      %v377 = vadd.f32 %v345, 1e-08
      %v378 = vadd.f32 %v346, 1e-08
      %v379 = vadd.f32 %v347, 1e-08
      %v380 = vadd.f32 %v348, 1e-08
      %v381 = vadd.f32 %v349, 1e-08
      %v382 = vadd.f32 %v350, 1e-08
      %v383 = vadd.f32 %v351, 1e-08
      %v384 = vadd.f32 %v352, 1e-08
      %v385 = vadd.f32 %v353, 1e-08
      %v386 = vadd.f32 %v354, 1e-08
      %v387 = vadd.f32 %v355, 1e-08
      %v388 = vadd.f32 %v356, 1e-08
      %v389 = vadd.f32 %v357, 1e-08
      %v390 = vadd.f32 %v358, 1e-08
      %v391 = vadd.f32 %v359, 1e-08
      %v392 = vadd.f32 %v360, 1e-08
      %v393 = vadd.f32 %v361, 1e-08
      %v394 = vadd.f32 %v362, 1e-08
      %v395 = vadd.f32 %v363, 1e-08
      %v396 = vadd.f32 %v364, 1e-08
      %v397 = vadd.f32 %v365, 1e-08
      %v398 = vadd.f32 %v366, 1e-08
      %v399 = vadd.f32 %v367, 1e-08
      %v400 = vadd.f32 %v368, 1e-08
      %v401 = vadd.f32 %v369, 1e-08
      %v402 = vadd.f32 %v370, 1e-08
      %v403 = vrsqrt.pop %v371
      %v404 = vmul.f32 %v403, %v371
      %v405 = vmul.f32 %v404, %v403
      %v406 = vmul.f32 0.5, %v405
      %v407 = vsub.f32 1.5, %v406
      %v408 = vmul.f32 %v403, %v407
      %vm409 = vweird.f32 %v371
      %vm410 = vweird.f32 %v403
      %vm411 = vmor %vm409, %vm410
      %v412 = vsel %vm411, %v403, %v408
      %v413 = vrsqrt.pop %v372
      %v414 = vmul.f32 %v413, %v372
      %v415 = vmul.f32 %v414, %v413
      %v416 = vmul.f32 0.5, %v415
      %v417 = vsub.f32 1.5, %v416
      %v418 = vmul.f32 %v413, %v417
      %vm419 = vweird.f32 %v372
      %vm420 = vweird.f32 %v413
      %vm421 = vmor %vm419, %vm420
      %v422 = vsel %vm421, %v413, %v418
      %v423 = vrsqrt.pop %v373
      %v424 = vmul.f32 %v423, %v373
      %v425 = vmul.f32 %v424, %v423
      %v426 = vmul.f32 0.5, %v425
      %v427 = vsub.f32 1.5, %v426
      %v428 = vmul.f32 %v423, %v427
      %vm429 = vweird.f32 %v373
      %vm430 = vweird.f32 %v423
      %vm431 = vmor %vm429, %vm430
      %v432 = vsel %vm431, %v423, %v428
      %v433 = vrsqrt.pop %v374
      %v434 = vmul.f32 %v433, %v374
      %v435 = vmul.f32 %v434, %v433
      %v436 = vmul.f32 0.5, %v435
      %v437 = vsub.f32 1.5, %v436
      %v438 = vmul.f32 %v433, %v437
      %vm439 = vweird.f32 %v374
      %vm440 = vweird.f32 %v433
      %vm441 = vmor %vm439, %vm440
      %v442 = vsel %vm441, %v433, %v438
      %v443 = vrsqrt.pop %v375
      %v444 = vmul.f32 %v443, %v375
      %v445 = vmul.f32 %v444, %v443
      %v446 = vmul.f32 0.5, %v445
      %v447 = vsub.f32 1.5, %v446
      %v448 = vmul.f32 %v443, %v447
      %vm449 = vweird.f32 %v375
      %vm450 = vweird.f32 %v443
      %vm451 = vmor %vm449, %vm450
      %v452 = vsel %vm451, %v443, %v448
      %v453 = vrsqrt.pop %v376
      %v454 = vmul.f32 %v453, %v376
      %v455 = vmul.f32 %v454, %v453
      %v456 = vmul.f32 0.5, %v455
      %v457 = vsub.f32 1.5, %v456
      %v458 = vmul.f32 %v453, %v457
      %vm459 = vweird.f32 %v376
      %vm460 = vweird.f32 %v453
      %vm461 = vmor %vm459, %vm460
      %v462 = vsel %vm461, %v453, %v458
      %v463 = vrsqrt.pop %v377
      %v464 = vmul.f32 %v463, %v377
      %v465 = vmul.f32 %v464, %v463
      %v466 = vmul.f32 0.5, %v465
      %v467 = vsub.f32 1.5, %v466
      %v468 = vmul.f32 %v463, %v467
      %vm469 = vweird.f32 %v377
      %vm470 = vweird.f32 %v463
      %vm471 = vmor %vm469, %vm470
      %v472 = vsel %vm471, %v463, %v468
      %v473 = vrsqrt.pop %v378
      %v474 = vmul.f32 %v473, %v378
      %v475 = vmul.f32 %v474, %v473
      %v476 = vmul.f32 0.5, %v475
      %v477 = vsub.f32 1.5, %v476
      %v478 = vmul.f32 %v473, %v477
      %vm479 = vweird.f32 %v378
      %vm480 = vweird.f32 %v473
      %vm481 = vmor %vm479, %vm480
      %v482 = vsel %vm481, %v473, %v478
      %v483 = vrsqrt.pop %v379
      %v484 = vmul.f32 %v483, %v379
      %v485 = vmul.f32 %v484, %v483
      %v486 = vmul.f32 0.5, %v485
      %v487 = vsub.f32 1.5, %v486
      %v488 = vmul.f32 %v483, %v487
      %vm489 = vweird.f32 %v379
      %vm490 = vweird.f32 %v483
      %vm491 = vmor %vm489, %vm490
      %v492 = vsel %vm491, %v483, %v488
      %v493 = vrsqrt.pop %v380
      %v494 = vmul.f32 %v493, %v380
      %v495 = vmul.f32 %v494, %v493
      %v496 = vmul.f32 0.5, %v495
      %v497 = vsub.f32 1.5, %v496
      %v498 = vmul.f32 %v493, %v497
      %vm499 = vweird.f32 %v380
      %vm500 = vweird.f32 %v493
      %vm501 = vmor %vm499, %vm500
      %v502 = vsel %vm501, %v493, %v498
      %v503 = vrsqrt.pop %v381
      %v504 = vmul.f32 %v503, %v381
      %v505 = vmul.f32 %v504, %v503
      %v506 = vmul.f32 0.5, %v505
      %v507 = vsub.f32 1.5, %v506
      %v508 = vmul.f32 %v503, %v507
      %vm509 = vweird.f32 %v381
      %vm510 = vweird.f32 %v503
      %vm511 = vmor %vm509, %vm510
      %v512 = vsel %vm511, %v503, %v508
      %v513 = vrsqrt.pop %v382
      %v514 = vmul.f32 %v513, %v382
      %v515 = vmul.f32 %v514, %v513
      %v516 = vmul.f32 0.5, %v515
      %v517 = vsub.f32 1.5, %v516
      %v518 = vmul.f32 %v513, %v517
      %vm519 = vweird.f32 %v382
      %vm520 = vweird.f32 %v513
      %vm521 = vmor %vm519, %vm520
      %v522 = vsel %vm521, %v513, %v518
      %v523 = vrsqrt.pop %v383
      %v524 = vmul.f32 %v523, %v383
      %v525 = vmul.f32 %v524, %v523
      %v526 = vmul.f32 0.5, %v525
      %v527 = vsub.f32 1.5, %v526
      %v528 = vmul.f32 %v523, %v527
      %vm529 = vweird.f32 %v383
      %vm530 = vweird.f32 %v523
      %vm531 = vmor %vm529, %vm530
      %v532 = vsel %vm531, %v523, %v528
      %v533 = vrsqrt.pop %v384
      %v534 = vmul.f32 %v533, %v384
      %v535 = vmul.f32 %v534, %v533
      %v536 = vmul.f32 0.5, %v535
      %v537 = vsub.f32 1.5, %v536
      %v538 = vmul.f32 %v533, %v537
      %vm539 = vweird.f32 %v384
      %vm540 = vweird.f32 %v533
      %vm541 = vmor %vm539, %vm540
      %v542 = vsel %vm541, %v533, %v538
      %v543 = vrsqrt.pop %v385
      %v544 = vmul.f32 %v543, %v385
      %v545 = vmul.f32 %v544, %v543
      %v546 = vmul.f32 0.5, %v545
      %v547 = vsub.f32 1.5, %v546
      %v548 = vmul.f32 %v543, %v547
      %vm549 = vweird.f32 %v385
      %vm550 = vweird.f32 %v543
      %vm551 = vmor %vm549, %vm550
      %v552 = vsel %vm551, %v543, %v548
      %v553 = vrsqrt.pop %v386
      %v554 = vmul.f32 %v553, %v386
      %v555 = vmul.f32 %v554, %v553
      %v556 = vmul.f32 0.5, %v555
      %v557 = vsub.f32 1.5, %v556
      %v558 = vmul.f32 %v553, %v557
      %vm559 = vweird.f32 %v386
      %vm560 = vweird.f32 %v553
      %vm561 = vmor %vm559, %vm560
      %v562 = vsel %vm561, %v553, %v558
      %v563 = vrsqrt.pop %v387
      %v564 = vmul.f32 %v563, %v387
      %v565 = vmul.f32 %v564, %v563
      %v566 = vmul.f32 0.5, %v565
      %v567 = vsub.f32 1.5, %v566
      %v568 = vmul.f32 %v563, %v567
      %vm569 = vweird.f32 %v387
      %vm570 = vweird.f32 %v563
      %vm571 = vmor %vm569, %vm570
      %v572 = vsel %vm571, %v563, %v568
      %v573 = vrsqrt.pop %v388
      %v574 = vmul.f32 %v573, %v388
      %v575 = vmul.f32 %v574, %v573
      %v576 = vmul.f32 0.5, %v575
      %v577 = vsub.f32 1.5, %v576
      %v578 = vmul.f32 %v573, %v577
      %vm579 = vweird.f32 %v388
      %vm580 = vweird.f32 %v573
      %vm581 = vmor %vm579, %vm580
      %v582 = vsel %vm581, %v573, %v578
      %v583 = vrsqrt.pop %v389
      %v584 = vmul.f32 %v583, %v389
      %v585 = vmul.f32 %v584, %v583
      %v586 = vmul.f32 0.5, %v585
      %v587 = vsub.f32 1.5, %v586
      %v588 = vmul.f32 %v583, %v587
      %vm589 = vweird.f32 %v389
      %vm590 = vweird.f32 %v583
      %vm591 = vmor %vm589, %vm590
      %v592 = vsel %vm591, %v583, %v588
      %v593 = vrsqrt.pop %v390
      %v594 = vmul.f32 %v593, %v390
      %v595 = vmul.f32 %v594, %v593
      %v596 = vmul.f32 0.5, %v595
      %v597 = vsub.f32 1.5, %v596
      %v598 = vmul.f32 %v593, %v597
      %vm599 = vweird.f32 %v390
      %vm600 = vweird.f32 %v593
      %vm601 = vmor %vm599, %vm600
      %v602 = vsel %vm601, %v593, %v598
      %v603 = vrsqrt.pop %v391
      %v604 = vmul.f32 %v603, %v391
      %v605 = vmul.f32 %v604, %v603
      %v606 = vmul.f32 0.5, %v605
      %v607 = vsub.f32 1.5, %v606
      %v608 = vmul.f32 %v603, %v607
      %vm609 = vweird.f32 %v391
      %vm610 = vweird.f32 %v603
      %vm611 = vmor %vm609, %vm610
      %v612 = vsel %vm611, %v603, %v608
      %v613 = vrsqrt.pop %v392
      %v614 = vmul.f32 %v613, %v392
      %v615 = vmul.f32 %v614, %v613
      %v616 = vmul.f32 0.5, %v615
      %v617 = vsub.f32 1.5, %v616
      %v618 = vmul.f32 %v613, %v617
      %vm619 = vweird.f32 %v392
      %vm620 = vweird.f32 %v613
      %vm621 = vmor %vm619, %vm620
      %v622 = vsel %vm621, %v613, %v618
      %v623 = vrsqrt.pop %v393
      %v624 = vmul.f32 %v623, %v393
      %v625 = vmul.f32 %v624, %v623
      %v626 = vmul.f32 0.5, %v625
      %v627 = vsub.f32 1.5, %v626
      %v628 = vmul.f32 %v623, %v627
      %vm629 = vweird.f32 %v393
      %vm630 = vweird.f32 %v623
      %vm631 = vmor %vm629, %vm630
      %v632 = vsel %vm631, %v623, %v628
      %v633 = vrsqrt.pop %v394
      %v634 = vmul.f32 %v633, %v394
      %v635 = vmul.f32 %v634, %v633
      %v636 = vmul.f32 0.5, %v635
      %v637 = vsub.f32 1.5, %v636
      %v638 = vmul.f32 %v633, %v637
      %vm639 = vweird.f32 %v394
      %vm640 = vweird.f32 %v633
      %vm641 = vmor %vm639, %vm640
      %v642 = vsel %vm641, %v633, %v638
      %v643 = vrsqrt.pop %v395
      %v644 = vmul.f32 %v643, %v395
      %v645 = vmul.f32 %v644, %v643
      %v646 = vmul.f32 0.5, %v645
      %v647 = vsub.f32 1.5, %v646
      %v648 = vmul.f32 %v643, %v647
      %vm649 = vweird.f32 %v395
      %vm650 = vweird.f32 %v643
      %vm651 = vmor %vm649, %vm650
      %v652 = vsel %vm651, %v643, %v648
      %v653 = vrsqrt.pop %v396
      %v654 = vmul.f32 %v653, %v396
      %v655 = vmul.f32 %v654, %v653
      %v656 = vmul.f32 0.5, %v655
      %v657 = vsub.f32 1.5, %v656
      %v658 = vmul.f32 %v653, %v657
      %vm659 = vweird.f32 %v396
      %vm660 = vweird.f32 %v653
      %vm661 = vmor %vm659, %vm660
      %v662 = vsel %vm661, %v653, %v658
      %v663 = vrsqrt.pop %v397
      %v664 = vmul.f32 %v663, %v397
      %v665 = vmul.f32 %v664, %v663
      %v666 = vmul.f32 0.5, %v665
      %v667 = vsub.f32 1.5, %v666
      %v668 = vmul.f32 %v663, %v667
      %vm669 = vweird.f32 %v397
      %vm670 = vweird.f32 %v663
      %vm671 = vmor %vm669, %vm670
      %v672 = vsel %vm671, %v663, %v668
      %v673 = vrsqrt.pop %v398
      %v674 = vmul.f32 %v673, %v398
      %v675 = vmul.f32 %v674, %v673
      %v676 = vmul.f32 0.5, %v675
      %v677 = vsub.f32 1.5, %v676
      %v678 = vmul.f32 %v673, %v677
      %vm679 = vweird.f32 %v398
      %vm680 = vweird.f32 %v673
      %vm681 = vmor %vm679, %vm680
      %v682 = vsel %vm681, %v673, %v678
      %v683 = vrsqrt.pop %v399
      %v684 = vmul.f32 %v683, %v399
      %v685 = vmul.f32 %v684, %v683
      %v686 = vmul.f32 0.5, %v685
      %v687 = vsub.f32 1.5, %v686
      %v688 = vmul.f32 %v683, %v687
      %vm689 = vweird.f32 %v399
      %vm690 = vweird.f32 %v683
      %vm691 = vmor %vm689, %vm690
      %v692 = vsel %vm691, %v683, %v688
      %v693 = vrsqrt.pop %v400
      %v694 = vmul.f32 %v693, %v400
      %v695 = vmul.f32 %v694, %v693
      %v696 = vmul.f32 0.5, %v695
      %v697 = vsub.f32 1.5, %v696
      %v698 = vmul.f32 %v693, %v697
      %vm699 = vweird.f32 %v400
      %vm700 = vweird.f32 %v693
      %vm701 = vmor %vm699, %vm700
      %v702 = vsel %vm701, %v693, %v698
      %v703 = vrsqrt.pop %v401
      %v704 = vmul.f32 %v703, %v401
      %v705 = vmul.f32 %v704, %v703
      %v706 = vmul.f32 0.5, %v705
      %v707 = vsub.f32 1.5, %v706
      %v708 = vmul.f32 %v703, %v707
      %vm709 = vweird.f32 %v401
      %vm710 = vweird.f32 %v703
      %vm711 = vmor %vm709, %vm710
      %v712 = vsel %vm711, %v703, %v708
      %v713 = vrsqrt.pop %v402
      %v714 = vmul.f32 %v713, %v402
      %v715 = vmul.f32 %v714, %v713
      %v716 = vmul.f32 0.5, %v715
      %v717 = vsub.f32 1.5, %v716
      %v718 = vmul.f32 %v713, %v717
      %vm719 = vweird.f32 %v402
      %vm720 = vweird.f32 %v713
      %vm721 = vmor %vm719, %vm720
      %v722 = vsel %vm721, %v713, %v718
      %v723 = vmul.f32 %v171, %v412
      %v724 = vmul.f32 %v172, %v422
      %v725 = vmul.f32 %v173, %v432
      %v726 = vmul.f32 %v174, %v442
      %v727 = vmul.f32 %v175, %v452
      %v728 = vmul.f32 %v176, %v462
      %v729 = vmul.f32 %v177, %v472
      %v730 = vmul.f32 %v178, %v482
      %v731 = vmul.f32 %v179, %v492
      %v732 = vmul.f32 %v180, %v502
      %v733 = vmul.f32 %v181, %v512
      %v734 = vmul.f32 %v182, %v522
      %v735 = vmul.f32 %v183, %v532
      %v736 = vmul.f32 %v184, %v542
      %v737 = vmul.f32 %v185, %v552
      %v738 = vmul.f32 %v186, %v562
      %v739 = vmul.f32 %v187, %v572
      %v740 = vmul.f32 %v188, %v582
      %v741 = vmul.f32 %v189, %v592
      %v742 = vmul.f32 %v190, %v602
      %v743 = vmul.f32 %v191, %v612
      %v744 = vmul.f32 %v192, %v622
      %v745 = vmul.f32 %v193, %v632
      %v746 = vmul.f32 %v194, %v642
      %v747 = vmul.f32 %v195, %v652
      %v748 = vmul.f32 %v196, %v662
      %v749 = vmul.f32 %v197, %v672
      %v750 = vmul.f32 %v198, %v682
      %v751 = vmul.f32 %v199, %v692
      %v752 = vmul.f32 %v200, %v702
      %v753 = vmul.f32 %v201, %v712
      %v754 = vmul.f32 %v202, %v722
      %755 = vst.msk [vmem:[#allocation2] sm:$0xff] %vm235, 0.0
      %756 = vst.msk [vmem:[#allocation2 + $0x8] sm:$0xff] %vm235, 0.0
      %vm757 = vcmask 25600
      %758 = vst.msk [vmem:[#allocation2 + $0x10] sm:$0x3] %vm757, 0.0
      %s759 = scalar_lea.vmem [#allocation2], 408
      %760 = vst.msk [vmem:[%s759] sm:$0xff] %vm235, 0.0
      %761 = vst.msk [vmem:[%s759 + $0x8] sm:$0xff] %vm235, 0.0
      %762 = vst.msk [vmem:[%s759 + $0x10] sm:$0x3] %vm757, 0.0
      %s763 = scalar_lea.vmem [#allocation2], 24
      %vm764 = vcmask 24576
      %765 = vst.msk [vmem:[%s763] sm:$0x1] %vm764, 0.0
      %766 = vst.msk [vmem:[%s763 + $0x18] sm:$0x1] %vm764, 0.0
      %767 = vst.msk [vmem:[%s763 + $0x30] sm:$0x1] %vm764, 0.0
      %768 = vst.msk [vmem:[%s763 + $0x48] sm:$0x1] %vm764, 0.0
      %769 = vst.msk [vmem:[%s763 + $0x60] sm:$0x1] %vm764, 0.0
      %770 = vst.msk [vmem:[%s763 + $0x78] sm:$0x1] %vm764, 0.0
      %771 = vst.msk [vmem:[%s763 + $0x90] sm:$0x1] %vm764, 0.0
      %772 = vst.msk [vmem:[%s763 + $0xa8] sm:$0x1] %vm764, 0.0
      %773 = vst.msk [vmem:[%s763 + $0xc0] sm:$0x1] %vm764, 0.0
      %774 = vst.msk [vmem:[%s763 + $0xd8] sm:$0x1] %vm764, 0.0
      %775 = vst.msk [vmem:[%s763 + $0xf0] sm:$0x1] %vm764, 0.0
      %776 = vst.msk [vmem:[%s763 + $0x108] sm:$0x1] %vm764, 0.0
      %777 = vst.msk [vmem:[%s763 + $0x120] sm:$0x1] %vm764, 0.0
      %778 = vst.msk [vmem:[%s763 + $0x138] sm:$0x1] %vm764, 0.0
      %779 = vst.msk [vmem:[%s763 + $0x150] sm:$0x1] %vm764, 0.0
      %780 = vst.msk [vmem:[%s763 + $0x168] sm:$0x1] %vm764, 0.0
      %781 = vst.msk [vmem:[%s763 + $0x11] sm:$0x1] %vm764, 0.0
      %782 = vst.msk [vmem:[%s763 + $0x29] sm:$0x1] %vm764, 0.0
      %783 = vst.msk [vmem:[%s763 + $0x41] sm:$0x1] %vm764, 0.0
      %784 = vst.msk [vmem:[%s763 + $0x59] sm:$0x1] %vm764, 0.0
      %785 = vst.msk [vmem:[%s763 + $0x71] sm:$0x1] %vm764, 0.0
      %786 = vst.msk [vmem:[%s763 + $0x89] sm:$0x1] %vm764, 0.0
      %787 = vst.msk [vmem:[%s763 + $0xa1] sm:$0x1] %vm764, 0.0
      %788 = vst.msk [vmem:[%s763 + $0xb9] sm:$0x1] %vm764, 0.0
      %789 = vst.msk [vmem:[%s763 + $0xd1] sm:$0x1] %vm764, 0.0
      %790 = vst.msk [vmem:[%s763 + $0xe9] sm:$0x1] %vm764, 0.0
      %791 = vst.msk [vmem:[%s763 + $0x101] sm:$0x1] %vm764, 0.0
      %792 = vst.msk [vmem:[%s763 + $0x119] sm:$0x1] %vm764, 0.0
      %793 = vst.msk [vmem:[%s763 + $0x131] sm:$0x1] %vm764, 0.0
      %794 = vst.msk [vmem:[%s763 + $0x149] sm:$0x1] %vm764, 0.0
      %795 = vst.msk [vmem:[%s763 + $0x161] sm:$0x1] %vm764, 0.0
      %796 = vst.msk [vmem:[%s763 + $0x179] sm:$0x1] %vm764, 0.0
      %797 = vst.msk [vmem:[%s763 + $0x1] sm:$0xff] %vm235, %v723
      %798 = vst.msk [vmem:[%s763 + $0x9] sm:$0xff] %vm235, %v724
      %799 = vst.msk [vmem:[%s763 + $0x19] sm:$0xff] %vm235, %v725
      %800 = vst.msk [vmem:[%s763 + $0x21] sm:$0xff] %vm235, %v726
      %801 = vst.msk [vmem:[%s763 + $0x31] sm:$0xff] %vm235, %v727
      %802 = vst.msk [vmem:[%s763 + $0x39] sm:$0xff] %vm235, %v728
      %803 = vst.msk [vmem:[%s763 + $0x49] sm:$0xff] %vm235, %v729
      %804 = vst.msk [vmem:[%s763 + $0x51] sm:$0xff] %vm235, %v730
      %805 = vst.msk [vmem:[%s763 + $0x61] sm:$0xff] %vm235, %v731
      %806 = vst.msk [vmem:[%s763 + $0x69] sm:$0xff] %vm235, %v732
      %807 = vst.msk [vmem:[%s763 + $0x79] sm:$0xff] %vm235, %v733
      %808 = vst.msk [vmem:[%s763 + $0x81] sm:$0xff] %vm235, %v734
      %809 = vst.msk [vmem:[%s763 + $0x91] sm:$0xff] %vm235, %v735
      %810 = vst.msk [vmem:[%s763 + $0x99] sm:$0xff] %vm235, %v736
      %811 = vst.msk [vmem:[%s763 + $0xa9] sm:$0xff] %vm235, %v737
      %812 = vst.msk [vmem:[%s763 + $0xb1] sm:$0xff] %vm235, %v738
      %813 = vst.msk [vmem:[%s763 + $0xc1] sm:$0xff] %vm235, %v739
      %814 = vst.msk [vmem:[%s763 + $0xc9] sm:$0xff] %vm235, %v740
      %815 = vst.msk [vmem:[%s763 + $0xd9] sm:$0xff] %vm235, %v741
      %816 = vst.msk [vmem:[%s763 + $0xe1] sm:$0xff] %vm235, %v742
      %817 = vst.msk [vmem:[%s763 + $0xf1] sm:$0xff] %vm235, %v743
      %818 = vst.msk [vmem:[%s763 + $0xf9] sm:$0xff] %vm235, %v744
      %819 = vst.msk [vmem:[%s763 + $0x109] sm:$0xff] %vm235, %v745
      %820 = vst.msk [vmem:[%s763 + $0x111] sm:$0xff] %vm235, %v746
      %821 = vst.msk [vmem:[%s763 + $0x121] sm:$0xff] %vm235, %v747
      %822 = vst.msk [vmem:[%s763 + $0x129] sm:$0xff] %vm235, %v748
      %823 = vst.msk [vmem:[%s763 + $0x139] sm:$0xff] %vm235, %v749
      %824 = vst.msk [vmem:[%s763 + $0x141] sm:$0xff] %vm235, %v750
      %825 = vst.msk [vmem:[%s763 + $0x151] sm:$0xff] %vm235, %v751
      %826 = vst.msk [vmem:[%s763 + $0x159] sm:$0xff] %vm235, %v752
      %827 = vst.msk [vmem:[%s763 + $0x169] sm:$0xff] %vm235, %v753
      %828 = vst.msk [vmem:[%s763 + $0x171] sm:$0xff] %vm235, %v754
      %v829 = vld [vmem:[#allocation2] sm:$0xff]
      %v830 = vld [vmem:[#allocation2 + $0x8] sm:$0xff]
      %v831 = vld [vmem:[#allocation2 + $0x18] sm:$0xff]
      %v832 = vld [vmem:[#allocation2 + $0x20] sm:$0xff]
      %v833 = vld [vmem:[#allocation2 + $0x30] sm:$0xff]
      %v834 = vld [vmem:[#allocation2 + $0x38] sm:$0xff]
      %v835 = vld [vmem:[#allocation2 + $0x48] sm:$0xff]
      %v836 = vld [vmem:[#allocation2 + $0x50] sm:$0xff]
      %v837 = vld [vmem:[#allocation2 + $0x60] sm:$0xff]
      %v838 = vld [vmem:[#allocation2 + $0x68] sm:$0xff]
      %v839 = vld [vmem:[#allocation2 + $0x78] sm:$0xff]
      %v840 = vld [vmem:[#allocation2 + $0x80] sm:$0xff]
      %v841 = vld [vmem:[#allocation2 + $0x90] sm:$0xff]
      %v842 = vld [vmem:[#allocation2 + $0x98] sm:$0xff]
      %v843 = vld [vmem:[#allocation2 + $0xa8] sm:$0xff]
      %v844 = vld [vmem:[#allocation2 + $0xb0] sm:$0xff]
      %v845 = vld [vmem:[#allocation2 + $0xc0] sm:$0xff]
      %v846 = vld [vmem:[#allocation2 + $0xc8] sm:$0xff]
      %v847 = vld [vmem:[#allocation2 + $0xd8] sm:$0xff]
      %v848 = vld [vmem:[#allocation2 + $0xe0] sm:$0xff]
      %v849 = vld [vmem:[#allocation2 + $0xf0] sm:$0xff]
      %v850 = vld [vmem:[#allocation2 + $0xf8] sm:$0xff]
      %v851 = vld [vmem:[#allocation2 + $0x108] sm:$0xff]
      %v852 = vld [vmem:[#allocation2 + $0x110] sm:$0xff]
      %v853 = vld [vmem:[#allocation2 + $0x120] sm:$0xff]
      %v854 = vld [vmem:[#allocation2 + $0x128] sm:$0xff]
      %v855 = vld [vmem:[#allocation2 + $0x138] sm:$0xff]
      %v856 = vld [vmem:[#allocation2 + $0x140] sm:$0xff]
      %v857 = vld [vmem:[#allocation2 + $0x150] sm:$0xff]
      %v858 = vld [vmem:[#allocation2 + $0x158] sm:$0xff]
      %v859 = vld [vmem:[#allocation2 + $0x168] sm:$0xff]
      %v860 = vld [vmem:[#allocation2 + $0x170] sm:$0xff]
      %v861 = vld [vmem:[%s1] sm:$0xf]
      %v862 = vld [vmem:[#allocation2 + $0x1] sm:$0xff]
      %v863 = vld [vmem:[#allocation2 + $0x9] sm:$0xff]
      %v864 = vld [vmem:[#allocation2 + $0x19] sm:$0xff]
      %v865 = vld [vmem:[#allocation2 + $0x21] sm:$0xff]
      %v866 = vld [vmem:[#allocation2 + $0x31] sm:$0xff]
      %v867 = vld [vmem:[#allocation2 + $0x39] sm:$0xff]
      %v868 = vld [vmem:[#allocation2 + $0x49] sm:$0xff]
      %v869 = vld [vmem:[#allocation2 + $0x51] sm:$0xff]
      %v870 = vld [vmem:[#allocation2 + $0x61] sm:$0xff]
      %v871 = vld [vmem:[#allocation2 + $0x69] sm:$0xff]
      %v872 = vld [vmem:[#allocation2 + $0x79] sm:$0xff]
      %v873 = vld [vmem:[#allocation2 + $0x81] sm:$0xff]
      %v874 = vld [vmem:[#allocation2 + $0x91] sm:$0xff]
      %v875 = vld [vmem:[#allocation2 + $0x99] sm:$0xff]
      %v876 = vld [vmem:[#allocation2 + $0xa9] sm:$0xff]
      %v877 = vld [vmem:[#allocation2 + $0xb1] sm:$0xff]
      %v878 = vld [vmem:[#allocation2 + $0xc1] sm:$0xff]
      %v879 = vld [vmem:[#allocation2 + $0xc9] sm:$0xff]
      %v880 = vld [vmem:[#allocation2 + $0xd9] sm:$0xff]
      %v881 = vld [vmem:[#allocation2 + $0xe1] sm:$0xff]
      %v882 = vld [vmem:[#allocation2 + $0xf1] sm:$0xff]
      %v883 = vld [vmem:[#allocation2 + $0xf9] sm:$0xff]
      %v884 = vld [vmem:[#allocation2 + $0x109] sm:$0xff]
      %v885 = vld [vmem:[#allocation2 + $0x111] sm:$0xff]
      %v886 = vld [vmem:[#allocation2 + $0x121] sm:$0xff]
      %v887 = vld [vmem:[#allocation2 + $0x129] sm:$0xff]
      %v888 = vld [vmem:[#allocation2 + $0x139] sm:$0xff]
      %v889 = vld [vmem:[#allocation2 + $0x141] sm:$0xff]
      %v890 = vld [vmem:[#allocation2 + $0x151] sm:$0xff]
      %v891 = vld [vmem:[#allocation2 + $0x159] sm:$0xff]
      %v892 = vld [vmem:[#allocation2 + $0x169] sm:$0xff]
      %v893 = vld [vmem:[#allocation2 + $0x171] sm:$0xff]
      %s894 = scalar_lea.vmem %s1, 4
      %v895 = vld [vmem:[%s894] sm:$0xf]
      %v897 = vsel %vm235, %v862, 0
      %v900 = vsel %vm235, %v863, 0
      %v903 = vsel %vm235, %v864, 0
      %v906 = vsel %vm235, %v865, 0
      %v909 = vsel %vm235, %v866, 0
      %v912 = vsel %vm235, %v867, 0
      %v915 = vsel %vm235, %v868, 0
      %v918 = vsel %vm235, %v869, 0
      %v921 = vsel %vm235, %v870, 0
      %v924 = vsel %vm235, %v871, 0
      %v927 = vsel %vm235, %v872, 0
      %v930 = vsel %vm235, %v873, 0
      %v933 = vsel %vm235, %v874, 0
      %v936 = vsel %vm235, %v875, 0
      %v939 = vsel %vm235, %v876, 0
      %v942 = vsel %vm235, %v877, 0
      %v945 = vsel %vm235, %v878, 0
      %v948 = vsel %vm235, %v879, 0
      %v951 = vsel %vm235, %v880, 0
      %v954 = vsel %vm235, %v881, 0
      %v957 = vsel %vm235, %v882, 0
      %v960 = vsel %vm235, %v883, 0
      %v963 = vsel %vm235, %v884, 0
      %v966 = vsel %vm235, %v885, 0
      %v969 = vsel %vm235, %v886, 0
      %v972 = vsel %vm235, %v887, 0
      %v975 = vsel %vm235, %v888, 0
      %v978 = vsel %vm235, %v889, 0
      %v981 = vsel %vm235, %v890, 0
      %v984 = vsel %vm235, %v891, 0
      %v987 = vsel %vm235, %v892, 0
      %v990 = vsel %vm235, %v893, 0
      %vm992 = vcmask 1043456
      %v994 = vsel %vm992, %v895, 0
      %996 = vmatpush.msra.mxu0 0.0
      %997 = vmatpush.msra.mxu0 0.0
      %998 = vmatpush.msra.mxu0 0.0
      %999 = vmatpush.msra.mxu0 0.0
      %1000 = vmatpush.msra.mxu0 0.0
      %1001 = vmatpush.msra.mxu0 0.0
      %1002 = vmatpush.msra.mxu0 0.0
      %1003 = vmatpush.msra.mxu0 0.0
      %1004 = vmatpush.msra.mxu0 0.0
      %1005 = vmatpush.msra.mxu0 0.0
      %1006 = vmatpush.msra.mxu0 0.0
      %1007 = vmatpush.msra.mxu0 0.0
      %1008 = vmatpush.msra.mxu0 0.0
      %1009 = vmatpush.msra.mxu0 0.0
      %1010 = vmatpush.msra.mxu0 0.0
      %1011 = vmatpush.msra.mxu0 %v994
      %1012 = vmatmul.f32.gmra.mxu0 %v897
      %v1013 = vpop.f32.mrf.mxu0
      %v1014 = vadd.f32 0.0, %v1013
      %1015 = vmatmul.f32.gmra.mxu0 %v900
      %v1016 = vpop.f32.mrf.mxu0
      %v1017 = vadd.f32 0.0, %v1016
      %1018 = vmatmul.f32.gmra.mxu0 %v903
      %v1019 = vpop.f32.mrf.mxu0
      %v1020 = vadd.f32 0.0, %v1019
      %1021 = vmatmul.f32.gmra.mxu0 %v906
      %v1022 = vpop.f32.mrf.mxu0
      %v1023 = vadd.f32 0.0, %v1022
      %1024 = vmatmul.f32.gmra.mxu0 %v909
      %v1025 = vpop.f32.mrf.mxu0
      %v1026 = vadd.f32 0.0, %v1025
      %1027 = vmatmul.f32.gmra.mxu0 %v912
      %v1028 = vpop.f32.mrf.mxu0
      %v1029 = vadd.f32 0.0, %v1028
      %1030 = vmatmul.f32.gmra.mxu0 %v915
      %v1031 = vpop.f32.mrf.mxu0
      %v1032 = vadd.f32 0.0, %v1031
      %1033 = vmatmul.f32.gmra.mxu0 %v918
      %v1034 = vpop.f32.mrf.mxu0
      %v1035 = vadd.f32 0.0, %v1034
      %1036 = vmatmul.f32.gmra.mxu0 %v921
      %v1037 = vpop.f32.mrf.mxu0
      %v1038 = vadd.f32 0.0, %v1037
      %1039 = vmatmul.f32.gmra.mxu0 %v924
      %v1040 = vpop.f32.mrf.mxu0
      %v1041 = vadd.f32 0.0, %v1040
      %1042 = vmatmul.f32.gmra.mxu0 %v927
      %v1043 = vpop.f32.mrf.mxu0
      %v1044 = vadd.f32 0.0, %v1043
      %1045 = vmatmul.f32.gmra.mxu0 %v930
      %v1046 = vpop.f32.mrf.mxu0
      %v1047 = vadd.f32 0.0, %v1046
      %1048 = vmatmul.f32.gmra.mxu0 %v933
      %v1049 = vpop.f32.mrf.mxu0
      %v1050 = vadd.f32 0.0, %v1049
      %1051 = vmatmul.f32.gmra.mxu0 %v936
      %v1052 = vpop.f32.mrf.mxu0
      %v1053 = vadd.f32 0.0, %v1052
      %1054 = vmatmul.f32.gmra.mxu0 %v939
      %v1055 = vpop.f32.mrf.mxu0
      %v1056 = vadd.f32 0.0, %v1055
      %1057 = vmatmul.f32.gmra.mxu0 %v942
      %v1058 = vpop.f32.mrf.mxu0
      %v1059 = vadd.f32 0.0, %v1058
      %1060 = vmatmul.f32.gmra.mxu0 %v945
      %v1061 = vpop.f32.mrf.mxu0
      %v1062 = vadd.f32 0.0, %v1061
      %1063 = vmatmul.f32.gmra.mxu0 %v948
      %v1064 = vpop.f32.mrf.mxu0
      %v1065 = vadd.f32 0.0, %v1064
      %1066 = vmatmul.f32.gmra.mxu0 %v951
      %v1067 = vpop.f32.mrf.mxu0
      %v1068 = vadd.f32 0.0, %v1067
      %1069 = vmatmul.f32.gmra.mxu0 %v954
      %v1070 = vpop.f32.mrf.mxu0
      %v1071 = vadd.f32 0.0, %v1070
      %1072 = vmatmul.f32.gmra.mxu0 %v957
      %v1073 = vpop.f32.mrf.mxu0
      %v1074 = vadd.f32 0.0, %v1073
      %1075 = vmatmul.f32.gmra.mxu0 %v960
      %v1076 = vpop.f32.mrf.mxu0
      %v1077 = vadd.f32 0.0, %v1076
      %1078 = vmatmul.f32.gmra.mxu0 %v963
      %v1079 = vpop.f32.mrf.mxu0
      %v1080 = vadd.f32 0.0, %v1079
      %1081 = vmatmul.f32.gmra.mxu0 %v966
      %v1082 = vpop.f32.mrf.mxu0
      %v1083 = vadd.f32 0.0, %v1082
      %1084 = vmatmul.f32.gmra.mxu0 %v969
      %v1085 = vpop.f32.mrf.mxu0
      %v1086 = vadd.f32 0.0, %v1085
      %1087 = vmatmul.f32.gmra.mxu0 %v972
      %v1088 = vpop.f32.mrf.mxu0
      %v1089 = vadd.f32 0.0, %v1088
      %1090 = vmatmul.f32.gmra.mxu0 %v975
      %v1091 = vpop.f32.mrf.mxu0
      %v1092 = vadd.f32 0.0, %v1091
      %1093 = vmatmul.f32.gmra.mxu0 %v978
      %v1094 = vpop.f32.mrf.mxu0
      %v1095 = vadd.f32 0.0, %v1094
      %1096 = vmatmul.f32.gmra.mxu0 %v981
      %v1097 = vpop.f32.mrf.mxu0
      %v1098 = vadd.f32 0.0, %v1097
      %1099 = vmatmul.f32.gmra.mxu0 %v984
      %v1100 = vpop.f32.mrf.mxu0
      %v1101 = vadd.f32 0.0, %v1100
      %1102 = vmatmul.f32.gmra.mxu0 %v987
      %v1103 = vpop.f32.mrf.mxu0
      %v1104 = vadd.f32 0.0, %v1103
      %1105 = vmatmul.f32.gmra.mxu0 %v990
      %v1106 = vpop.f32.mrf.mxu0
      %v1107 = vadd.f32 0.0, %v1106
      %1108 = vdwg.mxu0
      %v1110 = vsel %vm235, %v829, 0
      %v1113 = vsel %vm235, %v830, 0
      %v1116 = vsel %vm235, %v831, 0
      %v1119 = vsel %vm235, %v832, 0
      %v1122 = vsel %vm235, %v833, 0
      %v1125 = vsel %vm235, %v834, 0
      %v1128 = vsel %vm235, %v835, 0
      %v1131 = vsel %vm235, %v836, 0
      %v1134 = vsel %vm235, %v837, 0
      %v1137 = vsel %vm235, %v838, 0
      %v1140 = vsel %vm235, %v839, 0
      %v1143 = vsel %vm235, %v840, 0
      %v1146 = vsel %vm235, %v841, 0
      %v1149 = vsel %vm235, %v842, 0
      %v1152 = vsel %vm235, %v843, 0
      %v1155 = vsel %vm235, %v844, 0
      %v1158 = vsel %vm235, %v845, 0
      %v1161 = vsel %vm235, %v846, 0
      %v1164 = vsel %vm235, %v847, 0
      %v1167 = vsel %vm235, %v848, 0
      %v1170 = vsel %vm235, %v849, 0
      %v1173 = vsel %vm235, %v850, 0
      %v1176 = vsel %vm235, %v851, 0
      %v1179 = vsel %vm235, %v852, 0
      %v1182 = vsel %vm235, %v853, 0
      %v1185 = vsel %vm235, %v854, 0
      %v1188 = vsel %vm235, %v855, 0
      %v1191 = vsel %vm235, %v856, 0
      %v1194 = vsel %vm235, %v857, 0
      %v1197 = vsel %vm235, %v858, 0
      %v1200 = vsel %vm235, %v859, 0
      %v1203 = vsel %vm235, %v860, 0
      %v1206 = vsel %vm992, %v861, 0
      %1208 = vmatpush.msra.mxu0 0.0
      %1209 = vmatpush.msra.mxu0 0.0
      %1210 = vmatpush.msra.mxu0 0.0
      %1211 = vmatpush.msra.mxu0 0.0
      %1212 = vmatpush.msra.mxu0 0.0
      %1213 = vmatpush.msra.mxu0 0.0
      %1214 = vmatpush.msra.mxu0 0.0
      %1215 = vmatpush.msra.mxu0 0.0
      %1216 = vmatpush.msra.mxu0 0.0
      %1217 = vmatpush.msra.mxu0 0.0
      %1218 = vmatpush.msra.mxu0 0.0
      %1219 = vmatpush.msra.mxu0 0.0
      %1220 = vmatpush.msra.mxu0 0.0
      %1221 = vmatpush.msra.mxu0 0.0
      %1222 = vmatpush.msra.mxu0 0.0
      %1223 = vmatpush.msra.mxu0 %v1206
      %1224 = vmatmul.f32.gmra.mxu0 %v1110
      %v1225 = vpop.f32.mrf.mxu0
      %v1226 = vadd.f32 %v1014, %v1225
      %1227 = vmatmul.f32.gmra.mxu0 %v1113
      %v1228 = vpop.f32.mrf.mxu0
      %v1229 = vadd.f32 %v1017, %v1228
      %1230 = vmatmul.f32.gmra.mxu0 %v1116
      %v1231 = vpop.f32.mrf.mxu0
      %v1232 = vadd.f32 %v1020, %v1231
      %1233 = vmatmul.f32.gmra.mxu0 %v1119
      %v1234 = vpop.f32.mrf.mxu0
      %v1235 = vadd.f32 %v1023, %v1234
      %1236 = vmatmul.f32.gmra.mxu0 %v1122
      %v1237 = vpop.f32.mrf.mxu0
      %v1238 = vadd.f32 %v1026, %v1237
      %1239 = vmatmul.f32.gmra.mxu0 %v1125
      %v1240 = vpop.f32.mrf.mxu0
      %v1241 = vadd.f32 %v1029, %v1240
      %1242 = vmatmul.f32.gmra.mxu0 %v1128
      %v1243 = vpop.f32.mrf.mxu0
      %v1244 = vadd.f32 %v1032, %v1243
      %1245 = vmatmul.f32.gmra.mxu0 %v1131
      %v1246 = vpop.f32.mrf.mxu0
      %v1247 = vadd.f32 %v1035, %v1246
      %1248 = vmatmul.f32.gmra.mxu0 %v1134
      %v1249 = vpop.f32.mrf.mxu0
      %v1250 = vadd.f32 %v1038, %v1249
      %1251 = vmatmul.f32.gmra.mxu0 %v1137
      %v1252 = vpop.f32.mrf.mxu0
      %v1253 = vadd.f32 %v1041, %v1252
      %1254 = vmatmul.f32.gmra.mxu0 %v1140
      %v1255 = vpop.f32.mrf.mxu0
      %v1256 = vadd.f32 %v1044, %v1255
      %1257 = vmatmul.f32.gmra.mxu0 %v1143
      %v1258 = vpop.f32.mrf.mxu0
      %v1259 = vadd.f32 %v1047, %v1258
      %1260 = vmatmul.f32.gmra.mxu0 %v1146
      %v1261 = vpop.f32.mrf.mxu0
      %v1262 = vadd.f32 %v1050, %v1261
      %1263 = vmatmul.f32.gmra.mxu0 %v1149
      %v1264 = vpop.f32.mrf.mxu0
      %v1265 = vadd.f32 %v1053, %v1264
      %1266 = vmatmul.f32.gmra.mxu0 %v1152
      %v1267 = vpop.f32.mrf.mxu0
      %v1268 = vadd.f32 %v1056, %v1267
      %1269 = vmatmul.f32.gmra.mxu0 %v1155
      %v1270 = vpop.f32.mrf.mxu0
      %v1271 = vadd.f32 %v1059, %v1270
      %1272 = vmatmul.f32.gmra.mxu0 %v1158
      %v1273 = vpop.f32.mrf.mxu0
      %v1274 = vadd.f32 %v1062, %v1273
      %1275 = vmatmul.f32.gmra.mxu0 %v1161
      %v1276 = vpop.f32.mrf.mxu0
      %v1277 = vadd.f32 %v1065, %v1276
      %1278 = vmatmul.f32.gmra.mxu0 %v1164
      %v1279 = vpop.f32.mrf.mxu0
      %v1280 = vadd.f32 %v1068, %v1279
      %1281 = vmatmul.f32.gmra.mxu0 %v1167
      %v1282 = vpop.f32.mrf.mxu0
      %v1283 = vadd.f32 %v1071, %v1282
      %1284 = vmatmul.f32.gmra.mxu0 %v1170
      %v1285 = vpop.f32.mrf.mxu0
      %v1286 = vadd.f32 %v1074, %v1285
      %1287 = vmatmul.f32.gmra.mxu0 %v1173
      %v1288 = vpop.f32.mrf.mxu0
      %v1289 = vadd.f32 %v1077, %v1288
      %1290 = vmatmul.f32.gmra.mxu0 %v1176
      %v1291 = vpop.f32.mrf.mxu0
      %v1292 = vadd.f32 %v1080, %v1291
      %1293 = vmatmul.f32.gmra.mxu0 %v1179
      %v1294 = vpop.f32.mrf.mxu0
      %v1295 = vadd.f32 %v1083, %v1294
      %1296 = vmatmul.f32.gmra.mxu0 %v1182
      %v1297 = vpop.f32.mrf.mxu0
      %v1298 = vadd.f32 %v1086, %v1297
      %1299 = vmatmul.f32.gmra.mxu0 %v1185
      %v1300 = vpop.f32.mrf.mxu0
      %v1301 = vadd.f32 %v1089, %v1300
      %1302 = vmatmul.f32.gmra.mxu0 %v1188
      %v1303 = vpop.f32.mrf.mxu0
      %v1304 = vadd.f32 %v1092, %v1303
      %1305 = vmatmul.f32.gmra.mxu0 %v1191
      %v1306 = vpop.f32.mrf.mxu0
      %v1307 = vadd.f32 %v1095, %v1306
      %1308 = vmatmul.f32.gmra.mxu0 %v1194
      %v1309 = vpop.f32.mrf.mxu0
      %v1310 = vadd.f32 %v1098, %v1309
      %1311 = vmatmul.f32.gmra.mxu0 %v1197
      %v1312 = vpop.f32.mrf.mxu0
      %v1313 = vadd.f32 %v1101, %v1312
      %1314 = vmatmul.f32.gmra.mxu0 %v1200
      %v1315 = vpop.f32.mrf.mxu0
      %v1316 = vadd.f32 %v1104, %v1315
      %1317 = vmatmul.f32.gmra.mxu0 %v1203
      %v1318 = vpop.f32.mrf.mxu0
      %v1319 = vadd.f32 %v1107, %v1318
      %1320 = vdwg.mxu0
      %v1321 = vld [vmem:[#allocation2 + $0x2] sm:$0xff]
      %v1322 = vld [vmem:[#allocation2 + $0xa] sm:$0xff]
      %v1323 = vld [vmem:[#allocation2 + $0x1a] sm:$0xff]
      %v1324 = vld [vmem:[#allocation2 + $0x22] sm:$0xff]
      %v1325 = vld [vmem:[#allocation2 + $0x32] sm:$0xff]
      %v1326 = vld [vmem:[#allocation2 + $0x3a] sm:$0xff]
      %v1327 = vld [vmem:[#allocation2 + $0x4a] sm:$0xff]
      %v1328 = vld [vmem:[#allocation2 + $0x52] sm:$0xff]
      %v1329 = vld [vmem:[#allocation2 + $0x62] sm:$0xff]
      %v1330 = vld [vmem:[#allocation2 + $0x6a] sm:$0xff]
      %v1331 = vld [vmem:[#allocation2 + $0x7a] sm:$0xff]
      %v1332 = vld [vmem:[#allocation2 + $0x82] sm:$0xff]
      %v1333 = vld [vmem:[#allocation2 + $0x92] sm:$0xff]
      %v1334 = vld [vmem:[#allocation2 + $0x9a] sm:$0xff]
      %v1335 = vld [vmem:[#allocation2 + $0xaa] sm:$0xff]
      %v1336 = vld [vmem:[#allocation2 + $0xb2] sm:$0xff]
      %v1337 = vld [vmem:[#allocation2 + $0xc2] sm:$0xff]
      %v1338 = vld [vmem:[#allocation2 + $0xca] sm:$0xff]
      %v1339 = vld [vmem:[#allocation2 + $0xda] sm:$0xff]
      %v1340 = vld [vmem:[#allocation2 + $0xe2] sm:$0xff]
      %v1341 = vld [vmem:[#allocation2 + $0xf2] sm:$0xff]
      %v1342 = vld [vmem:[#allocation2 + $0xfa] sm:$0xff]
      %v1343 = vld [vmem:[#allocation2 + $0x10a] sm:$0xff]
      %v1344 = vld [vmem:[#allocation2 + $0x112] sm:$0xff]
      %v1345 = vld [vmem:[#allocation2 + $0x122] sm:$0xff]
      %v1346 = vld [vmem:[#allocation2 + $0x12a] sm:$0xff]
      %v1347 = vld [vmem:[#allocation2 + $0x13a] sm:$0xff]
      %v1348 = vld [vmem:[#allocation2 + $0x142] sm:$0xff]
      %v1349 = vld [vmem:[#allocation2 + $0x152] sm:$0xff]
      %v1350 = vld [vmem:[#allocation2 + $0x15a] sm:$0xff]
      %v1351 = vld [vmem:[#allocation2 + $0x16a] sm:$0xff]
      %v1352 = vld [vmem:[#allocation2 + $0x172] sm:$0xff]
      %s1353 = scalar_lea.vmem %s1, 8
      %v1354 = vld [vmem:[%s1353] sm:$0xf]
      %v1356 = vsel %vm235, %v1321, 0
      %v1359 = vsel %vm235, %v1322, 0
      %v1362 = vsel %vm235, %v1323, 0
      %v1365 = vsel %vm235, %v1324, 0
      %v1368 = vsel %vm235, %v1325, 0
      %v1371 = vsel %vm235, %v1326, 0
      %v1374 = vsel %vm235, %v1327, 0
      %v1377 = vsel %vm235, %v1328, 0
      %v1380 = vsel %vm235, %v1329, 0
      %v1383 = vsel %vm235, %v1330, 0
      %v1386 = vsel %vm235, %v1331, 0
      %v1389 = vsel %vm235, %v1332, 0
      %v1392 = vsel %vm235, %v1333, 0
      %v1395 = vsel %vm235, %v1334, 0
      %v1398 = vsel %vm235, %v1335, 0
      %v1401 = vsel %vm235, %v1336, 0
      %v1404 = vsel %vm235, %v1337, 0
      %v1407 = vsel %vm235, %v1338, 0
      %v1410 = vsel %vm235, %v1339, 0
      %v1413 = vsel %vm235, %v1340, 0
      %v1416 = vsel %vm235, %v1341, 0
      %v1419 = vsel %vm235, %v1342, 0
      %v1422 = vsel %vm235, %v1343, 0
      %v1425 = vsel %vm235, %v1344, 0
      %v1428 = vsel %vm235, %v1345, 0
      %v1431 = vsel %vm235, %v1346, 0
      %v1434 = vsel %vm235, %v1347, 0
      %v1437 = vsel %vm235, %v1348, 0
      %v1440 = vsel %vm235, %v1349, 0
      %v1443 = vsel %vm235, %v1350, 0
      %v1446 = vsel %vm235, %v1351, 0
      %v1449 = vsel %vm235, %v1352, 0
      %v1452 = vsel %vm992, %v1354, 0
      %1454 = vmatpush.msra.mxu0 0.0
      %1455 = vmatpush.msra.mxu0 0.0
      %1456 = vmatpush.msra.mxu0 0.0
      %1457 = vmatpush.msra.mxu0 0.0
      %1458 = vmatpush.msra.mxu0 0.0
      %1459 = vmatpush.msra.mxu0 0.0
      %1460 = vmatpush.msra.mxu0 0.0
      %1461 = vmatpush.msra.mxu0 0.0
      %1462 = vmatpush.msra.mxu0 0.0
      %1463 = vmatpush.msra.mxu0 0.0
      %1464 = vmatpush.msra.mxu0 0.0
      %1465 = vmatpush.msra.mxu0 0.0
      %1466 = vmatpush.msra.mxu0 0.0
      %1467 = vmatpush.msra.mxu0 0.0
      %1468 = vmatpush.msra.mxu0 0.0
      %1469 = vmatpush.msra.mxu0 %v1452
      %1470 = vmatmul.f32.gmra.mxu0 %v1356
      %v1471 = vpop.f32.mrf.mxu0
      %v1472 = vadd.f32 0.0, %v1471
      %1473 = vmatmul.f32.gmra.mxu0 %v1359
      %v1474 = vpop.f32.mrf.mxu0
      %v1475 = vadd.f32 0.0, %v1474
      %1476 = vmatmul.f32.gmra.mxu0 %v1362
      %v1477 = vpop.f32.mrf.mxu0
      %v1478 = vadd.f32 0.0, %v1477
      %1479 = vmatmul.f32.gmra.mxu0 %v1365
      %v1480 = vpop.f32.mrf.mxu0
      %v1481 = vadd.f32 0.0, %v1480
      %1482 = vmatmul.f32.gmra.mxu0 %v1368
      %v1483 = vpop.f32.mrf.mxu0
      %v1484 = vadd.f32 0.0, %v1483
      %1485 = vmatmul.f32.gmra.mxu0 %v1371
      %v1486 = vpop.f32.mrf.mxu0
      %v1487 = vadd.f32 0.0, %v1486
      %1488 = vmatmul.f32.gmra.mxu0 %v1374
      %v1489 = vpop.f32.mrf.mxu0
      %v1490 = vadd.f32 0.0, %v1489
      %1491 = vmatmul.f32.gmra.mxu0 %v1377
      %v1492 = vpop.f32.mrf.mxu0
      %v1493 = vadd.f32 0.0, %v1492
      %1494 = vmatmul.f32.gmra.mxu0 %v1380
      %v1495 = vpop.f32.mrf.mxu0
      %v1496 = vadd.f32 0.0, %v1495
      %1497 = vmatmul.f32.gmra.mxu0 %v1383
      %v1498 = vpop.f32.mrf.mxu0
      %v1499 = vadd.f32 0.0, %v1498
      %1500 = vmatmul.f32.gmra.mxu0 %v1386
      %v1501 = vpop.f32.mrf.mxu0
      %v1502 = vadd.f32 0.0, %v1501
      %1503 = vmatmul.f32.gmra.mxu0 %v1389
      %v1504 = vpop.f32.mrf.mxu0
      %v1505 = vadd.f32 0.0, %v1504
      %1506 = vmatmul.f32.gmra.mxu0 %v1392
      %v1507 = vpop.f32.mrf.mxu0
      %v1508 = vadd.f32 0.0, %v1507
      %1509 = vmatmul.f32.gmra.mxu0 %v1395
      %v1510 = vpop.f32.mrf.mxu0
      %v1511 = vadd.f32 0.0, %v1510
      %1512 = vmatmul.f32.gmra.mxu0 %v1398
      %v1513 = vpop.f32.mrf.mxu0
      %v1514 = vadd.f32 0.0, %v1513
      %1515 = vmatmul.f32.gmra.mxu0 %v1401
      %v1516 = vpop.f32.mrf.mxu0
      %v1517 = vadd.f32 0.0, %v1516
      %1518 = vmatmul.f32.gmra.mxu0 %v1404
      %v1519 = vpop.f32.mrf.mxu0
      %v1520 = vadd.f32 0.0, %v1519
      %1521 = vmatmul.f32.gmra.mxu0 %v1407
      %v1522 = vpop.f32.mrf.mxu0
      %v1523 = vadd.f32 0.0, %v1522
      %1524 = vmatmul.f32.gmra.mxu0 %v1410
      %v1525 = vpop.f32.mrf.mxu0
      %v1526 = vadd.f32 0.0, %v1525
      %1527 = vmatmul.f32.gmra.mxu0 %v1413
      %v1528 = vpop.f32.mrf.mxu0
      %v1529 = vadd.f32 0.0, %v1528
      %1530 = vmatmul.f32.gmra.mxu0 %v1416
      %v1531 = vpop.f32.mrf.mxu0
      %v1532 = vadd.f32 0.0, %v1531
      %1533 = vmatmul.f32.gmra.mxu0 %v1419
      %v1534 = vpop.f32.mrf.mxu0
      %v1535 = vadd.f32 0.0, %v1534
      %1536 = vmatmul.f32.gmra.mxu0 %v1422
      %v1537 = vpop.f32.mrf.mxu0
      %v1538 = vadd.f32 0.0, %v1537
      %1539 = vmatmul.f32.gmra.mxu0 %v1425
      %v1540 = vpop.f32.mrf.mxu0
      %v1541 = vadd.f32 0.0, %v1540
      %1542 = vmatmul.f32.gmra.mxu0 %v1428
      %v1543 = vpop.f32.mrf.mxu0
      %v1544 = vadd.f32 0.0, %v1543
      %1545 = vmatmul.f32.gmra.mxu0 %v1431
      %v1546 = vpop.f32.mrf.mxu0
      %v1547 = vadd.f32 0.0, %v1546
      %1548 = vmatmul.f32.gmra.mxu0 %v1434
      %v1549 = vpop.f32.mrf.mxu0
      %v1550 = vadd.f32 0.0, %v1549
      %1551 = vmatmul.f32.gmra.mxu0 %v1437
      %v1552 = vpop.f32.mrf.mxu0
      %v1553 = vadd.f32 0.0, %v1552
      %1554 = vmatmul.f32.gmra.mxu0 %v1440
      %v1555 = vpop.f32.mrf.mxu0
      %v1556 = vadd.f32 0.0, %v1555
      %1557 = vmatmul.f32.gmra.mxu0 %v1443
      %v1558 = vpop.f32.mrf.mxu0
      %v1559 = vadd.f32 0.0, %v1558
      %1560 = vmatmul.f32.gmra.mxu0 %v1446
      %v1561 = vpop.f32.mrf.mxu0
      %v1562 = vadd.f32 0.0, %v1561
      %1563 = vmatmul.f32.gmra.mxu0 %v1449
      %v1564 = vpop.f32.mrf.mxu0
      %v1565 = vadd.f32 0.0, %v1564
      %1566 = vdwg.mxu0
      %v1567 = vadd.f32 %v1226, %v1472
      %v1568 = vadd.f32 %v1229, %v1475
      %v1569 = vadd.f32 %v1232, %v1478
      %v1570 = vadd.f32 %v1235, %v1481
      %v1571 = vadd.f32 %v1238, %v1484
      %v1572 = vadd.f32 %v1241, %v1487
      %v1573 = vadd.f32 %v1244, %v1490
      %v1574 = vadd.f32 %v1247, %v1493
      %v1575 = vadd.f32 %v1250, %v1496
      %v1576 = vadd.f32 %v1253, %v1499
      %v1577 = vadd.f32 %v1256, %v1502
      %v1578 = vadd.f32 %v1259, %v1505
      %v1579 = vadd.f32 %v1262, %v1508
      %v1580 = vadd.f32 %v1265, %v1511
      %v1581 = vadd.f32 %v1268, %v1514
      %v1582 = vadd.f32 %v1271, %v1517
      %v1583 = vadd.f32 %v1274, %v1520
      %v1584 = vadd.f32 %v1277, %v1523
      %v1585 = vadd.f32 %v1280, %v1526
      %v1586 = vadd.f32 %v1283, %v1529
      %v1587 = vadd.f32 %v1286, %v1532
      %v1588 = vadd.f32 %v1289, %v1535
      %v1589 = vadd.f32 %v1292, %v1538
      %v1590 = vadd.f32 %v1295, %v1541
      %v1591 = vadd.f32 %v1298, %v1544
      %v1592 = vadd.f32 %v1301, %v1547
      %v1593 = vadd.f32 %v1304, %v1550
      %v1594 = vadd.f32 %v1307, %v1553
      %v1595 = vadd.f32 %v1310, %v1556
      %v1596 = vadd.f32 %v1313, %v1559
      %v1597 = vadd.f32 %v1316, %v1562
      %v1598 = vadd.f32 %v1319, %v1565
      %v1599 = vld [vmem:[%s763] sm:$0xff]
      %v1600 = vld [vmem:[%s763 + $0x8] sm:$0xff]
      %v1601 = vld [vmem:[%s763 + $0x18] sm:$0xff]
      %v1602 = vld [vmem:[%s763 + $0x20] sm:$0xff]
      %v1603 = vld [vmem:[%s763 + $0x30] sm:$0xff]
      %v1604 = vld [vmem:[%s763 + $0x38] sm:$0xff]
      %v1605 = vld [vmem:[%s763 + $0x48] sm:$0xff]
      %v1606 = vld [vmem:[%s763 + $0x50] sm:$0xff]
      %v1607 = vld [vmem:[%s763 + $0x60] sm:$0xff]
      %v1608 = vld [vmem:[%s763 + $0x68] sm:$0xff]
      %v1609 = vld [vmem:[%s763 + $0x78] sm:$0xff]
      %v1610 = vld [vmem:[%s763 + $0x80] sm:$0xff]
      %v1611 = vld [vmem:[%s763 + $0x90] sm:$0xff]
      %v1612 = vld [vmem:[%s763 + $0x98] sm:$0xff]
      %v1613 = vld [vmem:[%s763 + $0xa8] sm:$0xff]
      %v1614 = vld [vmem:[%s763 + $0xb0] sm:$0xff]
      %v1615 = vld [vmem:[%s763 + $0xc0] sm:$0xff]
      %v1616 = vld [vmem:[%s763 + $0xc8] sm:$0xff]
      %v1617 = vld [vmem:[%s763 + $0xd8] sm:$0xff]
      %v1618 = vld [vmem:[%s763 + $0xe0] sm:$0xff]
      %v1619 = vld [vmem:[%s763 + $0xf0] sm:$0xff]
      %v1620 = vld [vmem:[%s763 + $0xf8] sm:$0xff]
      %v1621 = vld [vmem:[%s763 + $0x108] sm:$0xff]
      %v1622 = vld [vmem:[%s763 + $0x110] sm:$0xff]
      %v1623 = vld [vmem:[%s763 + $0x120] sm:$0xff]
      %v1624 = vld [vmem:[%s763 + $0x128] sm:$0xff]
      %v1625 = vld [vmem:[%s763 + $0x138] sm:$0xff]
      %v1626 = vld [vmem:[%s763 + $0x140] sm:$0xff]
      %v1627 = vld [vmem:[%s763 + $0x150] sm:$0xff]
      %v1628 = vld [vmem:[%s763 + $0x158] sm:$0xff]
      %v1629 = vld [vmem:[%s763 + $0x168] sm:$0xff]
      %v1630 = vld [vmem:[%s763 + $0x170] sm:$0xff]
      %s1631 = scalar_lea.vmem %s1, 12
      %v1632 = vld [vmem:[%s1631] sm:$0xf]
      %v1634 = vsel %vm235, %v1599, 0
      %v1637 = vsel %vm235, %v1600, 0
      %v1640 = vsel %vm235, %v1601, 0
      %v1643 = vsel %vm235, %v1602, 0
      %v1646 = vsel %vm235, %v1603, 0
      %v1649 = vsel %vm235, %v1604, 0
      %v1652 = vsel %vm235, %v1605, 0
      %v1655 = vsel %vm235, %v1606, 0
      %v1658 = vsel %vm235, %v1607, 0
      %v1661 = vsel %vm235, %v1608, 0
      %v1664 = vsel %vm235, %v1609, 0
      %v1667 = vsel %vm235, %v1610, 0
      %v1670 = vsel %vm235, %v1611, 0
      %v1673 = vsel %vm235, %v1612, 0
      %v1676 = vsel %vm235, %v1613, 0
      %v1679 = vsel %vm235, %v1614, 0
      %v1682 = vsel %vm235, %v1615, 0
      %v1685 = vsel %vm235, %v1616, 0
      %v1688 = vsel %vm235, %v1617, 0
      %v1691 = vsel %vm235, %v1618, 0
      %v1694 = vsel %vm235, %v1619, 0
      %v1697 = vsel %vm235, %v1620, 0
      %v1700 = vsel %vm235, %v1621, 0
      %v1703 = vsel %vm235, %v1622, 0
      %v1706 = vsel %vm235, %v1623, 0
      %v1709 = vsel %vm235, %v1624, 0
      %v1712 = vsel %vm235, %v1625, 0
      %v1715 = vsel %vm235, %v1626, 0
      %v1718 = vsel %vm235, %v1627, 0
      %v1721 = vsel %vm235, %v1628, 0
      %v1724 = vsel %vm235, %v1629, 0
      %v1727 = vsel %vm235, %v1630, 0
      %v1730 = vsel %vm992, %v1632, 0
      %1732 = vmatpush.msra.mxu0 0.0
      %1733 = vmatpush.msra.mxu0 0.0
      %1734 = vmatpush.msra.mxu0 0.0
      %1735 = vmatpush.msra.mxu0 0.0
      %1736 = vmatpush.msra.mxu0 0.0
      %1737 = vmatpush.msra.mxu0 0.0
      %1738 = vmatpush.msra.mxu0 0.0
      %1739 = vmatpush.msra.mxu0 0.0
      %1740 = vmatpush.msra.mxu0 0.0
      %1741 = vmatpush.msra.mxu0 0.0
      %1742 = vmatpush.msra.mxu0 0.0
      %1743 = vmatpush.msra.mxu0 0.0
      %1744 = vmatpush.msra.mxu0 0.0
      %1745 = vmatpush.msra.mxu0 0.0
      %1746 = vmatpush.msra.mxu0 0.0
      %1747 = vmatpush.msra.mxu0 %v1730
      %1748 = vmatmul.f32.gmra.mxu0 %v1634
      %v1749 = vpop.f32.mrf.mxu0
      %v1750 = vadd.f32 0.0, %v1749
      %1751 = vmatmul.f32.gmra.mxu0 %v1637
      %v1752 = vpop.f32.mrf.mxu0
      %v1753 = vadd.f32 0.0, %v1752
      %1754 = vmatmul.f32.gmra.mxu0 %v1640
      %v1755 = vpop.f32.mrf.mxu0
      %v1756 = vadd.f32 0.0, %v1755
      %1757 = vmatmul.f32.gmra.mxu0 %v1643
      %v1758 = vpop.f32.mrf.mxu0
      %v1759 = vadd.f32 0.0, %v1758
      %1760 = vmatmul.f32.gmra.mxu0 %v1646
      %v1761 = vpop.f32.mrf.mxu0
      %v1762 = vadd.f32 0.0, %v1761
      %1763 = vmatmul.f32.gmra.mxu0 %v1649
      %v1764 = vpop.f32.mrf.mxu0
      %v1765 = vadd.f32 0.0, %v1764
      %1766 = vmatmul.f32.gmra.mxu0 %v1652
      %v1767 = vpop.f32.mrf.mxu0
      %v1768 = vadd.f32 0.0, %v1767
      %1769 = vmatmul.f32.gmra.mxu0 %v1655
      %v1770 = vpop.f32.mrf.mxu0
      %v1771 = vadd.f32 0.0, %v1770
      %1772 = vmatmul.f32.gmra.mxu0 %v1658
      %v1773 = vpop.f32.mrf.mxu0
      %v1774 = vadd.f32 0.0, %v1773
      %1775 = vmatmul.f32.gmra.mxu0 %v1661
      %v1776 = vpop.f32.mrf.mxu0
      %v1777 = vadd.f32 0.0, %v1776
      %1778 = vmatmul.f32.gmra.mxu0 %v1664
      %v1779 = vpop.f32.mrf.mxu0
      %v1780 = vadd.f32 0.0, %v1779
      %1781 = vmatmul.f32.gmra.mxu0 %v1667
      %v1782 = vpop.f32.mrf.mxu0
      %v1783 = vadd.f32 0.0, %v1782
      %1784 = vmatmul.f32.gmra.mxu0 %v1670
      %v1785 = vpop.f32.mrf.mxu0
      %v1786 = vadd.f32 0.0, %v1785
      %1787 = vmatmul.f32.gmra.mxu0 %v1673
      %v1788 = vpop.f32.mrf.mxu0
      %v1789 = vadd.f32 0.0, %v1788
      %1790 = vmatmul.f32.gmra.mxu0 %v1676
      %v1791 = vpop.f32.mrf.mxu0
      %v1792 = vadd.f32 0.0, %v1791
      %1793 = vmatmul.f32.gmra.mxu0 %v1679
      %v1794 = vpop.f32.mrf.mxu0
      %v1795 = vadd.f32 0.0, %v1794
      %1796 = vmatmul.f32.gmra.mxu0 %v1682
      %v1797 = vpop.f32.mrf.mxu0
      %v1798 = vadd.f32 0.0, %v1797
      %1799 = vmatmul.f32.gmra.mxu0 %v1685
      %v1800 = vpop.f32.mrf.mxu0
      %v1801 = vadd.f32 0.0, %v1800
      %1802 = vmatmul.f32.gmra.mxu0 %v1688
      %v1803 = vpop.f32.mrf.mxu0
      %v1804 = vadd.f32 0.0, %v1803
      %1805 = vmatmul.f32.gmra.mxu0 %v1691
      %v1806 = vpop.f32.mrf.mxu0
      %v1807 = vadd.f32 0.0, %v1806
      %1808 = vmatmul.f32.gmra.mxu0 %v1694
      %v1809 = vpop.f32.mrf.mxu0
      %v1810 = vadd.f32 0.0, %v1809
      %1811 = vmatmul.f32.gmra.mxu0 %v1697
      %v1812 = vpop.f32.mrf.mxu0
      %v1813 = vadd.f32 0.0, %v1812
      %1814 = vmatmul.f32.gmra.mxu0 %v1700
      %v1815 = vpop.f32.mrf.mxu0
      %v1816 = vadd.f32 0.0, %v1815
      %1817 = vmatmul.f32.gmra.mxu0 %v1703
      %v1818 = vpop.f32.mrf.mxu0
      %v1819 = vadd.f32 0.0, %v1818
      %1820 = vmatmul.f32.gmra.mxu0 %v1706
      %v1821 = vpop.f32.mrf.mxu0
      %v1822 = vadd.f32 0.0, %v1821
      %1823 = vmatmul.f32.gmra.mxu0 %v1709
      %v1824 = vpop.f32.mrf.mxu0
      %v1825 = vadd.f32 0.0, %v1824
      %1826 = vmatmul.f32.gmra.mxu0 %v1712
      %v1827 = vpop.f32.mrf.mxu0
      %v1828 = vadd.f32 0.0, %v1827
      %1829 = vmatmul.f32.gmra.mxu0 %v1715
      %v1830 = vpop.f32.mrf.mxu0
      %v1831 = vadd.f32 0.0, %v1830
      %1832 = vmatmul.f32.gmra.mxu0 %v1718
      %v1833 = vpop.f32.mrf.mxu0
      %v1834 = vadd.f32 0.0, %v1833
      %1835 = vmatmul.f32.gmra.mxu0 %v1721
      %v1836 = vpop.f32.mrf.mxu0
      %v1837 = vadd.f32 0.0, %v1836
      %1838 = vmatmul.f32.gmra.mxu0 %v1724
      %v1839 = vpop.f32.mrf.mxu0
      %v1840 = vadd.f32 0.0, %v1839
      %1841 = vmatmul.f32.gmra.mxu0 %v1727
      %v1842 = vpop.f32.mrf.mxu0
      %v1843 = vadd.f32 0.0, %v1842
      %1844 = vdwg.mxu0
      %v1845 = vadd.f32 %v1567, %v1750
      %v1846 = vadd.f32 %v1568, %v1753
      %v1847 = vadd.f32 %v1569, %v1756
      %v1848 = vadd.f32 %v1570, %v1759
      %v1849 = vadd.f32 %v1571, %v1762
      %v1850 = vadd.f32 %v1572, %v1765
      %v1851 = vadd.f32 %v1573, %v1768
      %v1852 = vadd.f32 %v1574, %v1771
      %v1853 = vadd.f32 %v1575, %v1774
      %v1854 = vadd.f32 %v1576, %v1777
      %v1855 = vadd.f32 %v1577, %v1780
      %v1856 = vadd.f32 %v1578, %v1783
      %v1857 = vadd.f32 %v1579, %v1786
      %v1858 = vadd.f32 %v1580, %v1789
      %v1859 = vadd.f32 %v1581, %v1792
      %v1860 = vadd.f32 %v1582, %v1795
      %v1861 = vadd.f32 %v1583, %v1798
      %v1862 = vadd.f32 %v1584, %v1801
      %v1863 = vadd.f32 %v1585, %v1804
      %v1864 = vadd.f32 %v1586, %v1807
      %v1865 = vadd.f32 %v1587, %v1810
      %v1866 = vadd.f32 %v1588, %v1813
      %v1867 = vadd.f32 %v1589, %v1816
      %v1868 = vadd.f32 %v1590, %v1819
      %v1869 = vadd.f32 %v1591, %v1822
      %v1870 = vadd.f32 %v1592, %v1825
      %v1871 = vadd.f32 %v1593, %v1828
      %v1872 = vadd.f32 %v1594, %v1831
      %v1873 = vadd.f32 %v1595, %v1834
      %v1874 = vadd.f32 %v1596, %v1837
      %v1875 = vadd.f32 %v1597, %v1840
      %v1876 = vadd.f32 %v1598, %v1843
      %v1877 = vld [vmem:[%s763 + $0x1] sm:$0xff]
      %v1878 = vld [vmem:[%s763 + $0x9] sm:$0xff]
      %v1879 = vld [vmem:[%s763 + $0x19] sm:$0xff]
      %v1880 = vld [vmem:[%s763 + $0x21] sm:$0xff]
      %v1881 = vld [vmem:[%s763 + $0x31] sm:$0xff]
      %v1882 = vld [vmem:[%s763 + $0x39] sm:$0xff]
      %v1883 = vld [vmem:[%s763 + $0x49] sm:$0xff]
      %v1884 = vld [vmem:[%s763 + $0x51] sm:$0xff]
      %v1885 = vld [vmem:[%s763 + $0x61] sm:$0xff]
      %v1886 = vld [vmem:[%s763 + $0x69] sm:$0xff]
      %v1887 = vld [vmem:[%s763 + $0x79] sm:$0xff]
      %v1888 = vld [vmem:[%s763 + $0x81] sm:$0xff]
      %v1889 = vld [vmem:[%s763 + $0x91] sm:$0xff]
      %v1890 = vld [vmem:[%s763 + $0x99] sm:$0xff]
      %v1891 = vld [vmem:[%s763 + $0xa9] sm:$0xff]
      %v1892 = vld [vmem:[%s763 + $0xb1] sm:$0xff]
      %v1893 = vld [vmem:[%s763 + $0xc1] sm:$0xff]
      %v1894 = vld [vmem:[%s763 + $0xc9] sm:$0xff]
      %v1895 = vld [vmem:[%s763 + $0xd9] sm:$0xff]
      %v1896 = vld [vmem:[%s763 + $0xe1] sm:$0xff]
      %v1897 = vld [vmem:[%s763 + $0xf1] sm:$0xff]
      %v1898 = vld [vmem:[%s763 + $0xf9] sm:$0xff]
      %v1899 = vld [vmem:[%s763 + $0x109] sm:$0xff]
      %v1900 = vld [vmem:[%s763 + $0x111] sm:$0xff]
      %v1901 = vld [vmem:[%s763 + $0x121] sm:$0xff]
      %v1902 = vld [vmem:[%s763 + $0x129] sm:$0xff]
      %v1903 = vld [vmem:[%s763 + $0x139] sm:$0xff]
      %v1904 = vld [vmem:[%s763 + $0x141] sm:$0xff]
      %v1905 = vld [vmem:[%s763 + $0x151] sm:$0xff]
      %v1906 = vld [vmem:[%s763 + $0x159] sm:$0xff]
      %v1907 = vld [vmem:[%s763 + $0x169] sm:$0xff]
      %v1908 = vld [vmem:[%s763 + $0x171] sm:$0xff]
      %s1909 = scalar_lea.vmem %s1, 16
      %v1910 = vld [vmem:[%s1909] sm:$0xf]
      %v1912 = vsel %vm235, %v1877, 0
      %v1915 = vsel %vm235, %v1878, 0
      %v1918 = vsel %vm235, %v1879, 0
      %v1921 = vsel %vm235, %v1880, 0
      %v1924 = vsel %vm235, %v1881, 0
      %v1927 = vsel %vm235, %v1882, 0
      %v1930 = vsel %vm235, %v1883, 0
      %v1933 = vsel %vm235, %v1884, 0
      %v1936 = vsel %vm235, %v1885, 0
      %v1939 = vsel %vm235, %v1886, 0
      %v1942 = vsel %vm235, %v1887, 0
      %v1945 = vsel %vm235, %v1888, 0
      %v1948 = vsel %vm235, %v1889, 0
      %v1951 = vsel %vm235, %v1890, 0
      %v1954 = vsel %vm235, %v1891, 0
      %v1957 = vsel %vm235, %v1892, 0
      %v1960 = vsel %vm235, %v1893, 0
      %v1963 = vsel %vm235, %v1894, 0
      %v1966 = vsel %vm235, %v1895, 0
      %v1969 = vsel %vm235, %v1896, 0
      %v1972 = vsel %vm235, %v1897, 0
      %v1975 = vsel %vm235, %v1898, 0
      %v1978 = vsel %vm235, %v1899, 0
      %v1981 = vsel %vm235, %v1900, 0
      %v1984 = vsel %vm235, %v1901, 0
      %v1987 = vsel %vm235, %v1902, 0
      %v1990 = vsel %vm235, %v1903, 0
      %v1993 = vsel %vm235, %v1904, 0
      %v1996 = vsel %vm235, %v1905, 0
      %v1999 = vsel %vm235, %v1906, 0
      %v2002 = vsel %vm235, %v1907, 0
      %v2005 = vsel %vm235, %v1908, 0
      %v2008 = vsel %vm992, %v1910, 0
      %2010 = vmatpush.msra.mxu0 0.0
      %2011 = vmatpush.msra.mxu0 0.0
      %2012 = vmatpush.msra.mxu0 0.0
      %2013 = vmatpush.msra.mxu0 0.0
      %2014 = vmatpush.msra.mxu0 0.0
      %2015 = vmatpush.msra.mxu0 0.0
      %2016 = vmatpush.msra.mxu0 0.0
      %2017 = vmatpush.msra.mxu0 0.0
      %2018 = vmatpush.msra.mxu0 0.0
      %2019 = vmatpush.msra.mxu0 0.0
      %2020 = vmatpush.msra.mxu0 0.0
      %2021 = vmatpush.msra.mxu0 0.0
      %2022 = vmatpush.msra.mxu0 0.0
      %2023 = vmatpush.msra.mxu0 0.0
      %2024 = vmatpush.msra.mxu0 0.0
      %2025 = vmatpush.msra.mxu0 %v2008
      %2026 = vmatmul.f32.gmra.mxu0 %v1912
      %v2027 = vpop.f32.mrf.mxu0
      %v2028 = vadd.f32 0.0, %v2027
      %2029 = vmatmul.f32.gmra.mxu0 %v1915
      %v2030 = vpop.f32.mrf.mxu0
      %v2031 = vadd.f32 0.0, %v2030
      %2032 = vmatmul.f32.gmra.mxu0 %v1918
      %v2033 = vpop.f32.mrf.mxu0
      %v2034 = vadd.f32 0.0, %v2033
      %2035 = vmatmul.f32.gmra.mxu0 %v1921
      %v2036 = vpop.f32.mrf.mxu0
      %v2037 = vadd.f32 0.0, %v2036
      %2038 = vmatmul.f32.gmra.mxu0 %v1924
      %v2039 = vpop.f32.mrf.mxu0
      %v2040 = vadd.f32 0.0, %v2039
      %2041 = vmatmul.f32.gmra.mxu0 %v1927
      %v2042 = vpop.f32.mrf.mxu0
      %v2043 = vadd.f32 0.0, %v2042
      %2044 = vmatmul.f32.gmra.mxu0 %v1930
      %v2045 = vpop.f32.mrf.mxu0
      %v2046 = vadd.f32 0.0, %v2045
      %2047 = vmatmul.f32.gmra.mxu0 %v1933
      %v2048 = vpop.f32.mrf.mxu0
      %v2049 = vadd.f32 0.0, %v2048
      %2050 = vmatmul.f32.gmra.mxu0 %v1936
      %v2051 = vpop.f32.mrf.mxu0
      %v2052 = vadd.f32 0.0, %v2051
      %2053 = vmatmul.f32.gmra.mxu0 %v1939
      %v2054 = vpop.f32.mrf.mxu0
      %v2055 = vadd.f32 0.0, %v2054
      %2056 = vmatmul.f32.gmra.mxu0 %v1942
      %v2057 = vpop.f32.mrf.mxu0
      %v2058 = vadd.f32 0.0, %v2057
      %2059 = vmatmul.f32.gmra.mxu0 %v1945
      %v2060 = vpop.f32.mrf.mxu0
      %v2061 = vadd.f32 0.0, %v2060
      %2062 = vmatmul.f32.gmra.mxu0 %v1948
      %v2063 = vpop.f32.mrf.mxu0
      %v2064 = vadd.f32 0.0, %v2063
      %2065 = vmatmul.f32.gmra.mxu0 %v1951
      %v2066 = vpop.f32.mrf.mxu0
      %v2067 = vadd.f32 0.0, %v2066
      %2068 = vmatmul.f32.gmra.mxu0 %v1954
      %v2069 = vpop.f32.mrf.mxu0
      %v2070 = vadd.f32 0.0, %v2069
      %2071 = vmatmul.f32.gmra.mxu0 %v1957
      %v2072 = vpop.f32.mrf.mxu0
      %v2073 = vadd.f32 0.0, %v2072
      %2074 = vmatmul.f32.gmra.mxu0 %v1960
      %v2075 = vpop.f32.mrf.mxu0
      %v2076 = vadd.f32 0.0, %v2075
      %2077 = vmatmul.f32.gmra.mxu0 %v1963
      %v2078 = vpop.f32.mrf.mxu0
      %v2079 = vadd.f32 0.0, %v2078
      %2080 = vmatmul.f32.gmra.mxu0 %v1966
      %v2081 = vpop.f32.mrf.mxu0
      %v2082 = vadd.f32 0.0, %v2081
      %2083 = vmatmul.f32.gmra.mxu0 %v1969
      %v2084 = vpop.f32.mrf.mxu0
      %v2085 = vadd.f32 0.0, %v2084
      %2086 = vmatmul.f32.gmra.mxu0 %v1972
      %v2087 = vpop.f32.mrf.mxu0
      %v2088 = vadd.f32 0.0, %v2087
      %2089 = vmatmul.f32.gmra.mxu0 %v1975
      %v2090 = vpop.f32.mrf.mxu0
      %v2091 = vadd.f32 0.0, %v2090
      %2092 = vmatmul.f32.gmra.mxu0 %v1978
      %v2093 = vpop.f32.mrf.mxu0
      %v2094 = vadd.f32 0.0, %v2093
      %2095 = vmatmul.f32.gmra.mxu0 %v1981
      %v2096 = vpop.f32.mrf.mxu0
      %v2097 = vadd.f32 0.0, %v2096
      %2098 = vmatmul.f32.gmra.mxu0 %v1984
      %v2099 = vpop.f32.mrf.mxu0
      %v2100 = vadd.f32 0.0, %v2099
      %2101 = vmatmul.f32.gmra.mxu0 %v1987
      %v2102 = vpop.f32.mrf.mxu0
      %v2103 = vadd.f32 0.0, %v2102
      %2104 = vmatmul.f32.gmra.mxu0 %v1990
      %v2105 = vpop.f32.mrf.mxu0
      %v2106 = vadd.f32 0.0, %v2105
      %2107 = vmatmul.f32.gmra.mxu0 %v1993
      %v2108 = vpop.f32.mrf.mxu0
      %v2109 = vadd.f32 0.0, %v2108
      %2110 = vmatmul.f32.gmra.mxu0 %v1996
      %v2111 = vpop.f32.mrf.mxu0
      %v2112 = vadd.f32 0.0, %v2111
      %2113 = vmatmul.f32.gmra.mxu0 %v1999
      %v2114 = vpop.f32.mrf.mxu0
      %v2115 = vadd.f32 0.0, %v2114
      %2116 = vmatmul.f32.gmra.mxu0 %v2002
      %v2117 = vpop.f32.mrf.mxu0
      %v2118 = vadd.f32 0.0, %v2117
      %2119 = vmatmul.f32.gmra.mxu0 %v2005
      %v2120 = vpop.f32.mrf.mxu0
      %v2121 = vadd.f32 0.0, %v2120
      %2122 = vdwg.mxu0
      %v2123 = vadd.f32 %v1845, %v2028
      %v2124 = vadd.f32 %v1846, %v2031
      %v2125 = vadd.f32 %v1847, %v2034
      %v2126 = vadd.f32 %v1848, %v2037
      %v2127 = vadd.f32 %v1849, %v2040
      %v2128 = vadd.f32 %v1850, %v2043
      %v2129 = vadd.f32 %v1851, %v2046
      %v2130 = vadd.f32 %v1852, %v2049
      %v2131 = vadd.f32 %v1853, %v2052
      %v2132 = vadd.f32 %v1854, %v2055
      %v2133 = vadd.f32 %v1855, %v2058
      %v2134 = vadd.f32 %v1856, %v2061
      %v2135 = vadd.f32 %v1857, %v2064
      %v2136 = vadd.f32 %v1858, %v2067
      %v2137 = vadd.f32 %v1859, %v2070
      %v2138 = vadd.f32 %v1860, %v2073
      %v2139 = vadd.f32 %v1861, %v2076
      %v2140 = vadd.f32 %v1862, %v2079
      %v2141 = vadd.f32 %v1863, %v2082
      %v2142 = vadd.f32 %v1864, %v2085
      %v2143 = vadd.f32 %v1865, %v2088
      %v2144 = vadd.f32 %v1866, %v2091
      %v2145 = vadd.f32 %v1867, %v2094
      %v2146 = vadd.f32 %v1868, %v2097
      %v2147 = vadd.f32 %v1869, %v2100
      %v2148 = vadd.f32 %v1870, %v2103
      %v2149 = vadd.f32 %v1871, %v2106
      %v2150 = vadd.f32 %v1872, %v2109
      %v2151 = vadd.f32 %v1873, %v2112
      %v2152 = vadd.f32 %v1874, %v2115
      %v2153 = vadd.f32 %v1875, %v2118
      %v2154 = vadd.f32 %v1876, %v2121
      %v2155 = vld [vmem:[%s763 + $0x2] sm:$0xff]
      %v2156 = vld [vmem:[%s763 + $0xa] sm:$0xff]
      %v2157 = vld [vmem:[%s763 + $0x1a] sm:$0xff]
      %v2158 = vld [vmem:[%s763 + $0x22] sm:$0xff]
      %v2159 = vld [vmem:[%s763 + $0x32] sm:$0xff]
      %v2160 = vld [vmem:[%s763 + $0x3a] sm:$0xff]
      %v2161 = vld [vmem:[%s763 + $0x4a] sm:$0xff]
      %v2162 = vld [vmem:[%s763 + $0x52] sm:$0xff]
      %v2163 = vld [vmem:[%s763 + $0x62] sm:$0xff]
      %v2164 = vld [vmem:[%s763 + $0x6a] sm:$0xff]
      %v2165 = vld [vmem:[%s763 + $0x7a] sm:$0xff]
      %v2166 = vld [vmem:[%s763 + $0x82] sm:$0xff]
      %v2167 = vld [vmem:[%s763 + $0x92] sm:$0xff]
      %v2168 = vld [vmem:[%s763 + $0x9a] sm:$0xff]
      %v2169 = vld [vmem:[%s763 + $0xaa] sm:$0xff]
      %v2170 = vld [vmem:[%s763 + $0xb2] sm:$0xff]
      %v2171 = vld [vmem:[%s763 + $0xc2] sm:$0xff]
      %v2172 = vld [vmem:[%s763 + $0xca] sm:$0xff]
      %v2173 = vld [vmem:[%s763 + $0xda] sm:$0xff]
      %v2174 = vld [vmem:[%s763 + $0xe2] sm:$0xff]
      %v2175 = vld [vmem:[%s763 + $0xf2] sm:$0xff]
      %v2176 = vld [vmem:[%s763 + $0xfa] sm:$0xff]
      %v2177 = vld [vmem:[%s763 + $0x10a] sm:$0xff]
      %v2178 = vld [vmem:[%s763 + $0x112] sm:$0xff]
      %v2179 = vld [vmem:[%s763 + $0x122] sm:$0xff]
      %v2180 = vld [vmem:[%s763 + $0x12a] sm:$0xff]
      %v2181 = vld [vmem:[%s763 + $0x13a] sm:$0xff]
      %v2182 = vld [vmem:[%s763 + $0x142] sm:$0xff]
      %v2183 = vld [vmem:[%s763 + $0x152] sm:$0xff]
      %v2184 = vld [vmem:[%s763 + $0x15a] sm:$0xff]
      %v2185 = vld [vmem:[%s763 + $0x16a] sm:$0xff]
      %v2186 = vld [vmem:[%s763 + $0x172] sm:$0xff]
      %s2187 = scalar_lea.vmem %s1, 20
      %v2188 = vld [vmem:[%s2187] sm:$0xf]
      %v2190 = vsel %vm235, %v2155, 0
      %v2193 = vsel %vm235, %v2156, 0
      %v2196 = vsel %vm235, %v2157, 0
      %v2199 = vsel %vm235, %v2158, 0
      %v2202 = vsel %vm235, %v2159, 0
      %v2205 = vsel %vm235, %v2160, 0
      %v2208 = vsel %vm235, %v2161, 0
      %v2211 = vsel %vm235, %v2162, 0
      %v2214 = vsel %vm235, %v2163, 0
      %v2217 = vsel %vm235, %v2164, 0
      %v2220 = vsel %vm235, %v2165, 0
      %v2223 = vsel %vm235, %v2166, 0
      %v2226 = vsel %vm235, %v2167, 0
      %v2229 = vsel %vm235, %v2168, 0
      %v2232 = vsel %vm235, %v2169, 0
      %v2235 = vsel %vm235, %v2170, 0
      %v2238 = vsel %vm235, %v2171, 0
      %v2241 = vsel %vm235, %v2172, 0
      %v2244 = vsel %vm235, %v2173, 0
      %v2247 = vsel %vm235, %v2174, 0
      %v2250 = vsel %vm235, %v2175, 0
      %v2253 = vsel %vm235, %v2176, 0
      %v2256 = vsel %vm235, %v2177, 0
      %v2259 = vsel %vm235, %v2178, 0
      %v2262 = vsel %vm235, %v2179, 0
      %v2265 = vsel %vm235, %v2180, 0
      %v2268 = vsel %vm235, %v2181, 0
      %v2271 = vsel %vm235, %v2182, 0
      %v2274 = vsel %vm235, %v2183, 0
      %v2277 = vsel %vm235, %v2184, 0
      %v2280 = vsel %vm235, %v2185, 0
      %v2283 = vsel %vm235, %v2186, 0
      %v2286 = vsel %vm992, %v2188, 0
      %2288 = vmatpush.msra.mxu0 0.0
      %2289 = vmatpush.msra.mxu0 0.0
      %2290 = vmatpush.msra.mxu0 0.0
      %2291 = vmatpush.msra.mxu0 0.0
      %2292 = vmatpush.msra.mxu0 0.0
      %2293 = vmatpush.msra.mxu0 0.0
      %2294 = vmatpush.msra.mxu0 0.0
      %2295 = vmatpush.msra.mxu0 0.0
      %2296 = vmatpush.msra.mxu0 0.0
      %2297 = vmatpush.msra.mxu0 0.0
      %2298 = vmatpush.msra.mxu0 0.0
      %2299 = vmatpush.msra.mxu0 0.0
      %2300 = vmatpush.msra.mxu0 0.0
      %2301 = vmatpush.msra.mxu0 0.0
      %2302 = vmatpush.msra.mxu0 0.0
      %2303 = vmatpush.msra.mxu0 %v2286
      %2304 = vmatmul.f32.gmra.mxu0 %v2190
      %v2305 = vpop.f32.mrf.mxu0
      %v2306 = vadd.f32 0.0, %v2305
      %2307 = vmatmul.f32.gmra.mxu0 %v2193
      %v2308 = vpop.f32.mrf.mxu0
      %v2309 = vadd.f32 0.0, %v2308
      %2310 = vmatmul.f32.gmra.mxu0 %v2196
      %v2311 = vpop.f32.mrf.mxu0
      %v2312 = vadd.f32 0.0, %v2311
      %2313 = vmatmul.f32.gmra.mxu0 %v2199
      %v2314 = vpop.f32.mrf.mxu0
      %v2315 = vadd.f32 0.0, %v2314
      %2316 = vmatmul.f32.gmra.mxu0 %v2202
      %v2317 = vpop.f32.mrf.mxu0
      %v2318 = vadd.f32 0.0, %v2317
      %2319 = vmatmul.f32.gmra.mxu0 %v2205
      %v2320 = vpop.f32.mrf.mxu0
      %v2321 = vadd.f32 0.0, %v2320
      %2322 = vmatmul.f32.gmra.mxu0 %v2208
      %v2323 = vpop.f32.mrf.mxu0
      %v2324 = vadd.f32 0.0, %v2323
      %2325 = vmatmul.f32.gmra.mxu0 %v2211
      %v2326 = vpop.f32.mrf.mxu0
      %v2327 = vadd.f32 0.0, %v2326
      %2328 = vmatmul.f32.gmra.mxu0 %v2214
      %v2329 = vpop.f32.mrf.mxu0
      %v2330 = vadd.f32 0.0, %v2329
      %2331 = vmatmul.f32.gmra.mxu0 %v2217
      %v2332 = vpop.f32.mrf.mxu0
      %v2333 = vadd.f32 0.0, %v2332
      %2334 = vmatmul.f32.gmra.mxu0 %v2220
      %v2335 = vpop.f32.mrf.mxu0
      %v2336 = vadd.f32 0.0, %v2335
      %2337 = vmatmul.f32.gmra.mxu0 %v2223
      %v2338 = vpop.f32.mrf.mxu0
      %v2339 = vadd.f32 0.0, %v2338
      %2340 = vmatmul.f32.gmra.mxu0 %v2226
      %v2341 = vpop.f32.mrf.mxu0
      %v2342 = vadd.f32 0.0, %v2341
      %2343 = vmatmul.f32.gmra.mxu0 %v2229
      %v2344 = vpop.f32.mrf.mxu0
      %v2345 = vadd.f32 0.0, %v2344
      %2346 = vmatmul.f32.gmra.mxu0 %v2232
      %v2347 = vpop.f32.mrf.mxu0
      %v2348 = vadd.f32 0.0, %v2347
      %2349 = vmatmul.f32.gmra.mxu0 %v2235
      %v2350 = vpop.f32.mrf.mxu0
      %v2351 = vadd.f32 0.0, %v2350
      %2352 = vmatmul.f32.gmra.mxu0 %v2238
      %v2353 = vpop.f32.mrf.mxu0
      %v2354 = vadd.f32 0.0, %v2353
      %2355 = vmatmul.f32.gmra.mxu0 %v2241
      %v2356 = vpop.f32.mrf.mxu0
      %v2357 = vadd.f32 0.0, %v2356
      %2358 = vmatmul.f32.gmra.mxu0 %v2244
      %v2359 = vpop.f32.mrf.mxu0
      %v2360 = vadd.f32 0.0, %v2359
      %2361 = vmatmul.f32.gmra.mxu0 %v2247
      %v2362 = vpop.f32.mrf.mxu0
      %v2363 = vadd.f32 0.0, %v2362
      %2364 = vmatmul.f32.gmra.mxu0 %v2250
      %v2365 = vpop.f32.mrf.mxu0
      %v2366 = vadd.f32 0.0, %v2365
      %2367 = vmatmul.f32.gmra.mxu0 %v2253
      %v2368 = vpop.f32.mrf.mxu0
      %v2369 = vadd.f32 0.0, %v2368
      %2370 = vmatmul.f32.gmra.mxu0 %v2256
      %v2371 = vpop.f32.mrf.mxu0
      %v2372 = vadd.f32 0.0, %v2371
      %2373 = vmatmul.f32.gmra.mxu0 %v2259
      %v2374 = vpop.f32.mrf.mxu0
      %v2375 = vadd.f32 0.0, %v2374
      %2376 = vmatmul.f32.gmra.mxu0 %v2262
      %v2377 = vpop.f32.mrf.mxu0
      %v2378 = vadd.f32 0.0, %v2377
      %2379 = vmatmul.f32.gmra.mxu0 %v2265
      %v2380 = vpop.f32.mrf.mxu0
      %v2381 = vadd.f32 0.0, %v2380
      %2382 = vmatmul.f32.gmra.mxu0 %v2268
      %v2383 = vpop.f32.mrf.mxu0
      %v2384 = vadd.f32 0.0, %v2383
      %2385 = vmatmul.f32.gmra.mxu0 %v2271
      %v2386 = vpop.f32.mrf.mxu0
      %v2387 = vadd.f32 0.0, %v2386
      %2388 = vmatmul.f32.gmra.mxu0 %v2274
      %v2389 = vpop.f32.mrf.mxu0
      %v2390 = vadd.f32 0.0, %v2389
      %2391 = vmatmul.f32.gmra.mxu0 %v2277
      %v2392 = vpop.f32.mrf.mxu0
      %v2393 = vadd.f32 0.0, %v2392
      %2394 = vmatmul.f32.gmra.mxu0 %v2280
      %v2395 = vpop.f32.mrf.mxu0
      %v2396 = vadd.f32 0.0, %v2395
      %2397 = vmatmul.f32.gmra.mxu0 %v2283
      %v2398 = vpop.f32.mrf.mxu0
      %v2399 = vadd.f32 0.0, %v2398
      %2400 = vdwg.mxu0
      %v2401 = vadd.f32 %v2123, %v2306
      %v2402 = vadd.f32 %v2124, %v2309
      %v2403 = vadd.f32 %v2125, %v2312
      %v2404 = vadd.f32 %v2126, %v2315
      %v2405 = vadd.f32 %v2127, %v2318
      %v2406 = vadd.f32 %v2128, %v2321
      %v2407 = vadd.f32 %v2129, %v2324
      %v2408 = vadd.f32 %v2130, %v2327
      %v2409 = vadd.f32 %v2131, %v2330
      %v2410 = vadd.f32 %v2132, %v2333
      %v2411 = vadd.f32 %v2133, %v2336
      %v2412 = vadd.f32 %v2134, %v2339
      %v2413 = vadd.f32 %v2135, %v2342
      %v2414 = vadd.f32 %v2136, %v2345
      %v2415 = vadd.f32 %v2137, %v2348
      %v2416 = vadd.f32 %v2138, %v2351
      %v2417 = vadd.f32 %v2139, %v2354
      %v2418 = vadd.f32 %v2140, %v2357
      %v2419 = vadd.f32 %v2141, %v2360
      %v2420 = vadd.f32 %v2142, %v2363
      %v2421 = vadd.f32 %v2143, %v2366
      %v2422 = vadd.f32 %v2144, %v2369
      %v2423 = vadd.f32 %v2145, %v2372
      %v2424 = vadd.f32 %v2146, %v2375
      %v2425 = vadd.f32 %v2147, %v2378
      %v2426 = vadd.f32 %v2148, %v2381
      %v2427 = vadd.f32 %v2149, %v2384
      %v2428 = vadd.f32 %v2150, %v2387
      %v2429 = vadd.f32 %v2151, %v2390
      %v2430 = vadd.f32 %v2152, %v2393
      %v2431 = vadd.f32 %v2153, %v2396
      %v2432 = vadd.f32 %v2154, %v2399
      %s2433 = scalar_lea.vmem [#allocation2], 48
      %v2434 = vld [vmem:[%s2433] sm:$0xff]
      %v2435 = vld [vmem:[%s2433 + $0x8] sm:$0xff]
      %v2436 = vld [vmem:[%s2433 + $0x18] sm:$0xff]
      %v2437 = vld [vmem:[%s2433 + $0x20] sm:$0xff]
      %v2438 = vld [vmem:[%s2433 + $0x30] sm:$0xff]
      %v2439 = vld [vmem:[%s2433 + $0x38] sm:$0xff]
      %v2440 = vld [vmem:[%s2433 + $0x48] sm:$0xff]
      %v2441 = vld [vmem:[%s2433 + $0x50] sm:$0xff]
      %v2442 = vld [vmem:[%s2433 + $0x60] sm:$0xff]
      %v2443 = vld [vmem:[%s2433 + $0x68] sm:$0xff]
      %v2444 = vld [vmem:[%s2433 + $0x78] sm:$0xff]
      %v2445 = vld [vmem:[%s2433 + $0x80] sm:$0xff]
      %v2446 = vld [vmem:[%s2433 + $0x90] sm:$0xff]
      %v2447 = vld [vmem:[%s2433 + $0x98] sm:$0xff]
      %v2448 = vld [vmem:[%s2433 + $0xa8] sm:$0xff]
      %v2449 = vld [vmem:[%s2433 + $0xb0] sm:$0xff]
      %v2450 = vld [vmem:[%s2433 + $0xc0] sm:$0xff]
      %v2451 = vld [vmem:[%s2433 + $0xc8] sm:$0xff]
      %v2452 = vld [vmem:[%s2433 + $0xd8] sm:$0xff]
      %v2453 = vld [vmem:[%s2433 + $0xe0] sm:$0xff]
      %v2454 = vld [vmem:[%s2433 + $0xf0] sm:$0xff]
      %v2455 = vld [vmem:[%s2433 + $0xf8] sm:$0xff]
      %v2456 = vld [vmem:[%s2433 + $0x108] sm:$0xff]
      %v2457 = vld [vmem:[%s2433 + $0x110] sm:$0xff]
      %v2458 = vld [vmem:[%s2433 + $0x120] sm:$0xff]
      %v2459 = vld [vmem:[%s2433 + $0x128] sm:$0xff]
      %v2460 = vld [vmem:[%s2433 + $0x138] sm:$0xff]
      %v2461 = vld [vmem:[%s2433 + $0x140] sm:$0xff]
      %v2462 = vld [vmem:[%s2433 + $0x150] sm:$0xff]
      %v2463 = vld [vmem:[%s2433 + $0x158] sm:$0xff]
      %v2464 = vld [vmem:[%s2433 + $0x168] sm:$0xff]
      %v2465 = vld [vmem:[%s2433 + $0x170] sm:$0xff]
      %s2466 = scalar_lea.vmem %s1, 24
      %v2467 = vld [vmem:[%s2466] sm:$0xf]
      %v2469 = vsel %vm235, %v2434, 0
      %v2472 = vsel %vm235, %v2435, 0
      %v2475 = vsel %vm235, %v2436, 0
      %v2478 = vsel %vm235, %v2437, 0
      %v2481 = vsel %vm235, %v2438, 0
      %v2484 = vsel %vm235, %v2439, 0
      %v2487 = vsel %vm235, %v2440, 0
      %v2490 = vsel %vm235, %v2441, 0
      %v2493 = vsel %vm235, %v2442, 0
      %v2496 = vsel %vm235, %v2443, 0
      %v2499 = vsel %vm235, %v2444, 0
      %v2502 = vsel %vm235, %v2445, 0
      %v2505 = vsel %vm235, %v2446, 0
      %v2508 = vsel %vm235, %v2447, 0
      %v2511 = vsel %vm235, %v2448, 0
      %v2514 = vsel %vm235, %v2449, 0
      %v2517 = vsel %vm235, %v2450, 0
      %v2520 = vsel %vm235, %v2451, 0
      %v2523 = vsel %vm235, %v2452, 0
      %v2526 = vsel %vm235, %v2453, 0
      %v2529 = vsel %vm235, %v2454, 0
      %v2532 = vsel %vm235, %v2455, 0
      %v2535 = vsel %vm235, %v2456, 0
      %v2538 = vsel %vm235, %v2457, 0
      %v2541 = vsel %vm235, %v2458, 0
      %v2544 = vsel %vm235, %v2459, 0
      %v2547 = vsel %vm235, %v2460, 0
      %v2550 = vsel %vm235, %v2461, 0
      %v2553 = vsel %vm235, %v2462, 0
      %v2556 = vsel %vm235, %v2463, 0
      %v2559 = vsel %vm235, %v2464, 0
      %v2562 = vsel %vm235, %v2465, 0
      %v2565 = vsel %vm992, %v2467, 0
      %2567 = vmatpush.msra.mxu0 0.0
      %2568 = vmatpush.msra.mxu0 0.0
      %2569 = vmatpush.msra.mxu0 0.0
      %2570 = vmatpush.msra.mxu0 0.0
      %2571 = vmatpush.msra.mxu0 0.0
      %2572 = vmatpush.msra.mxu0 0.0
      %2573 = vmatpush.msra.mxu0 0.0
      %2574 = vmatpush.msra.mxu0 0.0
      %2575 = vmatpush.msra.mxu0 0.0
      %2576 = vmatpush.msra.mxu0 0.0
      %2577 = vmatpush.msra.mxu0 0.0
      %2578 = vmatpush.msra.mxu0 0.0
      %2579 = vmatpush.msra.mxu0 0.0
      %2580 = vmatpush.msra.mxu0 0.0
      %2581 = vmatpush.msra.mxu0 0.0
      %2582 = vmatpush.msra.mxu0 %v2565
      %2583 = vmatmul.f32.gmra.mxu0 %v2469
      %v2584 = vpop.f32.mrf.mxu0
      %v2585 = vadd.f32 0.0, %v2584
      %2586 = vmatmul.f32.gmra.mxu0 %v2472
      %v2587 = vpop.f32.mrf.mxu0
      %v2588 = vadd.f32 0.0, %v2587
      %2589 = vmatmul.f32.gmra.mxu0 %v2475
      %v2590 = vpop.f32.mrf.mxu0
      %v2591 = vadd.f32 0.0, %v2590
      %2592 = vmatmul.f32.gmra.mxu0 %v2478
      %v2593 = vpop.f32.mrf.mxu0
      %v2594 = vadd.f32 0.0, %v2593
      %2595 = vmatmul.f32.gmra.mxu0 %v2481
      %v2596 = vpop.f32.mrf.mxu0
      %v2597 = vadd.f32 0.0, %v2596
      %2598 = vmatmul.f32.gmra.mxu0 %v2484
      %v2599 = vpop.f32.mrf.mxu0
      %v2600 = vadd.f32 0.0, %v2599
      %2601 = vmatmul.f32.gmra.mxu0 %v2487
      %v2602 = vpop.f32.mrf.mxu0
      %v2603 = vadd.f32 0.0, %v2602
      %2604 = vmatmul.f32.gmra.mxu0 %v2490
      %v2605 = vpop.f32.mrf.mxu0
      %v2606 = vadd.f32 0.0, %v2605
      %2607 = vmatmul.f32.gmra.mxu0 %v2493
      %v2608 = vpop.f32.mrf.mxu0
      %v2609 = vadd.f32 0.0, %v2608
      %2610 = vmatmul.f32.gmra.mxu0 %v2496
      %v2611 = vpop.f32.mrf.mxu0
      %v2612 = vadd.f32 0.0, %v2611
      %2613 = vmatmul.f32.gmra.mxu0 %v2499
      %v2614 = vpop.f32.mrf.mxu0
      %v2615 = vadd.f32 0.0, %v2614
      %2616 = vmatmul.f32.gmra.mxu0 %v2502
      %v2617 = vpop.f32.mrf.mxu0
      %v2618 = vadd.f32 0.0, %v2617
      %2619 = vmatmul.f32.gmra.mxu0 %v2505
      %v2620 = vpop.f32.mrf.mxu0
      %v2621 = vadd.f32 0.0, %v2620
      %2622 = vmatmul.f32.gmra.mxu0 %v2508
      %v2623 = vpop.f32.mrf.mxu0
      %v2624 = vadd.f32 0.0, %v2623
      %2625 = vmatmul.f32.gmra.mxu0 %v2511
      %v2626 = vpop.f32.mrf.mxu0
      %v2627 = vadd.f32 0.0, %v2626
      %2628 = vmatmul.f32.gmra.mxu0 %v2514
      %v2629 = vpop.f32.mrf.mxu0
      %v2630 = vadd.f32 0.0, %v2629
      %2631 = vmatmul.f32.gmra.mxu0 %v2517
      %v2632 = vpop.f32.mrf.mxu0
      %v2633 = vadd.f32 0.0, %v2632
      %2634 = vmatmul.f32.gmra.mxu0 %v2520
      %v2635 = vpop.f32.mrf.mxu0
      %v2636 = vadd.f32 0.0, %v2635
      %2637 = vmatmul.f32.gmra.mxu0 %v2523
      %v2638 = vpop.f32.mrf.mxu0
      %v2639 = vadd.f32 0.0, %v2638
      %2640 = vmatmul.f32.gmra.mxu0 %v2526
      %v2641 = vpop.f32.mrf.mxu0
      %v2642 = vadd.f32 0.0, %v2641
      %2643 = vmatmul.f32.gmra.mxu0 %v2529
      %v2644 = vpop.f32.mrf.mxu0
      %v2645 = vadd.f32 0.0, %v2644
      %2646 = vmatmul.f32.gmra.mxu0 %v2532
      %v2647 = vpop.f32.mrf.mxu0
      %v2648 = vadd.f32 0.0, %v2647
      %2649 = vmatmul.f32.gmra.mxu0 %v2535
      %v2650 = vpop.f32.mrf.mxu0
      %v2651 = vadd.f32 0.0, %v2650
      %2652 = vmatmul.f32.gmra.mxu0 %v2538
      %v2653 = vpop.f32.mrf.mxu0
      %v2654 = vadd.f32 0.0, %v2653
      %2655 = vmatmul.f32.gmra.mxu0 %v2541
      %v2656 = vpop.f32.mrf.mxu0
      %v2657 = vadd.f32 0.0, %v2656
      %2658 = vmatmul.f32.gmra.mxu0 %v2544
      %v2659 = vpop.f32.mrf.mxu0
      %v2660 = vadd.f32 0.0, %v2659
      %2661 = vmatmul.f32.gmra.mxu0 %v2547
      %v2662 = vpop.f32.mrf.mxu0
      %v2663 = vadd.f32 0.0, %v2662
      %2664 = vmatmul.f32.gmra.mxu0 %v2550
      %v2665 = vpop.f32.mrf.mxu0
      %v2666 = vadd.f32 0.0, %v2665
      %2667 = vmatmul.f32.gmra.mxu0 %v2553
      %v2668 = vpop.f32.mrf.mxu0
      %v2669 = vadd.f32 0.0, %v2668
      %2670 = vmatmul.f32.gmra.mxu0 %v2556
      %v2671 = vpop.f32.mrf.mxu0
      %v2672 = vadd.f32 0.0, %v2671
      %2673 = vmatmul.f32.gmra.mxu0 %v2559
      %v2674 = vpop.f32.mrf.mxu0
      %v2675 = vadd.f32 0.0, %v2674
      %2676 = vmatmul.f32.gmra.mxu0 %v2562
      %v2677 = vpop.f32.mrf.mxu0
      %v2678 = vadd.f32 0.0, %v2677
      %2679 = vdwg.mxu0
      %v2680 = vadd.f32 %v2401, %v2585
      %v2681 = vadd.f32 %v2402, %v2588
      %v2682 = vadd.f32 %v2403, %v2591
      %v2683 = vadd.f32 %v2404, %v2594
      %v2684 = vadd.f32 %v2405, %v2597
      %v2685 = vadd.f32 %v2406, %v2600
      %v2686 = vadd.f32 %v2407, %v2603
      %v2687 = vadd.f32 %v2408, %v2606
      %v2688 = vadd.f32 %v2409, %v2609
      %v2689 = vadd.f32 %v2410, %v2612
      %v2690 = vadd.f32 %v2411, %v2615
      %v2691 = vadd.f32 %v2412, %v2618
      %v2692 = vadd.f32 %v2413, %v2621
      %v2693 = vadd.f32 %v2414, %v2624
      %v2694 = vadd.f32 %v2415, %v2627
      %v2695 = vadd.f32 %v2416, %v2630
      %v2696 = vadd.f32 %v2417, %v2633
      %v2697 = vadd.f32 %v2418, %v2636
      %v2698 = vadd.f32 %v2419, %v2639
      %v2699 = vadd.f32 %v2420, %v2642
      %v2700 = vadd.f32 %v2421, %v2645
      %v2701 = vadd.f32 %v2422, %v2648
      %v2702 = vadd.f32 %v2423, %v2651
      %v2703 = vadd.f32 %v2424, %v2654
      %v2704 = vadd.f32 %v2425, %v2657
      %v2705 = vadd.f32 %v2426, %v2660
      %v2706 = vadd.f32 %v2427, %v2663
      %v2707 = vadd.f32 %v2428, %v2666
      %v2708 = vadd.f32 %v2429, %v2669
      %v2709 = vadd.f32 %v2430, %v2672
      %v2710 = vadd.f32 %v2431, %v2675
      %v2711 = vadd.f32 %v2432, %v2678
      %v2712 = vld [vmem:[%s2433 + $0x1] sm:$0xff]
      %v2713 = vld [vmem:[%s2433 + $0x9] sm:$0xff]
      %v2714 = vld [vmem:[%s2433 + $0x19] sm:$0xff]
      %v2715 = vld [vmem:[%s2433 + $0x21] sm:$0xff]
      %v2716 = vld [vmem:[%s2433 + $0x31] sm:$0xff]
      %v2717 = vld [vmem:[%s2433 + $0x39] sm:$0xff]
      %v2718 = vld [vmem:[%s2433 + $0x49] sm:$0xff]
      %v2719 = vld [vmem:[%s2433 + $0x51] sm:$0xff]
      %v2720 = vld [vmem:[%s2433 + $0x61] sm:$0xff]
      %v2721 = vld [vmem:[%s2433 + $0x69] sm:$0xff]
      %v2722 = vld [vmem:[%s2433 + $0x79] sm:$0xff]
      %v2723 = vld [vmem:[%s2433 + $0x81] sm:$0xff]
      %v2724 = vld [vmem:[%s2433 + $0x91] sm:$0xff]
      %v2725 = vld [vmem:[%s2433 + $0x99] sm:$0xff]
      %v2726 = vld [vmem:[%s2433 + $0xa9] sm:$0xff]
      %v2727 = vld [vmem:[%s2433 + $0xb1] sm:$0xff]
      %v2728 = vld [vmem:[%s2433 + $0xc1] sm:$0xff]
      %v2729 = vld [vmem:[%s2433 + $0xc9] sm:$0xff]
      %v2730 = vld [vmem:[%s2433 + $0xd9] sm:$0xff]
      %v2731 = vld [vmem:[%s2433 + $0xe1] sm:$0xff]
      %v2732 = vld [vmem:[%s2433 + $0xf1] sm:$0xff]
      %v2733 = vld [vmem:[%s2433 + $0xf9] sm:$0xff]
      %v2734 = vld [vmem:[%s2433 + $0x109] sm:$0xff]
      %v2735 = vld [vmem:[%s2433 + $0x111] sm:$0xff]
      %v2736 = vld [vmem:[%s2433 + $0x121] sm:$0xff]
      %v2737 = vld [vmem:[%s2433 + $0x129] sm:$0xff]
      %v2738 = vld [vmem:[%s2433 + $0x139] sm:$0xff]
      %v2739 = vld [vmem:[%s2433 + $0x141] sm:$0xff]
      %v2740 = vld [vmem:[%s2433 + $0x151] sm:$0xff]
      %v2741 = vld [vmem:[%s2433 + $0x159] sm:$0xff]
      %v2742 = vld [vmem:[%s2433 + $0x169] sm:$0xff]
      %v2743 = vld [vmem:[%s2433 + $0x171] sm:$0xff]
      %s2744 = scalar_lea.vmem %s1, 28
      %v2745 = vld [vmem:[%s2744] sm:$0xf]
      %v2747 = vsel %vm235, %v2712, 0
      %v2750 = vsel %vm235, %v2713, 0
      %v2753 = vsel %vm235, %v2714, 0
      %v2756 = vsel %vm235, %v2715, 0
      %v2759 = vsel %vm235, %v2716, 0
      %v2762 = vsel %vm235, %v2717, 0
      %v2765 = vsel %vm235, %v2718, 0
      %v2768 = vsel %vm235, %v2719, 0
      %v2771 = vsel %vm235, %v2720, 0
      %v2774 = vsel %vm235, %v2721, 0
      %v2777 = vsel %vm235, %v2722, 0
      %v2780 = vsel %vm235, %v2723, 0
      %v2783 = vsel %vm235, %v2724, 0
      %v2786 = vsel %vm235, %v2725, 0
      %v2789 = vsel %vm235, %v2726, 0
      %v2792 = vsel %vm235, %v2727, 0
      %v2795 = vsel %vm235, %v2728, 0
      %v2798 = vsel %vm235, %v2729, 0
      %v2801 = vsel %vm235, %v2730, 0
      %v2804 = vsel %vm235, %v2731, 0
      %v2807 = vsel %vm235, %v2732, 0
      %v2810 = vsel %vm235, %v2733, 0
      %v2813 = vsel %vm235, %v2734, 0
      %v2816 = vsel %vm235, %v2735, 0
      %v2819 = vsel %vm235, %v2736, 0
      %v2822 = vsel %vm235, %v2737, 0
      %v2825 = vsel %vm235, %v2738, 0
      %v2828 = vsel %vm235, %v2739, 0
      %v2831 = vsel %vm235, %v2740, 0
      %v2834 = vsel %vm235, %v2741, 0
      %v2837 = vsel %vm235, %v2742, 0
      %v2840 = vsel %vm235, %v2743, 0
      %v2843 = vsel %vm992, %v2745, 0
      %2845 = vmatpush.msra.mxu0 0.0
      %2846 = vmatpush.msra.mxu0 0.0
      %2847 = vmatpush.msra.mxu0 0.0
      %2848 = vmatpush.msra.mxu0 0.0
      %2849 = vmatpush.msra.mxu0 0.0
      %2850 = vmatpush.msra.mxu0 0.0
      %2851 = vmatpush.msra.mxu0 0.0
      %2852 = vmatpush.msra.mxu0 0.0
      %2853 = vmatpush.msra.mxu0 0.0
      %2854 = vmatpush.msra.mxu0 0.0
      %2855 = vmatpush.msra.mxu0 0.0
      %2856 = vmatpush.msra.mxu0 0.0
      %2857 = vmatpush.msra.mxu0 0.0
      %2858 = vmatpush.msra.mxu0 0.0
      %2859 = vmatpush.msra.mxu0 0.0
      %2860 = vmatpush.msra.mxu0 %v2843
      %2861 = vmatmul.f32.gmra.mxu0 %v2747
      %v2862 = vpop.f32.mrf.mxu0
      %v2863 = vadd.f32 0.0, %v2862
      %2864 = vmatmul.f32.gmra.mxu0 %v2750
      %v2865 = vpop.f32.mrf.mxu0
      %v2866 = vadd.f32 0.0, %v2865
      %2867 = vmatmul.f32.gmra.mxu0 %v2753
      %v2868 = vpop.f32.mrf.mxu0
      %v2869 = vadd.f32 0.0, %v2868
      %2870 = vmatmul.f32.gmra.mxu0 %v2756
      %v2871 = vpop.f32.mrf.mxu0
      %v2872 = vadd.f32 0.0, %v2871
      %2873 = vmatmul.f32.gmra.mxu0 %v2759
      %v2874 = vpop.f32.mrf.mxu0
      %v2875 = vadd.f32 0.0, %v2874
      %2876 = vmatmul.f32.gmra.mxu0 %v2762
      %v2877 = vpop.f32.mrf.mxu0
      %v2878 = vadd.f32 0.0, %v2877
      %2879 = vmatmul.f32.gmra.mxu0 %v2765
      %v2880 = vpop.f32.mrf.mxu0
      %v2881 = vadd.f32 0.0, %v2880
      %2882 = vmatmul.f32.gmra.mxu0 %v2768
      %v2883 = vpop.f32.mrf.mxu0
      %v2884 = vadd.f32 0.0, %v2883
      %2885 = vmatmul.f32.gmra.mxu0 %v2771
      %v2886 = vpop.f32.mrf.mxu0
      %v2887 = vadd.f32 0.0, %v2886
      %2888 = vmatmul.f32.gmra.mxu0 %v2774
      %v2889 = vpop.f32.mrf.mxu0
      %v2890 = vadd.f32 0.0, %v2889
      %2891 = vmatmul.f32.gmra.mxu0 %v2777
      %v2892 = vpop.f32.mrf.mxu0
      %v2893 = vadd.f32 0.0, %v2892
      %2894 = vmatmul.f32.gmra.mxu0 %v2780
      %v2895 = vpop.f32.mrf.mxu0
      %v2896 = vadd.f32 0.0, %v2895
      %2897 = vmatmul.f32.gmra.mxu0 %v2783
      %v2898 = vpop.f32.mrf.mxu0
      %v2899 = vadd.f32 0.0, %v2898
      %2900 = vmatmul.f32.gmra.mxu0 %v2786
      %v2901 = vpop.f32.mrf.mxu0
      %v2902 = vadd.f32 0.0, %v2901
      %2903 = vmatmul.f32.gmra.mxu0 %v2789
      %v2904 = vpop.f32.mrf.mxu0
      %v2905 = vadd.f32 0.0, %v2904
      %2906 = vmatmul.f32.gmra.mxu0 %v2792
      %v2907 = vpop.f32.mrf.mxu0
      %v2908 = vadd.f32 0.0, %v2907
      %2909 = vmatmul.f32.gmra.mxu0 %v2795
      %v2910 = vpop.f32.mrf.mxu0
      %v2911 = vadd.f32 0.0, %v2910
      %2912 = vmatmul.f32.gmra.mxu0 %v2798
      %v2913 = vpop.f32.mrf.mxu0
      %v2914 = vadd.f32 0.0, %v2913
      %2915 = vmatmul.f32.gmra.mxu0 %v2801
      %v2916 = vpop.f32.mrf.mxu0
      %v2917 = vadd.f32 0.0, %v2916
      %2918 = vmatmul.f32.gmra.mxu0 %v2804
      %v2919 = vpop.f32.mrf.mxu0
      %v2920 = vadd.f32 0.0, %v2919
      %2921 = vmatmul.f32.gmra.mxu0 %v2807
      %v2922 = vpop.f32.mrf.mxu0
      %v2923 = vadd.f32 0.0, %v2922
      %2924 = vmatmul.f32.gmra.mxu0 %v2810
      %v2925 = vpop.f32.mrf.mxu0
      %v2926 = vadd.f32 0.0, %v2925
      %2927 = vmatmul.f32.gmra.mxu0 %v2813
      %v2928 = vpop.f32.mrf.mxu0
      %v2929 = vadd.f32 0.0, %v2928
      %2930 = vmatmul.f32.gmra.mxu0 %v2816
      %v2931 = vpop.f32.mrf.mxu0
      %v2932 = vadd.f32 0.0, %v2931
      %2933 = vmatmul.f32.gmra.mxu0 %v2819
      %v2934 = vpop.f32.mrf.mxu0
      %v2935 = vadd.f32 0.0, %v2934
      %2936 = vmatmul.f32.gmra.mxu0 %v2822
      %v2937 = vpop.f32.mrf.mxu0
      %v2938 = vadd.f32 0.0, %v2937
      %2939 = vmatmul.f32.gmra.mxu0 %v2825
      %v2940 = vpop.f32.mrf.mxu0
      %v2941 = vadd.f32 0.0, %v2940
      %2942 = vmatmul.f32.gmra.mxu0 %v2828
      %v2943 = vpop.f32.mrf.mxu0
      %v2944 = vadd.f32 0.0, %v2943
      %2945 = vmatmul.f32.gmra.mxu0 %v2831
      %v2946 = vpop.f32.mrf.mxu0
      %v2947 = vadd.f32 0.0, %v2946
      %2948 = vmatmul.f32.gmra.mxu0 %v2834
      %v2949 = vpop.f32.mrf.mxu0
      %v2950 = vadd.f32 0.0, %v2949
      %2951 = vmatmul.f32.gmra.mxu0 %v2837
      %v2952 = vpop.f32.mrf.mxu0
      %v2953 = vadd.f32 0.0, %v2952
      %2954 = vmatmul.f32.gmra.mxu0 %v2840
      %v2955 = vpop.f32.mrf.mxu0
      %v2956 = vadd.f32 0.0, %v2955
      %2957 = vdwg.mxu0
      %v2958 = vadd.f32 %v2680, %v2863
      %v2959 = vadd.f32 %v2681, %v2866
      %v2960 = vadd.f32 %v2682, %v2869
      %v2961 = vadd.f32 %v2683, %v2872
      %v2962 = vadd.f32 %v2684, %v2875
      %v2963 = vadd.f32 %v2685, %v2878
      %v2964 = vadd.f32 %v2686, %v2881
      %v2965 = vadd.f32 %v2687, %v2884
      %v2966 = vadd.f32 %v2688, %v2887
      %v2967 = vadd.f32 %v2689, %v2890
      %v2968 = vadd.f32 %v2690, %v2893
      %v2969 = vadd.f32 %v2691, %v2896
      %v2970 = vadd.f32 %v2692, %v2899
      %v2971 = vadd.f32 %v2693, %v2902
      %v2972 = vadd.f32 %v2694, %v2905
      %v2973 = vadd.f32 %v2695, %v2908
      %v2974 = vadd.f32 %v2696, %v2911
      %v2975 = vadd.f32 %v2697, %v2914
      %v2976 = vadd.f32 %v2698, %v2917
      %v2977 = vadd.f32 %v2699, %v2920
      %v2978 = vadd.f32 %v2700, %v2923
      %v2979 = vadd.f32 %v2701, %v2926
      %v2980 = vadd.f32 %v2702, %v2929
      %v2981 = vadd.f32 %v2703, %v2932
      %v2982 = vadd.f32 %v2704, %v2935
      %v2983 = vadd.f32 %v2705, %v2938
      %v2984 = vadd.f32 %v2706, %v2941
      %v2985 = vadd.f32 %v2707, %v2944
      %v2986 = vadd.f32 %v2708, %v2947
      %v2987 = vadd.f32 %v2709, %v2950
      %v2988 = vadd.f32 %v2710, %v2953
      %v2989 = vadd.f32 %v2711, %v2956
      %v2990 = vld [vmem:[%s2433 + $0x2] sm:$0xff]
      %v2991 = vld [vmem:[%s2433 + $0xa] sm:$0xff]
      %v2992 = vld [vmem:[%s2433 + $0x1a] sm:$0xff]
      %v2993 = vld [vmem:[%s2433 + $0x22] sm:$0xff]
      %v2994 = vld [vmem:[%s2433 + $0x32] sm:$0xff]
      %v2995 = vld [vmem:[%s2433 + $0x3a] sm:$0xff]
      %v2996 = vld [vmem:[%s2433 + $0x4a] sm:$0xff]
      %v2997 = vld [vmem:[%s2433 + $0x52] sm:$0xff]
      %v2998 = vld [vmem:[%s2433 + $0x62] sm:$0xff]
      %v2999 = vld [vmem:[%s2433 + $0x6a] sm:$0xff]
      %v3000 = vld [vmem:[%s2433 + $0x7a] sm:$0xff]
      %v3001 = vld [vmem:[%s2433 + $0x82] sm:$0xff]
      %v3002 = vld [vmem:[%s2433 + $0x92] sm:$0xff]
      %v3003 = vld [vmem:[%s2433 + $0x9a] sm:$0xff]
      %v3004 = vld [vmem:[%s2433 + $0xaa] sm:$0xff]
      %v3005 = vld [vmem:[%s2433 + $0xb2] sm:$0xff]
      %v3006 = vld [vmem:[%s2433 + $0xc2] sm:$0xff]
      %v3007 = vld [vmem:[%s2433 + $0xca] sm:$0xff]
      %v3008 = vld [vmem:[%s2433 + $0xda] sm:$0xff]
      %v3009 = vld [vmem:[%s2433 + $0xe2] sm:$0xff]
      %v3010 = vld [vmem:[%s2433 + $0xf2] sm:$0xff]
      %v3011 = vld [vmem:[%s2433 + $0xfa] sm:$0xff]
      %v3012 = vld [vmem:[%s2433 + $0x10a] sm:$0xff]
      %v3013 = vld [vmem:[%s2433 + $0x112] sm:$0xff]
      %v3014 = vld [vmem:[%s2433 + $0x122] sm:$0xff]
      %v3015 = vld [vmem:[%s2433 + $0x12a] sm:$0xff]
      %v3016 = vld [vmem:[%s2433 + $0x13a] sm:$0xff]
      %v3017 = vld [vmem:[%s2433 + $0x142] sm:$0xff]
      %v3018 = vld [vmem:[%s2433 + $0x152] sm:$0xff]
      %v3019 = vld [vmem:[%s2433 + $0x15a] sm:$0xff]
      %v3020 = vld [vmem:[%s2433 + $0x16a] sm:$0xff]
      %v3021 = vld [vmem:[%s2433 + $0x172] sm:$0xff]
      %s3022 = scalar_lea.vmem %s1, 32
      %v3023 = vld [vmem:[%s3022] sm:$0xf]
      %v3025 = vsel %vm235, %v2990, 0
      %v3028 = vsel %vm235, %v2991, 0
      %v3031 = vsel %vm235, %v2992, 0
      %v3034 = vsel %vm235, %v2993, 0
      %v3037 = vsel %vm235, %v2994, 0
      %v3040 = vsel %vm235, %v2995, 0
      %v3043 = vsel %vm235, %v2996, 0
      %v3046 = vsel %vm235, %v2997, 0
      %v3049 = vsel %vm235, %v2998, 0
      %v3052 = vsel %vm235, %v2999, 0
      %v3055 = vsel %vm235, %v3000, 0
      %v3058 = vsel %vm235, %v3001, 0
      %v3061 = vsel %vm235, %v3002, 0
      %v3064 = vsel %vm235, %v3003, 0
      %v3067 = vsel %vm235, %v3004, 0
      %v3070 = vsel %vm235, %v3005, 0
      %v3073 = vsel %vm235, %v3006, 0
      %v3076 = vsel %vm235, %v3007, 0
      %v3079 = vsel %vm235, %v3008, 0
      %v3082 = vsel %vm235, %v3009, 0
      %v3085 = vsel %vm235, %v3010, 0
      %v3088 = vsel %vm235, %v3011, 0
      %v3091 = vsel %vm235, %v3012, 0
      %v3094 = vsel %vm235, %v3013, 0
      %v3097 = vsel %vm235, %v3014, 0
      %v3100 = vsel %vm235, %v3015, 0
      %v3103 = vsel %vm235, %v3016, 0
      %v3106 = vsel %vm235, %v3017, 0
      %v3109 = vsel %vm235, %v3018, 0
      %v3112 = vsel %vm235, %v3019, 0
      %v3115 = vsel %vm235, %v3020, 0
      %v3118 = vsel %vm235, %v3021, 0
      %v3121 = vsel %vm992, %v3023, 0
      %3123 = vmatpush.msra.mxu0 0.0
      %3124 = vmatpush.msra.mxu0 0.0
      %3125 = vmatpush.msra.mxu0 0.0
      %3126 = vmatpush.msra.mxu0 0.0
      %3127 = vmatpush.msra.mxu0 0.0
      %3128 = vmatpush.msra.mxu0 0.0
      %3129 = vmatpush.msra.mxu0 0.0
      %3130 = vmatpush.msra.mxu0 0.0
      %3131 = vmatpush.msra.mxu0 0.0
      %3132 = vmatpush.msra.mxu0 0.0
      %3133 = vmatpush.msra.mxu0 0.0
      %3134 = vmatpush.msra.mxu0 0.0
      %3135 = vmatpush.msra.mxu0 0.0
      %3136 = vmatpush.msra.mxu0 0.0
      %3137 = vmatpush.msra.mxu0 0.0
      %3138 = vmatpush.msra.mxu0 %v3121
      %3139 = vmatmul.f32.gmra.mxu0 %v3025
      %v3140 = vpop.f32.mrf.mxu0
      %v3141 = vadd.f32 0.0, %v3140
      %3142 = vmatmul.f32.gmra.mxu0 %v3028
      %v3143 = vpop.f32.mrf.mxu0
      %v3144 = vadd.f32 0.0, %v3143
      %3145 = vmatmul.f32.gmra.mxu0 %v3031
      %v3146 = vpop.f32.mrf.mxu0
      %v3147 = vadd.f32 0.0, %v3146
      %3148 = vmatmul.f32.gmra.mxu0 %v3034
      %v3149 = vpop.f32.mrf.mxu0
      %v3150 = vadd.f32 0.0, %v3149
      %3151 = vmatmul.f32.gmra.mxu0 %v3037
      %v3152 = vpop.f32.mrf.mxu0
      %v3153 = vadd.f32 0.0, %v3152
      %3154 = vmatmul.f32.gmra.mxu0 %v3040
      %v3155 = vpop.f32.mrf.mxu0
      %v3156 = vadd.f32 0.0, %v3155
      %3157 = vmatmul.f32.gmra.mxu0 %v3043
      %v3158 = vpop.f32.mrf.mxu0
      %v3159 = vadd.f32 0.0, %v3158
      %3160 = vmatmul.f32.gmra.mxu0 %v3046
      %v3161 = vpop.f32.mrf.mxu0
      %v3162 = vadd.f32 0.0, %v3161
      %3163 = vmatmul.f32.gmra.mxu0 %v3049
      %v3164 = vpop.f32.mrf.mxu0
      %v3165 = vadd.f32 0.0, %v3164
      %3166 = vmatmul.f32.gmra.mxu0 %v3052
      %v3167 = vpop.f32.mrf.mxu0
      %v3168 = vadd.f32 0.0, %v3167
      %3169 = vmatmul.f32.gmra.mxu0 %v3055
      %v3170 = vpop.f32.mrf.mxu0
      %v3171 = vadd.f32 0.0, %v3170
      %3172 = vmatmul.f32.gmra.mxu0 %v3058
      %v3173 = vpop.f32.mrf.mxu0
      %v3174 = vadd.f32 0.0, %v3173
      %3175 = vmatmul.f32.gmra.mxu0 %v3061
      %v3176 = vpop.f32.mrf.mxu0
      %v3177 = vadd.f32 0.0, %v3176
      %3178 = vmatmul.f32.gmra.mxu0 %v3064
      %v3179 = vpop.f32.mrf.mxu0
      %v3180 = vadd.f32 0.0, %v3179
      %3181 = vmatmul.f32.gmra.mxu0 %v3067
      %v3182 = vpop.f32.mrf.mxu0
      %v3183 = vadd.f32 0.0, %v3182
      %3184 = vmatmul.f32.gmra.mxu0 %v3070
      %v3185 = vpop.f32.mrf.mxu0
      %v3186 = vadd.f32 0.0, %v3185
      %3187 = vmatmul.f32.gmra.mxu0 %v3073
      %v3188 = vpop.f32.mrf.mxu0
      %v3189 = vadd.f32 0.0, %v3188
      %3190 = vmatmul.f32.gmra.mxu0 %v3076
      %v3191 = vpop.f32.mrf.mxu0
      %v3192 = vadd.f32 0.0, %v3191
      %3193 = vmatmul.f32.gmra.mxu0 %v3079
      %v3194 = vpop.f32.mrf.mxu0
      %v3195 = vadd.f32 0.0, %v3194
      %3196 = vmatmul.f32.gmra.mxu0 %v3082
      %v3197 = vpop.f32.mrf.mxu0
      %v3198 = vadd.f32 0.0, %v3197
      %3199 = vmatmul.f32.gmra.mxu0 %v3085
      %v3200 = vpop.f32.mrf.mxu0
      %v3201 = vadd.f32 0.0, %v3200
      %3202 = vmatmul.f32.gmra.mxu0 %v3088
      %v3203 = vpop.f32.mrf.mxu0
      %v3204 = vadd.f32 0.0, %v3203
      %3205 = vmatmul.f32.gmra.mxu0 %v3091
      %v3206 = vpop.f32.mrf.mxu0
      %v3207 = vadd.f32 0.0, %v3206
      %3208 = vmatmul.f32.gmra.mxu0 %v3094
      %v3209 = vpop.f32.mrf.mxu0
      %v3210 = vadd.f32 0.0, %v3209
      %3211 = vmatmul.f32.gmra.mxu0 %v3097
      %v3212 = vpop.f32.mrf.mxu0
      %v3213 = vadd.f32 0.0, %v3212
      %3214 = vmatmul.f32.gmra.mxu0 %v3100
      %v3215 = vpop.f32.mrf.mxu0
      %v3216 = vadd.f32 0.0, %v3215
      %3217 = vmatmul.f32.gmra.mxu0 %v3103
      %v3218 = vpop.f32.mrf.mxu0
      %v3219 = vadd.f32 0.0, %v3218
      %3220 = vmatmul.f32.gmra.mxu0 %v3106
      %v3221 = vpop.f32.mrf.mxu0
      %v3222 = vadd.f32 0.0, %v3221
      %3223 = vmatmul.f32.gmra.mxu0 %v3109
      %v3224 = vpop.f32.mrf.mxu0
      %v3225 = vadd.f32 0.0, %v3224
      %3226 = vmatmul.f32.gmra.mxu0 %v3112
      %v3227 = vpop.f32.mrf.mxu0
      %v3228 = vadd.f32 0.0, %v3227
      %3229 = vmatmul.f32.gmra.mxu0 %v3115
      %v3230 = vpop.f32.mrf.mxu0
      %v3231 = vadd.f32 0.0, %v3230
      %3232 = vmatmul.f32.gmra.mxu0 %v3118
      %v3233 = vpop.f32.mrf.mxu0
      %v3234 = vadd.f32 0.0, %v3233
      %3235 = vdwg.mxu0
      %v3236 = vadd.f32 %v2958, %v3141
      %v3237 = vadd.f32 %v2959, %v3144
      %v3238 = vadd.f32 %v2960, %v3147
      %v3239 = vadd.f32 %v2961, %v3150
      %v3240 = vadd.f32 %v2962, %v3153
      %v3241 = vadd.f32 %v2963, %v3156
      %v3242 = vadd.f32 %v2964, %v3159
      %v3243 = vadd.f32 %v2965, %v3162
      %v3244 = vadd.f32 %v2966, %v3165
      %v3245 = vadd.f32 %v2967, %v3168
      %v3246 = vadd.f32 %v2968, %v3171
      %v3247 = vadd.f32 %v2969, %v3174
      %v3248 = vadd.f32 %v2970, %v3177
      %v3249 = vadd.f32 %v2971, %v3180
      %v3250 = vadd.f32 %v2972, %v3183
      %v3251 = vadd.f32 %v2973, %v3186
      %v3252 = vadd.f32 %v2974, %v3189
      %v3253 = vadd.f32 %v2975, %v3192
      %v3254 = vadd.f32 %v2976, %v3195
      %v3255 = vadd.f32 %v2977, %v3198
      %v3256 = vadd.f32 %v2978, %v3201
      %v3257 = vadd.f32 %v2979, %v3204
      %v3258 = vadd.f32 %v2980, %v3207
      %v3259 = vadd.f32 %v2981, %v3210
      %v3260 = vadd.f32 %v2982, %v3213
      %v3261 = vadd.f32 %v2983, %v3216
      %v3262 = vadd.f32 %v2984, %v3219
      %v3263 = vadd.f32 %v2985, %v3222
      %v3264 = vadd.f32 %v2986, %v3225
      %v3265 = vadd.f32 %v2987, %v3228
      %v3266 = vadd.f32 %v2988, %v3231
      %v3267 = vadd.f32 %v2989, %v3234
      %v3268 = vld [vmem:[%s2] sm:$0x1]
      %v3270 = vperm.slane %v3268, 0
      %v3272 = vadd.f32 %v3236, %v3270
      %v3273 = vadd.f32 %v3237, %v3270
      %v3274 = vadd.f32 %v3238, %v3270
      %v3275 = vadd.f32 %v3239, %v3270
      %v3276 = vadd.f32 %v3240, %v3270
      %v3277 = vadd.f32 %v3241, %v3270
      %v3278 = vadd.f32 %v3242, %v3270
      %v3279 = vadd.f32 %v3243, %v3270
      %v3280 = vadd.f32 %v3244, %v3270
      %v3281 = vadd.f32 %v3245, %v3270
      %v3282 = vadd.f32 %v3246, %v3270
      %v3283 = vadd.f32 %v3247, %v3270
      %v3284 = vadd.f32 %v3248, %v3270
      %v3285 = vadd.f32 %v3249, %v3270
      %v3286 = vadd.f32 %v3250, %v3270
      %v3287 = vadd.f32 %v3251, %v3270
      %v3288 = vadd.f32 %v3252, %v3270
      %v3289 = vadd.f32 %v3253, %v3270
      %v3290 = vadd.f32 %v3254, %v3270
      %v3291 = vadd.f32 %v3255, %v3270
      %v3292 = vadd.f32 %v3256, %v3270
      %v3293 = vadd.f32 %v3257, %v3270
      %v3294 = vadd.f32 %v3258, %v3270
      %v3295 = vadd.f32 %v3259, %v3270
      %v3296 = vadd.f32 %v3260, %v3270
      %v3297 = vadd.f32 %v3261, %v3270
      %v3298 = vadd.f32 %v3262, %v3270
      %v3299 = vadd.f32 %v3263, %v3270
      %v3300 = vadd.f32 %v3264, %v3270
      %v3301 = vadd.f32 %v3265, %v3270
      %v3302 = vadd.f32 %v3266, %v3270
      %v3303 = vadd.f32 %v3267, %v3270
      %v3304 = vmul.f32 %v3272, 0.2
      %v3305 = vmul.f32 %v3273, 0.2
      %v3306 = vmul.f32 %v3274, 0.2
      %v3307 = vmul.f32 %v3275, 0.2
      %v3308 = vmul.f32 %v3276, 0.2
      %v3309 = vmul.f32 %v3277, 0.2
      %v3310 = vmul.f32 %v3278, 0.2
      %v3311 = vmul.f32 %v3279, 0.2
      %v3312 = vmul.f32 %v3280, 0.2
      %v3313 = vmul.f32 %v3281, 0.2
      %v3314 = vmul.f32 %v3282, 0.2
      %v3315 = vmul.f32 %v3283, 0.2
      %v3316 = vmul.f32 %v3284, 0.2
      %v3317 = vmul.f32 %v3285, 0.2
      %v3318 = vmul.f32 %v3286, 0.2
      %v3319 = vmul.f32 %v3287, 0.2
      %v3320 = vmul.f32 %v3288, 0.2
      %v3321 = vmul.f32 %v3289, 0.2
      %v3322 = vmul.f32 %v3290, 0.2
      %v3323 = vmul.f32 %v3291, 0.2
      %v3324 = vmul.f32 %v3292, 0.2
      %v3325 = vmul.f32 %v3293, 0.2
      %v3326 = vmul.f32 %v3294, 0.2
      %v3327 = vmul.f32 %v3295, 0.2
      %v3328 = vmul.f32 %v3296, 0.2
      %v3329 = vmul.f32 %v3297, 0.2
      %v3330 = vmul.f32 %v3298, 0.2
      %v3331 = vmul.f32 %v3299, 0.2
      %v3332 = vmul.f32 %v3300, 0.2
      %v3333 = vmul.f32 %v3301, 0.2
      %v3334 = vmul.f32 %v3302, 0.2
      %v3335 = vmul.f32 %v3303, 0.2
      %v3336 = vmax.f32 %v3272, %v3304
      %v3337 = vmax.f32 %v3273, %v3305
      %v3338 = vmax.f32 %v3274, %v3306
      %v3339 = vmax.f32 %v3275, %v3307
      %v3340 = vmax.f32 %v3276, %v3308
      %v3341 = vmax.f32 %v3277, %v3309
      %v3342 = vmax.f32 %v3278, %v3310
      %v3343 = vmax.f32 %v3279, %v3311
      %v3344 = vmax.f32 %v3280, %v3312
      %v3345 = vmax.f32 %v3281, %v3313
      %v3346 = vmax.f32 %v3282, %v3314
      %v3347 = vmax.f32 %v3283, %v3315
      %v3348 = vmax.f32 %v3284, %v3316
      %v3349 = vmax.f32 %v3285, %v3317
      %v3350 = vmax.f32 %v3286, %v3318
      %v3351 = vmax.f32 %v3287, %v3319
      %v3352 = vmax.f32 %v3288, %v3320
      %v3353 = vmax.f32 %v3289, %v3321
      %v3354 = vmax.f32 %v3290, %v3322
      %v3355 = vmax.f32 %v3291, %v3323
      %v3356 = vmax.f32 %v3292, %v3324
      %v3357 = vmax.f32 %v3293, %v3325
      %v3358 = vmax.f32 %v3294, %v3326
      %v3359 = vmax.f32 %v3295, %v3327
      %v3360 = vmax.f32 %v3296, %v3328
      %v3361 = vmax.f32 %v3297, %v3329
      %v3362 = vmax.f32 %v3298, %v3330
      %v3363 = vmax.f32 %v3299, %v3331
      %v3364 = vmax.f32 %v3300, %v3332
      %v3365 = vmax.f32 %v3301, %v3333
      %v3366 = vmax.f32 %v3302, %v3334
      %v3367 = vmax.f32 %v3303, %v3335
      %vm3368 = vcmask 64512
      %3369 = vst.msk [vmem:[%s170] sm:$0xff] %vm3368, %v3336
      %3370 = vst.msk [vmem:[%s170 + $0x8] sm:$0xff] %vm3368, %v3337
      %3371 = vst.msk [vmem:[%s170 + $0x10] sm:$0xff] %vm3368, %v3338
      %3372 = vst.msk [vmem:[%s170 + $0x18] sm:$0xff] %vm3368, %v3339
      %3373 = vst.msk [vmem:[%s170 + $0x20] sm:$0xff] %vm3368, %v3340
      %3374 = vst.msk [vmem:[%s170 + $0x28] sm:$0xff] %vm3368, %v3341
      %3375 = vst.msk [vmem:[%s170 + $0x30] sm:$0xff] %vm3368, %v3342
      %3376 = vst.msk [vmem:[%s170 + $0x38] sm:$0xff] %vm3368, %v3343
      %3377 = vst.msk [vmem:[%s170 + $0x40] sm:$0xff] %vm3368, %v3344
      %3378 = vst.msk [vmem:[%s170 + $0x48] sm:$0xff] %vm3368, %v3345
      %3379 = vst.msk [vmem:[%s170 + $0x50] sm:$0xff] %vm3368, %v3346
      %3380 = vst.msk [vmem:[%s170 + $0x58] sm:$0xff] %vm3368, %v3347
      %3381 = vst.msk [vmem:[%s170 + $0x60] sm:$0xff] %vm3368, %v3348
      %3382 = vst.msk [vmem:[%s170 + $0x68] sm:$0xff] %vm3368, %v3349
      %3383 = vst.msk [vmem:[%s170 + $0x70] sm:$0xff] %vm3368, %v3350
      %3384 = vst.msk [vmem:[%s170 + $0x78] sm:$0xff] %vm3368, %v3351
      %3385 = vst.msk [vmem:[%s170 + $0x80] sm:$0xff] %vm3368, %v3352
      %3386 = vst.msk [vmem:[%s170 + $0x88] sm:$0xff] %vm3368, %v3353
      %3387 = vst.msk [vmem:[%s170 + $0x90] sm:$0xff] %vm3368, %v3354
      %3388 = vst.msk [vmem:[%s170 + $0x98] sm:$0xff] %vm3368, %v3355
      %3389 = vst.msk [vmem:[%s170 + $0xa0] sm:$0xff] %vm3368, %v3356
      %3390 = vst.msk [vmem:[%s170 + $0xa8] sm:$0xff] %vm3368, %v3357
      %3391 = vst.msk [vmem:[%s170 + $0xb0] sm:$0xff] %vm3368, %v3358
      %3392 = vst.msk [vmem:[%s170 + $0xb8] sm:$0xff] %vm3368, %v3359
      %3393 = vst.msk [vmem:[%s170 + $0xc0] sm:$0xff] %vm3368, %v3360
      %3394 = vst.msk [vmem:[%s170 + $0xc8] sm:$0xff] %vm3368, %v3361
      %3395 = vst.msk [vmem:[%s170 + $0xd0] sm:$0xff] %vm3368, %v3362
      %3396 = vst.msk [vmem:[%s170 + $0xd8] sm:$0xff] %vm3368, %v3363
      %3397 = vst.msk [vmem:[%s170 + $0xe0] sm:$0xff] %vm3368, %v3364
      %3398 = vst.msk [vmem:[%s170 + $0xe8] sm:$0xff] %vm3368, %v3365
      %3399 = vst.msk [vmem:[%s170 + $0xf0] sm:$0xff] %vm3368, %v3366
      %3400 = vst.msk [vmem:[%s170 + $0xf8] sm:$0xff] %vm3368, %v3367
      %p3401 = scmp.lt.s32.totalorder %s14, 1
      %s3402 = scalar_select %p3401, %s14, 1
      %s3403 = smul.addr %s3402, 32
      %s3404 = smul.addr %s3403, 8
      %s3405 = scalar_lea.vmem %s3, %s3404
      // Predicated region
      $region33: #{tpu_custom_call.1} parent=31 // pred_check
        %p3406 = pneg %p100
      $region34: #{tpu_custom_call.1} parent=31 // pred_check_branch
        %3408 = sbr.rel (%p3406) target = $region36
      $region35: #{tpu_custom_call.1} parent=31 // pred_region
        _
      $region36: #{tpu_custom_call.1} parent=31 // pred_fallthru
        _
    $region32: #{tpu_custom_call.1} parent=5 // pred_fallthru
      _
    %p3409 = scmp.le.s32.totalorder 2, %s9
    // Predicated region
    $region37: #{tpu_custom_call.1} parent=5 // pred_check
      %p3410 = pneg %p3409
    $region38: #{tpu_custom_call.1} parent=5 // pred_check_branch
      %3412 = sbr.rel (%p3410) target = $region40
    $region39: #{tpu_custom_call.1} parent=5 // pred_region
      %s3413 = ssub.s32 %s9, 2
      // Predicated region
      $region41: #{tpu_custom_call.1} parent=39 // pred_check
        %p3414 = pneg %p106
      $region42: #{tpu_custom_call.1} parent=39 // pred_check_branch
        %3416 = sbr.rel (%p3414) target = $region44
      $region43: #{tpu_custom_call.1} parent=39 // pred_region
        %p3417 = scmp.lt.s32.totalorder %s15, 1
        %s3418 = scalar_select %p3417, %s15, 1
        %s3419 = smul.addr %s3418, 32
        %s3420 = smul.addr %s3419, 8
        %s3421 = scalar_lea.vmem %s3, %s3420
      $region44: #{tpu_custom_call.1} parent=39 // pred_fallthru
        _
    $region40: #{tpu_custom_call.1} parent=5 // pred_fallthru
      _
  $region6: #{tpu_custom_call.1} parent=0 // loop_footer
    %s13 = sadd.s32 1, %s9
  $region7: #{tpu_custom_call.1} parent=0 // loop_footer_branch
    %8 = sbr.rel target = $region3
  $region8: #{tpu_custom_call.1} parent=0 // loop_exit
    _

</llo_original>
